<compile_context>
chip_gen: v7x
topology: tpu7x:2x2x1
jax: 0.10.0
libtpu: 0.0.40
codegen_flags: <defaults>
</compile_context>

<pallas_src>
import functools

import jax
import jax.numpy as jnp
from jax import lax
from jax.experimental import pallas as pl
from jax.experimental.pallas import tpu as pltpu


# tap order = (ky, kx) row-major of the 3x3 kernel, expressed as offsets.
_TAPS = tuple((dy, dx) for dy in (-1, 0, 1) for dx in (-1, 0, 1))


# ----------------------------- kernel helpers ------------------------------
def _shift(v, s, hw):
    """out[:, f] = v[:, (f + s) mod hw]  (circular; callers mask the wrap).

    Implemented with two static lane slices + concat (== static jnp.roll),
    which lowers on Mosaic and evaluates in interpret mode."""
    k = s % hw
    if k == 0:
        return v
    return jnp.concatenate([v[:, k:], v[:, :k]], axis=1)


def _tap_masks(x_idx, flat, H, W):
    """Boundary-validity masks [1, HW] f32, one per non-center 3x3 tap.

    Shared by conv1 and conv2.  y-conditions are derived from the flat index
    (flat + dy*W in [0, HW) <=> y + dy in [0, H))."""
    HW = H * W
    one = jnp.float32(1.0)
    zero = jnp.float32(0.0)
    mx = {dx: jnp.where((x_idx + dx >= 0) & (x_idx + dx < W), one, zero)
          for dx in (-1, 1)}
    my = {dy: jnp.where((flat + dy * W >= 0) & (flat + dy * W < HW), one, zero)
          for dy in (-1, 1)}
    masks = {}
    for dy, dx in _TAPS:
        if dy == 0 and dx == 0:
            masks[(dy, dx)] = None          # center tap: always valid
        elif dy == 0:
            masks[(dy, dx)] = mx[dx]
        elif dx == 0:
            masks[(dy, dx)] = my[dy]
        else:
            masks[(dy, dx)] = mx[dx] * my[dy]
    return masks


def _conv3x3_taps(v, w_ref, b_ref, masks, W, HW):
    """3x3 zero-padded conv (stride 1) as a 9-tap accumulation.

    v: [Cin, HW] f32;  w_ref: [9, Cout, Cin] f32 VMEM ref;
    b_ref: [Cout, 1] f32.  Returns pre-activation [Cout, HW] f32.

    Masking either matmul operand is equivalent to zero-padding, because the
    contraction never mixes spatial positions; mask the side with fewer
    channels (fewer VPU multiplies)."""
    cin = v.shape[0]
    cout = w_ref.shape[1]
    mask_input = cin <= cout
    acc = None
    for t, (dy, dx) in enumerate(_TAPS):
        shifted = _shift(v, dy * W + dx, HW)
        m = masks[(dy, dx)]
        if m is not None and mask_input:
            shifted = shifted * m
        contrib = jnp.dot(w_ref[t], shifted,
                          preferred_element_type=jnp.float32)   # [Cout, HW]
        if m is not None and not mask_input:
            contrib = contrib * m
        acc = contrib if acc is None else acc + contrib
    return acc + b_ref[...]


def _box5_reflect(v, pos, unit, N, HW, scale):
    """5-tap box SUM (times `scale`) along one spatial axis with PyTorch
    'reflect' boundary handling, on flattened [1, HW] f32 maps.

    pos:  per-pixel position index scaled by `unit` (x_idx with unit=1 for the
          x pass, the flat index with unit=W for the y pass).
    N:    spatial extent along the filtered axis."""
    one = jnp.float32(1.0)
    zero = jnp.float32(0.0)
    lim = N * unit
    out = None
    for k in (-2, -1, 0, 1, 2):
        q = pos + k * unit
        base = jnp.where((q >= 0) & (q < lim), one, zero)
        if k in (1, 2):                     # left-edge reflection -> idx+k
            extra = pos < unit              # idx == 0
        elif k == 0:                        # reflections landing on idx itself
            extra = (((pos >= unit) & (pos < 2 * unit)) |                 # idx==1
                     ((pos >= (N - 2) * unit) & (pos < (N - 1) * unit)))  # idx==N-2
        else:                               # right-edge reflection -> idx+k
            extra = pos >= (N - 1) * unit   # idx == N-1
        w = (base + jnp.where(extra, one, zero)) * jnp.float32(scale)
        term = w * _shift(v, k * unit, HW)
        out = term if out is None else out + term
    return out


# --------------------------------- kernel ----------------------------------
def _illumination_kernel(x_idx_ref, x_ref,
                         w1_ref, b1_ref, w2_ref, b2_ref, w3_ref, b3_ref,
                         enh_ref, snr_ref, *, H, W):
    HW = H * W
    x_idx = x_idx_ref[...]                                      # [1, HW] i32
    flat = lax.broadcasted_iota(jnp.int32, (1, HW), 1)          # [1, HW] i32

    x = x_ref[...].astype(jnp.float32)                          # [3, HW]

    # illumination prior: per-pixel max over RGB as a 4th channel
    illum = jnp.max(x, axis=0, keepdims=True)                   # [1, HW]
    x4 = jnp.concatenate([x, illum], axis=0)                    # [4, HW]

    # boundary masks built once, reused by both convs
    masks = _tap_masks(x_idx, flat, H, W)

    # conv1: 3x3, 4 -> 32, zero pad 1, LeakyReLU(0.01)
    h1 = _conv3x3_taps(x4, w1_ref, b1_ref, masks, W, HW)
    h1 = jnp.where(h1 > 0, h1, 0.01 * h1)                       # [32, HW] f32

    # conv2: 3x3, 32 -> 16, zero pad 1, LeakyReLU(0.01)
    h2 = _conv3x3_taps(h1, w2_ref, b2_ref, masks, W, HW)
    h2 = jnp.where(h2 > 0, h2, 0.01 * h2)                       # [16, HW] f32

    # reduce: 1x1 conv, 16 -> 1, + sigmoid
    logit = jnp.dot(w3_ref[...], h2,
                    preferred_element_type=jnp.float32) + b3_ref[...]
    ill_map = jax.nn.sigmoid(logit)                             # [1, HW]

    enh = x * ill_map                                           # [3, HW]
    enh_ref[...] = enh.astype(enh_ref.dtype)

    # SNR map: gray -> separable 5x5 reflect-padded box mean -> ratio
    gray = 0.299 * enh[0:1] + 0.587 * enh[1:2] + 0.114 * enh[2:3]   # [1, HW]
    hsum = _box5_reflect(gray, x_idx, 1, W, HW, 1.0)                # x pass
    denoised = _box5_reflect(hsum, flat, W, H, HW, 1.0 / 25.0)      # y pass
    snr = denoised / (jnp.abs(gray - denoised) + jnp.float32(1e-6))
    snr_ref[...] = snr.astype(snr_ref.dtype)


# --------------------------------- wrapper ---------------------------------
def easy_illumination_net(x, params):
    """x: [B, 3, H, W] f32 (NCHW, like PyTorch). Returns (enhanced, snr_map)."""
    w1, b1, w2, b2, w3, b3 = params
    B, C, H, W = x.shape
    assert C == 3
    HW = H * W
    xf = x.reshape(B, C, HW).astype(jnp.float32)

    # per-tap weights [9, Cout, Cin], tap order (ky, kx) row-major == _TAPS.
    w1t = jnp.transpose(w1, (2, 3, 0, 1)).reshape(9, 32, 4).astype(jnp.float32)
    w2t = jnp.transpose(w2, (2, 3, 0, 1)).reshape(9, 16, 32).astype(jnp.float32)
    w3m = w3.reshape(1, 16).astype(jnp.float32)
    b1c = b1.reshape(32, 1).astype(jnp.float32)
    b2c = b2.reshape(16, 1).astype(jnp.float32)
    b3c = b3.reshape(1, 1).astype(jnp.float32)

    # column index of every flattened pixel (row index is derived in-kernel).
    flat = jnp.arange(HW, dtype=jnp.int32)
    x_idx = (flat % W)[None, :]                                   # [1, HW]

    kernel = functools.partial(_illumination_kernel, H=H, W=W)

    def full(shape):
        n = len(shape)
        return pl.BlockSpec(shape, lambda b, _n=n: (0,) * _n)

    matmul_flops = 2 * HW * (9 * 32 * 4 + 9 * 16 * 32 + 16)
    cost = pl.CostEstimate(
        flops=int(B * (matmul_flops + 250 * HW)),
        transcendentals=int(B * HW),
        bytes_accessed=int(B * HW * 4 * (3 + 1 + 3 + 1)
                           + 4 * 9 * (32 * 4 + 16 * 32)),
    )

    enh_flat, snr_flat = pl.pallas_call(
        kernel,
        out_shape=(jax.ShapeDtypeStruct((B, 3, HW), jnp.float32),
                   jax.ShapeDtypeStruct((B, 1, HW), jnp.float32)),
        grid_spec=pltpu.PrefetchScalarGridSpec(
            num_scalar_prefetch=0,
            grid=(B,),
            in_specs=[full((1, HW)),
                      pl.BlockSpec((None, 3, HW), lambda b: (b, 0, 0)),
                      full((9, 32, 4)), full((32, 1)),
                      full((9, 16, 32)), full((16, 1)),
                      full((1, 16)), full((1, 1))],
            out_specs=[pl.BlockSpec((None, 3, HW), lambda b: (b, 0, 0)),
                       pl.BlockSpec((None, 1, HW), lambda b: (b, 0, 0))]),
        compiler_params=pltpu.CompilerParams(
            dimension_semantics=("parallel",)),
        cost_estimate=cost,
    )(x_idx, xf, w1t, b1c, w2t, b2c, w3m, b3c)

    return enh_flat.reshape(B, 3, H, W), snr_flat.reshape(B, 1, H, W)


# ------------------------------ pure-JAX ref --------------------------------
def reference_forward(x, params):
    w1, b1, w2, b2, w3, b3 = params

    def conv(v, w, b, pad):
        out = lax.conv_general_dilated(
            v, w, window_strides=(1, 1), padding=[(pad, pad), (pad, pad)],
            dimension_numbers=('NCHW', 'OIHW', 'NCHW'),
            precision=lax.Precision.HIGHEST)
        return out + b.reshape(1, -1, 1, 1)

    illum = jnp.max(x, axis=1, keepdims=True)
    x4 = jnp.concatenate([x, illum], axis=1)
    h1 = conv(x4, w1, b1, 1)
    h1 = jnp.where(h1 > 0, h1, 0.01 * h1)
    h2 = conv(h1, w2, b2, 1)
    h2 = jnp.where(h2 > 0, h2, 0.01 * h2)
    ill = jax.nn.sigmoid(conv(h2, w3, b3, 0))
    enh = x * ill
    gray = 0.299 * enh[:, 0:1] + 0.587 * enh[:, 1:2] + 0.114 * enh[:, 2:3]
    gp = jnp.pad(gray, ((0, 0), (0, 0), (2, 2), (2, 2)), mode='reflect')
    H, W = x.shape[2], x.shape[3]
    den = sum(gp[:, :, dy:dy + H, dx:dx + W]
              for dy in range(5) for dx in range(5)) / 25.0
    snr = den / (jnp.abs(gray - den) + 1e-6)
    return enh, snr


# ---------------------------------- main ------------------------------------
if __name__ == "__main__":
    key = jax.random.PRNGKey(0)
    ks = jax.random.split(key, 7)
    w1 = 0.15 * jax.random.normal(ks[0], (32, 4, 3, 3), jnp.float32)
    b1 = 0.05 * jax.random.normal(ks[1], (32,), jnp.float32)
    w2 = 0.15 * jax.random.normal(ks[2], (16, 32, 3, 3), jnp.float32)
    b2 = 0.05 * jax.random.normal(ks[3], (16,), jnp.float32)
    w3 = 0.30 * jax.random.normal(ks[4], (1, 16, 1, 1), jnp.float32)
    b3 = 0.05 * jax.random.normal(ks[5], (1,), jnp.float32)
    params = (w1, b1, w2, b2, w3, b3)

    x = jax.random.uniform(ks[6], (2, 3, 16, 16), jnp.float32)  # low-light image

    fwd = jax.jit(lambda xx: easy_illumination_net(xx, params))
    enhanced, snr_map = fwd(x)
    jax.block_until_ready((enhanced, snr_map))

    # sanity checks against a pure-JAX f32 reference
    enh_expected, snr_expected = reference_forward(x, params)
    assert enhanced.shape == (2, 3, 16, 16) and snr_map.shape == (2, 1, 16, 16)
    assert bool(jnp.allclose(enhanced, enh_expected, atol=2e-2, rtol=2e-2)), \
        "enhanced image mismatch vs reference"
    assert bool(jnp.all(jnp.isfinite(snr_map))) and bool(jnp.all(snr_map > 0)), \
        "snr map not finite/positive"
    # bounded transform snr/(1+snr) validates the reflect-padded box filter
    # without the blow-up of relative error where |gray - denoised| ~ 0.
    # Tolerances are sized for a possible bf16-pass MXU matmul on hardware;
    # in interpret / full-f32 mode the match is essentially exact.
    t_k = snr_map / (1.0 + snr_map)
    t_r = snr_expected / (1.0 + snr_expected)
    diff = jnp.abs(t_k - t_r)
    assert bool(jnp.mean(diff) < 2e-2) and bool(jnp.max(diff) < 0.35), \
        "snr map mismatch vs reference"

    print("KERNEL_OK")
</pallas_src>

<mosaic_0001>
module attributes {stable_mosaic.version = 11 : i64} {
  func.func @_illumination_kernel(%arg0: i32, %arg1: memref<1x256xi32, #tpu.memory_space<vmem>>, %arg2: memref<1x3x256xf32, #tpu.memory_space<vmem>>, %arg3: memref<9x32x4xf32, #tpu.memory_space<vmem>>, %arg4: memref<32x1xf32, #tpu.memory_space<vmem>>, %arg5: memref<9x16x32xf32, #tpu.memory_space<vmem>>, %arg6: memref<16x1xf32, #tpu.memory_space<vmem>>, %arg7: memref<1x16xf32, #tpu.memory_space<vmem>>, %arg8: memref<1x1xf32, #tpu.memory_space<vmem>>, %arg9: memref<1x3x256xf32, #tpu.memory_space<vmem>>, %arg10: memref<1x1x256xf32, #tpu.memory_space<vmem>>) attributes {dimension_semantics = [#tpu.dimension_semantics<parallel>], iteration_bounds = array<i64: 2>, scalar_prefetch = 0 : i64, scratch_operands = 0 : i64, tpu.core_type = #tpu.core_type<tc>, window_params = [{pipeline_mode = #tpu.pipeline_mode<synchronous>, transform_indices = @transform_0, window_bounds = array<i64: 1, 256>}, {transform_indices = @transform_1, window_bounds = array<i64: 1, 3, 256>}, {pipeline_mode = #tpu.pipeline_mode<synchronous>, transform_indices = @transform_2, window_bounds = array<i64: 9, 32, 4>}, {pipeline_mode = #tpu.pipeline_mode<synchronous>, transform_indices = @transform_3, window_bounds = array<i64: 32, 1>}, {pipeline_mode = #tpu.pipeline_mode<synchronous>, transform_indices = @transform_4, window_bounds = array<i64: 9, 16, 32>}, {pipeline_mode = #tpu.pipeline_mode<synchronous>, transform_indices = @transform_5, window_bounds = array<i64: 16, 1>}, {pipeline_mode = #tpu.pipeline_mode<synchronous>, transform_indices = @transform_6, window_bounds = array<i64: 1, 16>}, {pipeline_mode = #tpu.pipeline_mode<synchronous>, transform_indices = @transform_7, window_bounds = array<i64: 1, 1>}, {transform_indices = @transform_8, window_bounds = array<i64: 1, 3, 256>}, {transform_indices = @transform_9, window_bounds = array<i64: 1, 1, 256>}]} {
    %c0 = arith.constant 0 : index
    %c0_0 = arith.constant 0 : index
    %0 = vector.load %arg1[%c0, %c0_0] : memref<1x256xi32, #tpu.memory_space<vmem>>, vector<1x256xi32>
    %1 = tpu.iota {dimensions = array<i32: 1>} : vector<1x256xi32>
    %c0_1 = arith.constant 0 : index
    %c0_2 = arith.constant 0 : index
    %c0_3 = arith.constant 0 : index
    %2 = vector.load %arg2[%c0_1, %c0_2, %c0_3] : memref<1x3x256xf32, #tpu.memory_space<vmem>>, vector<1x3x256xf32>
    %3 = vector.shape_cast %2 : vector<1x3x256xf32> to vector<3x256xf32>
    %cst = arith.constant dense<0xFF800000> : vector<256xf32>
    %4 = vector.multi_reduction <maximumf>, %3, %cst [0] : vector<3x256xf32> to vector<256xf32>
    %5 = vector.shape_cast %4 : vector<256xf32> to vector<1x256xf32>
    %6 = tpu.concatenate %3, %5 in 0 : vector<3x256xf32>, vector<1x256xf32> -> vector<4x256xf32>
    %c-1_i32 = arith.constant -1 : i32
    %7 = vector.broadcast %c-1_i32 : i32 to vector<1x256xi32>
    %8 = arith.addi %0, %7 : vector<1x256xi32>
    %c0_i32 = arith.constant 0 : i32
    %9 = vector.broadcast %c0_i32 : i32 to vector<1x256xi32>
    %10 = arith.cmpi sge, %8, %9 : vector<1x256xi32>
    %c-1_i32_4 = arith.constant -1 : i32
    %11 = vector.broadcast %c-1_i32_4 : i32 to vector<1x256xi32>
    %12 = arith.addi %0, %11 : vector<1x256xi32>
    %c16_i32 = arith.constant 16 : i32
    %13 = vector.broadcast %c16_i32 : i32 to vector<1x256xi32>
    %14 = arith.cmpi slt, %12, %13 : vector<1x256xi32>
    %15 = arith.andi %10, %14 : vector<1x256xi1>
    %cst_5 = arith.constant 1.000000e+00 : f32
    %cst_6 = arith.constant 0.000000e+00 : f32
    %16 = vector.broadcast %cst_5 : f32 to vector<1x256xf32>
    %17 = vector.broadcast %cst_6 : f32 to vector<1x256xf32>
    %18 = arith.select %15, %16, %17 : vector<1x256xi1>, vector<1x256xf32>
    %c1_i32 = arith.constant 1 : i32
    %19 = vector.broadcast %c1_i32 : i32 to vector<1x256xi32>
    %20 = arith.addi %0, %19 : vector<1x256xi32>
    %c0_i32_7 = arith.constant 0 : i32
    %21 = vector.broadcast %c0_i32_7 : i32 to vector<1x256xi32>
    %22 = arith.cmpi sge, %20, %21 : vector<1x256xi32>
    %c1_i32_8 = arith.constant 1 : i32
    %23 = vector.broadcast %c1_i32_8 : i32 to vector<1x256xi32>
    %24 = arith.addi %0, %23 : vector<1x256xi32>
    %c16_i32_9 = arith.constant 16 : i32
    %25 = vector.broadcast %c16_i32_9 : i32 to vector<1x256xi32>
    %26 = arith.cmpi slt, %24, %25 : vector<1x256xi32>
    %27 = arith.andi %22, %26 : vector<1x256xi1>
    %cst_10 = arith.constant 1.000000e+00 : f32
    %cst_11 = arith.constant 0.000000e+00 : f32
    %28 = vector.broadcast %cst_10 : f32 to vector<1x256xf32>
    %29 = vector.broadcast %cst_11 : f32 to vector<1x256xf32>
    %30 = arith.select %27, %28, %29 : vector<1x256xi1>, vector<1x256xf32>
    %c-16_i32 = arith.constant -16 : i32
    %31 = vector.broadcast %c-16_i32 : i32 to vector<1x256xi32>
    %32 = arith.addi %1, %31 : vector<1x256xi32>
    %c0_i32_12 = arith.constant 0 : i32
    %33 = vector.broadcast %c0_i32_12 : i32 to vector<1x256xi32>
    %34 = arith.cmpi sge, %32, %33 : vector<1x256xi32>
    %c-16_i32_13 = arith.constant -16 : i32
    %35 = vector.broadcast %c-16_i32_13 : i32 to vector<1x256xi32>
    %36 = arith.addi %1, %35 : vector<1x256xi32>
    %c256_i32 = arith.constant 256 : i32
    %37 = vector.broadcast %c256_i32 : i32 to vector<1x256xi32>
    %38 = arith.cmpi slt, %36, %37 : vector<1x256xi32>
    %39 = arith.andi %34, %38 : vector<1x256xi1>
    %cst_14 = arith.constant 1.000000e+00 : f32
    %cst_15 = arith.constant 0.000000e+00 : f32
    %40 = vector.broadcast %cst_14 : f32 to vector<1x256xf32>
    %41 = vector.broadcast %cst_15 : f32 to vector<1x256xf32>
    %42 = arith.select %39, %40, %41 : vector<1x256xi1>, vector<1x256xf32>
    %c16_i32_16 = arith.constant 16 : i32
    %43 = vector.broadcast %c16_i32_16 : i32 to vector<1x256xi32>
    %44 = arith.addi %1, %43 : vector<1x256xi32>
    %c0_i32_17 = arith.constant 0 : i32
    %45 = vector.broadcast %c0_i32_17 : i32 to vector<1x256xi32>
    %46 = arith.cmpi sge, %44, %45 : vector<1x256xi32>
    %c16_i32_18 = arith.constant 16 : i32
    %47 = vector.broadcast %c16_i32_18 : i32 to vector<1x256xi32>
    %48 = arith.addi %1, %47 : vector<1x256xi32>
    %c256_i32_19 = arith.constant 256 : i32
    %49 = vector.broadcast %c256_i32_19 : i32 to vector<1x256xi32>
    %50 = arith.cmpi slt, %48, %49 : vector<1x256xi32>
    %51 = arith.andi %46, %50 : vector<1x256xi1>
    %cst_20 = arith.constant 1.000000e+00 : f32
    %cst_21 = arith.constant 0.000000e+00 : f32
    %52 = vector.broadcast %cst_20 : f32 to vector<1x256xf32>
    %53 = vector.broadcast %cst_21 : f32 to vector<1x256xf32>
    %54 = arith.select %51, %52, %53 : vector<1x256xi1>, vector<1x256xf32>
    %55 = arith.mulf %18, %42 : vector<1x256xf32>
    %56 = arith.mulf %30, %42 : vector<1x256xf32>
    %57 = arith.mulf %18, %54 : vector<1x256xf32>
    %58 = arith.mulf %30, %54 : vector<1x256xf32>
    %59 = vector.extract_strided_slice %6 {offsets = [0, 239], sizes = [4, 17], strides = [1, 1]} : vector<4x256xf32> to vector<4x17xf32>
    %60 = vector.extract_strided_slice %6 {offsets = [0, 0], sizes = [4, 239], strides = [1, 1]} : vector<4x256xf32> to vector<4x239xf32>
    %61 = tpu.concatenate %59, %60 in 1 : vector<4x17xf32>, vector<4x239xf32> -> vector<4x256xf32>
    %62 = vector.broadcast %55 : vector<1x256xf32> to vector<4x256xf32>
    %63 = arith.mulf %61, %62 : vector<4x256xf32>
    %c0_22 = arith.constant 0 : index
    %c0_23 = arith.constant 0 : index
    %c0_24 = arith.constant 0 : index
    %64 = vector.load %arg3[%c0_22, %c0_23, %c0_24] : memref<9x32x4xf32, #tpu.memory_space<vmem>>, vector<1x32x4xf32>
    %65 = vector.shape_cast %64 : vector<1x32x4xf32> to vector<32x4xf32>
    %cst_25 = arith.constant dense<0.000000e+00> : vector<32x256xf32>
    %66 = tpu.matmul %65, %63, %cst_25 {dimension_numbers = #tpu.dot_dimension_numbers<[1], [0], [0], [1], [0, 0, 1, 1], [], []>} : vector<32x4xf32>, vector<4x256xf32>, vector<32x256xf32> -> vector<32x256xf32>
    %67 = vector.extract_strided_slice %6 {offsets = [0, 240], sizes = [4, 16], strides = [1, 1]} : vector<4x256xf32> to vector<4x16xf32>
    %68 = vector.extract_strided_slice %6 {offsets = [0, 0], sizes = [4, 240], strides = [1, 1]} : vector<4x256xf32> to vector<4x240xf32>
    %69 = tpu.concatenate %67, %68 in 1 : vector<4x16xf32>, vector<4x240xf32> -> vector<4x256xf32>
    %70 = vector.broadcast %42 : vector<1x256xf32> to vector<4x256xf32>
    %71 = arith.mulf %69, %70 : vector<4x256xf32>
    %c1 = arith.constant 1 : index
    %c0_26 = arith.constant 0 : index
    %c0_27 = arith.constant 0 : index
    %72 = vector.load %arg3[%c1, %c0_26, %c0_27] : memref<9x32x4xf32, #tpu.memory_space<vmem>>, vector<1x32x4xf32>
    %73 = vector.shape_cast %72 : vector<1x32x4xf32> to vector<32x4xf32>
    %cst_28 = arith.constant dense<0.000000e+00> : vector<32x256xf32>
    %74 = tpu.matmul %73, %71, %cst_28 {dimension_numbers = #tpu.dot_dimension_numbers<[1], [0], [0], [1], [0, 0, 1, 1], [], []>} : vector<32x4xf32>, vector<4x256xf32>, vector<32x256xf32> -> vector<32x256xf32>
    %75 = arith.addf %66, %74 : vector<32x256xf32>
    %76 = vector.extract_strided_slice %6 {offsets = [0, 241], sizes = [4, 15], strides = [1, 1]} : vector<4x256xf32> to vector<4x15xf32>
    %77 = vector.extract_strided_slice %6 {offsets = [0, 0], sizes = [4, 241], strides = [1, 1]} : vector<4x256xf32> to vector<4x241xf32>
    %78 = tpu.concatenate %76, %77 in 1 : vector<4x15xf32>, vector<4x241xf32> -> vector<4x256xf32>
    %79 = vector.broadcast %56 : vector<1x256xf32> to vector<4x256xf32>
    %80 = arith.mulf %78, %79 : vector<4x256xf32>
    %c2 = arith.constant 2 : index
    %c0_29 = arith.constant 0 : index
    %c0_30 = arith.constant 0 : index
    %81 = vector.load %arg3[%c2, %c0_29, %c0_30] : memref<9x32x4xf32, #tpu.memory_space<vmem>>, vector<1x32x4xf32>
    %82 = vector.shape_cast %81 : vector<1x32x4xf32> to vector<32x4xf32>
    %cst_31 = arith.constant dense<0.000000e+00> : vector<32x256xf32>
    %83 = tpu.matmul %82, %80, %cst_31 {dimension_numbers = #tpu.dot_dimension_numbers<[1], [0], [0], [1], [0, 0, 1, 1], [], []>} : vector<32x4xf32>, vector<4x256xf32>, vector<32x256xf32> -> vector<32x256xf32>
    %84 = arith.addf %75, %83 : vector<32x256xf32>
    %85 = vector.extract_strided_slice %6 {offsets = [0, 255], sizes = [4, 1], strides = [1, 1]} : vector<4x256xf32> to vector<4x1xf32>
    %86 = vector.extract_strided_slice %6 {offsets = [0, 0], sizes = [4, 255], strides = [1, 1]} : vector<4x256xf32> to vector<4x255xf32>
    %87 = tpu.concatenate %85, %86 in 1 : vector<4x1xf32>, vector<4x255xf32> -> vector<4x256xf32>
    %88 = vector.broadcast %18 : vector<1x256xf32> to vector<4x256xf32>
    %89 = arith.mulf %87, %88 : vector<4x256xf32>
    %c3 = arith.constant 3 : index
    %c0_32 = arith.constant 0 : index
    %c0_33 = arith.constant 0 : index
    %90 = vector.load %arg3[%c3, %c0_32, %c0_33] : memref<9x32x4xf32, #tpu.memory_space<vmem>>, vector<1x32x4xf32>
    %91 = vector.shape_cast %90 : vector<1x32x4xf32> to vector<32x4xf32>
    %cst_34 = arith.constant dense<0.000000e+00> : vector<32x256xf32>
    %92 = tpu.matmul %91, %89, %cst_34 {dimension_numbers = #tpu.dot_dimension_numbers<[1], [0], [0], [1], [0, 0, 1, 1], [], []>} : vector<32x4xf32>, vector<4x256xf32>, vector<32x256xf32> -> vector<32x256xf32>
    %93 = arith.addf %84, %92 : vector<32x256xf32>
    %c4 = arith.constant 4 : index
    %c0_35 = arith.constant 0 : index
    %c0_36 = arith.constant 0 : index
    %94 = vector.load %arg3[%c4, %c0_35, %c0_36] : memref<9x32x4xf32, #tpu.memory_space<vmem>>, vector<1x32x4xf32>
    %95 = vector.shape_cast %94 : vector<1x32x4xf32> to vector<32x4xf32>
    %cst_37 = arith.constant dense<0.000000e+00> : vector<32x256xf32>
    %96 = tpu.matmul %95, %6, %cst_37 {dimension_numbers = #tpu.dot_dimension_numbers<[1], [0], [0], [1], [0, 0, 1, 1], [], []>} : vector<32x4xf32>, vector<4x256xf32>, vector<32x256xf32> -> vector<32x256xf32>
    %97 = arith.addf %93, %96 : vector<32x256xf32>
    %98 = vector.extract_strided_slice %6 {offsets = [0, 1], sizes = [4, 255], strides = [1, 1]} : vector<4x256xf32> to vector<4x255xf32>
    %99 = vector.extract_strided_slice %6 {offsets = [0, 0], sizes = [4, 1], strides = [1, 1]} : vector<4x256xf32> to vector<4x1xf32>
    %100 = tpu.concatenate %98, %99 in 1 : vector<4x255xf32>, vector<4x1xf32> -> vector<4x256xf32>
    %101 = vector.broadcast %30 : vector<1x256xf32> to vector<4x256xf32>
    %102 = arith.mulf %100, %101 : vector<4x256xf32>
    %c5 = arith.constant 5 : index
    %c0_38 = arith.constant 0 : index
    %c0_39 = arith.constant 0 : index
    %103 = vector.load %arg3[%c5, %c0_38, %c0_39] : memref<9x32x4xf32, #tpu.memory_space<vmem>>, vector<1x32x4xf32>
    %104 = vector.shape_cast %103 : vector<1x32x4xf32> to vector<32x4xf32>
    %cst_40 = arith.constant dense<0.000000e+00> : vector<32x256xf32>
    %105 = tpu.matmul %104, %102, %cst_40 {dimension_numbers = #tpu.dot_dimension_numbers<[1], [0], [0], [1], [0, 0, 1, 1], [], []>} : vector<32x4xf32>, vector<4x256xf32>, vector<32x256xf32> -> vector<32x256xf32>
    %106 = arith.addf %97, %105 : vector<32x256xf32>
    %107 = vector.extract_strided_slice %6 {offsets = [0, 15], sizes = [4, 241], strides = [1, 1]} : vector<4x256xf32> to vector<4x241xf32>
    %108 = vector.extract_strided_slice %6 {offsets = [0, 0], sizes = [4, 15], strides = [1, 1]} : vector<4x256xf32> to vector<4x15xf32>
    %109 = tpu.concatenate %107, %108 in 1 : vector<4x241xf32>, vector<4x15xf32> -> vector<4x256xf32>
    %110 = vector.broadcast %57 : vector<1x256xf32> to vector<4x256xf32>
    %111 = arith.mulf %109, %110 : vector<4x256xf32>
    %c6 = arith.constant 6 : index
    %c0_41 = arith.constant 0 : index
    %c0_42 = arith.constant 0 : index
    %112 = vector.load %arg3[%c6, %c0_41, %c0_42] : memref<9x32x4xf32, #tpu.memory_space<vmem>>, vector<1x32x4xf32>
    %113 = vector.shape_cast %112 : vector<1x32x4xf32> to vector<32x4xf32>
    %cst_43 = arith.constant dense<0.000000e+00> : vector<32x256xf32>
    %114 = tpu.matmul %113, %111, %cst_43 {dimension_numbers = #tpu.dot_dimension_numbers<[1], [0], [0], [1], [0, 0, 1, 1], [], []>} : vector<32x4xf32>, vector<4x256xf32>, vector<32x256xf32> -> vector<32x256xf32>
    %115 = arith.addf %106, %114 : vector<32x256xf32>
    %116 = vector.extract_strided_slice %6 {offsets = [0, 16], sizes = [4, 240], strides = [1, 1]} : vector<4x256xf32> to vector<4x240xf32>
    %117 = vector.extract_strided_slice %6 {offsets = [0, 0], sizes = [4, 16], strides = [1, 1]} : vector<4x256xf32> to vector<4x16xf32>
    %118 = tpu.concatenate %116, %117 in 1 : vector<4x240xf32>, vector<4x16xf32> -> vector<4x256xf32>
    %119 = vector.broadcast %54 : vector<1x256xf32> to vector<4x256xf32>
    %120 = arith.mulf %118, %119 : vector<4x256xf32>
    %c7 = arith.constant 7 : index
    %c0_44 = arith.constant 0 : index
    %c0_45 = arith.constant 0 : index
    %121 = vector.load %arg3[%c7, %c0_44, %c0_45] : memref<9x32x4xf32, #tpu.memory_space<vmem>>, vector<1x32x4xf32>
    %122 = vector.shape_cast %121 : vector<1x32x4xf32> to vector<32x4xf32>
    %cst_46 = arith.constant dense<0.000000e+00> : vector<32x256xf32>
    %123 = tpu.matmul %122, %120, %cst_46 {dimension_numbers = #tpu.dot_dimension_numbers<[1], [0], [0], [1], [0, 0, 1, 1], [], []>} : vector<32x4xf32>, vector<4x256xf32>, vector<32x256xf32> -> vector<32x256xf32>
    %124 = arith.addf %115, %123 : vector<32x256xf32>
    %125 = vector.extract_strided_slice %6 {offsets = [0, 17], sizes = [4, 239], strides = [1, 1]} : vector<4x256xf32> to vector<4x239xf32>
    %126 = vector.extract_strided_slice %6 {offsets = [0, 0], sizes = [4, 17], strides = [1, 1]} : vector<4x256xf32> to vector<4x17xf32>
    %127 = tpu.concatenate %125, %126 in 1 : vector<4x239xf32>, vector<4x17xf32> -> vector<4x256xf32>
    %128 = vector.broadcast %58 : vector<1x256xf32> to vector<4x256xf32>
    %129 = arith.mulf %127, %128 : vector<4x256xf32>
    %c8 = arith.constant 8 : index
    %c0_47 = arith.constant 0 : index
    %c0_48 = arith.constant 0 : index
    %130 = vector.load %arg3[%c8, %c0_47, %c0_48] : memref<9x32x4xf32, #tpu.memory_space<vmem>>, vector<1x32x4xf32>
    %131 = vector.shape_cast %130 : vector<1x32x4xf32> to vector<32x4xf32>
    %cst_49 = arith.constant dense<0.000000e+00> : vector<32x256xf32>
    %132 = tpu.matmul %131, %129, %cst_49 {dimension_numbers = #tpu.dot_dimension_numbers<[1], [0], [0], [1], [0, 0, 1, 1], [], []>} : vector<32x4xf32>, vector<4x256xf32>, vector<32x256xf32> -> vector<32x256xf32>
    %133 = arith.addf %124, %132 : vector<32x256xf32>
    %c0_50 = arith.constant 0 : index
    %c0_51 = arith.constant 0 : index
    %134 = vector.load %arg4[%c0_50, %c0_51] : memref<32x1xf32, #tpu.memory_space<vmem>>, vector<32x1xf32>
    %135 = vector.broadcast %134 : vector<32x1xf32> to vector<32x256xf32>
    %136 = arith.addf %133, %135 : vector<32x256xf32>
    %cst_52 = arith.constant 0.000000e+00 : f32
    %137 = vector.broadcast %cst_52 : f32 to vector<32x256xf32>
    %138 = arith.cmpf ogt, %136, %137 : vector<32x256xf32>
    %cst_53 = arith.constant 0.00999999977 : f32
    %139 = vector.broadcast %cst_53 : f32 to vector<32x256xf32>
    %140 = arith.mulf %139, %136 : vector<32x256xf32>
    %141 = arith.select %138, %136, %140 : vector<32x256xi1>, vector<32x256xf32>
    %142 = vector.extract_strided_slice %141 {offsets = [0, 239], sizes = [32, 17], strides = [1, 1]} : vector<32x256xf32> to vector<32x17xf32>
    %143 = vector.extract_strided_slice %141 {offsets = [0, 0], sizes = [32, 239], strides = [1, 1]} : vector<32x256xf32> to vector<32x239xf32>
    %144 = tpu.concatenate %142, %143 in 1 : vector<32x17xf32>, vector<32x239xf32> -> vector<32x256xf32>
    %c0_54 = arith.constant 0 : index
    %c0_55 = arith.constant 0 : index
    %c0_56 = arith.constant 0 : index
    %145 = vector.load %arg5[%c0_54, %c0_55, %c0_56] : memref<9x16x32xf32, #tpu.memory_space<vmem>>, vector<1x16x32xf32>
    %146 = vector.shape_cast %145 : vector<1x16x32xf32> to vector<16x32xf32>
    %cst_57 = arith.constant dense<0.000000e+00> : vector<16x256xf32>
    %147 = tpu.matmul %146, %144, %cst_57 {dimension_numbers = #tpu.dot_dimension_numbers<[1], [0], [0], [1], [0, 0, 1, 1], [], []>} : vector<16x32xf32>, vector<32x256xf32>, vector<16x256xf32> -> vector<16x256xf32>
    %148 = vector.broadcast %55 : vector<1x256xf32> to vector<16x256xf32>
    %149 = arith.mulf %147, %148 : vector<16x256xf32>
    %150 = vector.extract_strided_slice %141 {offsets = [0, 240], sizes = [32, 16], strides = [1, 1]} : vector<32x256xf32> to vector<32x16xf32>
    %151 = vector.extract_strided_slice %141 {offsets = [0, 0], sizes = [32, 240], strides = [1, 1]} : vector<32x256xf32> to vector<32x240xf32>
    %152 = tpu.concatenate %150, %151 in 1 : vector<32x16xf32>, vector<32x240xf32> -> vector<32x256xf32>
    %c1_58 = arith.constant 1 : index
    %c0_59 = arith.constant 0 : index
    %c0_60 = arith.constant 0 : index
    %153 = vector.load %arg5[%c1_58, %c0_59, %c0_60] : memref<9x16x32xf32, #tpu.memory_space<vmem>>, vector<1x16x32xf32>
    %154 = vector.shape_cast %153 : vector<1x16x32xf32> to vector<16x32xf32>
    %cst_61 = arith.constant dense<0.000000e+00> : vector<16x256xf32>
    %155 = tpu.matmul %154, %152, %cst_61 {dimension_numbers = #tpu.dot_dimension_numbers<[1], [0], [0], [1], [0, 0, 1, 1], [], []>} : vector<16x32xf32>, vector<32x256xf32>, vector<16x256xf32> -> vector<16x256xf32>
    %156 = vector.broadcast %42 : vector<1x256xf32> to vector<16x256xf32>
    %157 = arith.mulf %155, %156 : vector<16x256xf32>
    %158 = arith.addf %149, %157 : vector<16x256xf32>
    %159 = vector.extract_strided_slice %141 {offsets = [0, 241], sizes = [32, 15], strides = [1, 1]} : vector<32x256xf32> to vector<32x15xf32>
    %160 = vector.extract_strided_slice %141 {offsets = [0, 0], sizes = [32, 241], strides = [1, 1]} : vector<32x256xf32> to vector<32x241xf32>
    %161 = tpu.concatenate %159, %160 in 1 : vector<32x15xf32>, vector<32x241xf32> -> vector<32x256xf32>
    %c2_62 = arith.constant 2 : index
    %c0_63 = arith.constant 0 : index
    %c0_64 = arith.constant 0 : index
    %162 = vector.load %arg5[%c2_62, %c0_63, %c0_64] : memref<9x16x32xf32, #tpu.memory_space<vmem>>, vector<1x16x32xf32>
    %163 = vector.shape_cast %162 : vector<1x16x32xf32> to vector<16x32xf32>
    %cst_65 = arith.constant dense<0.000000e+00> : vector<16x256xf32>
    %164 = tpu.matmul %163, %161, %cst_65 {dimension_numbers = #tpu.dot_dimension_numbers<[1], [0], [0], [1], [0, 0, 1, 1], [], []>} : vector<16x32xf32>, vector<32x256xf32>, vector<16x256xf32> -> vector<16x256xf32>
    %165 = vector.broadcast %56 : vector<1x256xf32> to vector<16x256xf32>
    %166 = arith.mulf %164, %165 : vector<16x256xf32>
    %167 = arith.addf %158, %166 : vector<16x256xf32>
    %168 = vector.extract_strided_slice %141 {offsets = [0, 255], sizes = [32, 1], strides = [1, 1]} : vector<32x256xf32> to vector<32x1xf32>
    %169 = vector.extract_strided_slice %141 {offsets = [0, 0], sizes = [32, 255], strides = [1, 1]} : vector<32x256xf32> to vector<32x255xf32>
    %170 = tpu.concatenate %168, %169 in 1 : vector<32x1xf32>, vector<32x255xf32> -> vector<32x256xf32>
    %c3_66 = arith.constant 3 : index
    %c0_67 = arith.constant 0 : index
    %c0_68 = arith.constant 0 : index
    %171 = vector.load %arg5[%c3_66, %c0_67, %c0_68] : memref<9x16x32xf32, #tpu.memory_space<vmem>>, vector<1x16x32xf32>
    %172 = vector.shape_cast %171 : vector<1x16x32xf32> to vector<16x32xf32>
    %cst_69 = arith.constant dense<0.000000e+00> : vector<16x256xf32>
    %173 = tpu.matmul %172, %170, %cst_69 {dimension_numbers = #tpu.dot_dimension_numbers<[1], [0], [0], [1], [0, 0, 1, 1], [], []>} : vector<16x32xf32>, vector<32x256xf32>, vector<16x256xf32> -> vector<16x256xf32>
    %174 = vector.broadcast %18 : vector<1x256xf32> to vector<16x256xf32>
    %175 = arith.mulf %173, %174 : vector<16x256xf32>
    %176 = arith.addf %167, %175 : vector<16x256xf32>
    %c4_70 = arith.constant 4 : index
    %c0_71 = arith.constant 0 : index
    %c0_72 = arith.constant 0 : index
    %177 = vector.load %arg5[%c4_70, %c0_71, %c0_72] : memref<9x16x32xf32, #tpu.memory_space<vmem>>, vector<1x16x32xf32>
    %178 = vector.shape_cast %177 : vector<1x16x32xf32> to vector<16x32xf32>
    %cst_73 = arith.constant dense<0.000000e+00> : vector<16x256xf32>
    %179 = tpu.matmul %178, %141, %cst_73 {dimension_numbers = #tpu.dot_dimension_numbers<[1], [0], [0], [1], [0, 0, 1, 1], [], []>} : vector<16x32xf32>, vector<32x256xf32>, vector<16x256xf32> -> vector<16x256xf32>
    %180 = arith.addf %176, %179 : vector<16x256xf32>
    %181 = vector.extract_strided_slice %141 {offsets = [0, 1], sizes = [32, 255], strides = [1, 1]} : vector<32x256xf32> to vector<32x255xf32>
    %182 = vector.extract_strided_slice %141 {offsets = [0, 0], sizes = [32, 1], strides = [1, 1]} : vector<32x256xf32> to vector<32x1xf32>
    %183 = tpu.concatenate %181, %182 in 1 : vector<32x255xf32>, vector<32x1xf32> -> vector<32x256xf32>
    %c5_74 = arith.constant 5 : index
    %c0_75 = arith.constant 0 : index
    %c0_76 = arith.constant 0 : index
    %184 = vector.load %arg5[%c5_74, %c0_75, %c0_76] : memref<9x16x32xf32, #tpu.memory_space<vmem>>, vector<1x16x32xf32>
    %185 = vector.shape_cast %184 : vector<1x16x32xf32> to vector<16x32xf32>
    %cst_77 = arith.constant dense<0.000000e+00> : vector<16x256xf32>
    %186 = tpu.matmul %185, %183, %cst_77 {dimension_numbers = #tpu.dot_dimension_numbers<[1], [0], [0], [1], [0, 0, 1, 1], [], []>} : vector<16x32xf32>, vector<32x256xf32>, vector<16x256xf32> -> vector<16x256xf32>
    %187 = vector.broadcast %30 : vector<1x256xf32> to vector<16x256xf32>
    %188 = arith.mulf %186, %187 : vector<16x256xf32>
    %189 = arith.addf %180, %188 : vector<16x256xf32>
    %190 = vector.extract_strided_slice %141 {offsets = [0, 15], sizes = [32, 241], strides = [1, 1]} : vector<32x256xf32> to vector<32x241xf32>
    %191 = vector.extract_strided_slice %141 {offsets = [0, 0], sizes = [32, 15], strides = [1, 1]} : vector<32x256xf32> to vector<32x15xf32>
    %192 = tpu.concatenate %190, %191 in 1 : vector<32x241xf32>, vector<32x15xf32> -> vector<32x256xf32>
    %c6_78 = arith.constant 6 : index
    %c0_79 = arith.constant 0 : index
    %c0_80 = arith.constant 0 : index
    %193 = vector.load %arg5[%c6_78, %c0_79, %c0_80] : memref<9x16x32xf32, #tpu.memory_space<vmem>>, vector<1x16x32xf32>
    %194 = vector.shape_cast %193 : vector<1x16x32xf32> to vector<16x32xf32>
    %cst_81 = arith.constant dense<0.000000e+00> : vector<16x256xf32>
    %195 = tpu.matmul %194, %192, %cst_81 {dimension_numbers = #tpu.dot_dimension_numbers<[1], [0], [0], [1], [0, 0, 1, 1], [], []>} : vector<16x32xf32>, vector<32x256xf32>, vector<16x256xf32> -> vector<16x256xf32>
    %196 = vector.broadcast %57 : vector<1x256xf32> to vector<16x256xf32>
    %197 = arith.mulf %195, %196 : vector<16x256xf32>
    %198 = arith.addf %189, %197 : vector<16x256xf32>
    %199 = vector.extract_strided_slice %141 {offsets = [0, 16], sizes = [32, 240], strides = [1, 1]} : vector<32x256xf32> to vector<32x240xf32>
    %200 = vector.extract_strided_slice %141 {offsets = [0, 0], sizes = [32, 16], strides = [1, 1]} : vector<32x256xf32> to vector<32x16xf32>
    %201 = tpu.concatenate %199, %200 in 1 : vector<32x240xf32>, vector<32x16xf32> -> vector<32x256xf32>
    %c7_82 = arith.constant 7 : index
    %c0_83 = arith.constant 0 : index
    %c0_84 = arith.constant 0 : index
    %202 = vector.load %arg5[%c7_82, %c0_83, %c0_84] : memref<9x16x32xf32, #tpu.memory_space<vmem>>, vector<1x16x32xf32>
    %203 = vector.shape_cast %202 : vector<1x16x32xf32> to vector<16x32xf32>
    %cst_85 = arith.constant dense<0.000000e+00> : vector<16x256xf32>
    %204 = tpu.matmul %203, %201, %cst_85 {dimension_numbers = #tpu.dot_dimension_numbers<[1], [0], [0], [1], [0, 0, 1, 1], [], []>} : vector<16x32xf32>, vector<32x256xf32>, vector<16x256xf32> -> vector<16x256xf32>
    %205 = vector.broadcast %54 : vector<1x256xf32> to vector<16x256xf32>
    %206 = arith.mulf %204, %205 : vector<16x256xf32>
    %207 = arith.addf %198, %206 : vector<16x256xf32>
    %208 = vector.extract_strided_slice %141 {offsets = [0, 17], sizes = [32, 239], strides = [1, 1]} : vector<32x256xf32> to vector<32x239xf32>
    %209 = vector.extract_strided_slice %141 {offsets = [0, 0], sizes = [32, 17], strides = [1, 1]} : vector<32x256xf32> to vector<32x17xf32>
    %210 = tpu.concatenate %208, %209 in 1 : vector<32x239xf32>, vector<32x17xf32> -> vector<32x256xf32>
    %c8_86 = arith.constant 8 : index
    %c0_87 = arith.constant 0 : index
    %c0_88 = arith.constant 0 : index
    %211 = vector.load %arg5[%c8_86, %c0_87, %c0_88] : memref<9x16x32xf32, #tpu.memory_space<vmem>>, vector<1x16x32xf32>
    %212 = vector.shape_cast %211 : vector<1x16x32xf32> to vector<16x32xf32>
    %cst_89 = arith.constant dense<0.000000e+00> : vector<16x256xf32>
    %213 = tpu.matmul %212, %210, %cst_89 {dimension_numbers = #tpu.dot_dimension_numbers<[1], [0], [0], [1], [0, 0, 1, 1], [], []>} : vector<16x32xf32>, vector<32x256xf32>, vector<16x256xf32> -> vector<16x256xf32>
    %214 = vector.broadcast %58 : vector<1x256xf32> to vector<16x256xf32>
    %215 = arith.mulf %213, %214 : vector<16x256xf32>
    %216 = arith.addf %207, %215 : vector<16x256xf32>
    %c0_90 = arith.constant 0 : index
    %c0_91 = arith.constant 0 : index
    %217 = vector.load %arg6[%c0_90, %c0_91] : memref<16x1xf32, #tpu.memory_space<vmem>>, vector<16x1xf32>
    %218 = vector.broadcast %217 : vector<16x1xf32> to vector<16x256xf32>
    %219 = arith.addf %216, %218 : vector<16x256xf32>
    %cst_92 = arith.constant 0.000000e+00 : f32
    %220 = vector.broadcast %cst_92 : f32 to vector<16x256xf32>
    %221 = arith.cmpf ogt, %219, %220 : vector<16x256xf32>
    %cst_93 = arith.constant 0.00999999977 : f32
    %222 = vector.broadcast %cst_93 : f32 to vector<16x256xf32>
    %223 = arith.mulf %222, %219 : vector<16x256xf32>
    %224 = arith.select %221, %219, %223 : vector<16x256xi1>, vector<16x256xf32>
    %c0_94 = arith.constant 0 : index
    %c0_95 = arith.constant 0 : index
    %225 = vector.load %arg7[%c0_94, %c0_95] : memref<1x16xf32, #tpu.memory_space<vmem>>, vector<1x16xf32>
    %cst_96 = arith.constant dense<0.000000e+00> : vector<1x256xf32>
    %226 = tpu.matmul %225, %224, %cst_96 {dimension_numbers = #tpu.dot_dimension_numbers<[1], [0], [0], [1], [0, 0, 1, 1], [], []>} : vector<1x16xf32>, vector<16x256xf32>, vector<1x256xf32> -> vector<1x256xf32>
    %c0_97 = arith.constant 0 : index
    %c0_98 = arith.constant 0 : index
    %227 = vector.load %arg8[%c0_97, %c0_98] : memref<1x1xf32, #tpu.memory_space<vmem>>, vector<1x1xf32>
    %228 = vector.broadcast %227 : vector<1x1xf32> to vector<1x256xf32>
    %229 = arith.addf %226, %228 : vector<1x256xf32>
    %230 = arith.negf %229 : vector<1x256xf32>
    %231 = math.exp %230 : vector<1x256xf32>
    %cst_99 = arith.constant 1.000000e+00 : f32
    %232 = vector.broadcast %cst_99 : f32 to vector<1x256xf32>
    %233 = arith.addf %232, %231 : vector<1x256xf32>
    %234 = arith.divf %232, %233 : vector<1x256xf32>
    %235 = vector.broadcast %234 : vector<1x256xf32> to vector<3x256xf32>
    %236 = arith.mulf %3, %235 : vector<3x256xf32>
    %c0_100 = arith.constant 0 : index
    %c0_101 = arith.constant 0 : index
    %c0_102 = arith.constant 0 : index
    %237 = vector.load %arg9[%c0_100, %c0_101, %c0_102] : memref<1x3x256xf32, #tpu.memory_space<vmem>>, vector<1x3x256xf32>
    %238 = vector.shape_cast %237 : vector<1x3x256xf32> to vector<3x256xf32>
    %239 = vector.shape_cast %236 : vector<3x256xf32> to vector<1x3x256xf32>
    tpu.vector_store %arg9[%c0_100, %c0_101, %c0_102], %239 {strides = array<i32>} : memref<1x3x256xf32, #tpu.memory_space<vmem>>, vector<1x3x256xf32>,
    %240 = vector.extract_strided_slice %236 {offsets = [0, 0], sizes = [1, 256], strides = [1, 1]} : vector<3x256xf32> to vector<1x256xf32>
    %cst_103 = arith.constant 2.990000e-01 : f32
    %241 = vector.broadcast %cst_103 : f32 to vector<1x256xf32>
    %242 = arith.mulf %241, %240 : vector<1x256xf32>
    %243 = vector.extract_strided_slice %236 {offsets = [1, 0], sizes = [1, 256], strides = [1, 1]} : vector<3x256xf32> to vector<1x256xf32>
    %cst_104 = arith.constant 5.870000e-01 : f32
    %244 = vector.broadcast %cst_104 : f32 to vector<1x256xf32>
    %245 = arith.mulf %244, %243 : vector<1x256xf32>
    %246 = arith.addf %242, %245 : vector<1x256xf32>
    %247 = vector.extract_strided_slice %236 {offsets = [2, 0], sizes = [1, 256], strides = [1, 1]} : vector<3x256xf32> to vector<1x256xf32>
    %cst_105 = arith.constant 1.140000e-01 : f32
    %248 = vector.broadcast %cst_105 : f32 to vector<1x256xf32>
    %249 = arith.mulf %248, %247 : vector<1x256xf32>
    %250 = arith.addf %246, %249 : vector<1x256xf32>
    %c-2_i32 = arith.constant -2 : i32
    %251 = vector.broadcast %c-2_i32 : i32 to vector<1x256xi32>
    %252 = arith.addi %0, %251 : vector<1x256xi32>
    %c0_i32_106 = arith.constant 0 : i32
    %253 = vector.broadcast %c0_i32_106 : i32 to vector<1x256xi32>
    %254 = arith.cmpi sge, %252, %253 : vector<1x256xi32>
    %c16_i32_107 = arith.constant 16 : i32
    %255 = vector.broadcast %c16_i32_107 : i32 to vector<1x256xi32>
    %256 = arith.cmpi slt, %252, %255 : vector<1x256xi32>
    %257 = arith.andi %254, %256 : vector<1x256xi1>
    %cst_108 = arith.constant 1.000000e+00 : f32
    %cst_109 = arith.constant 0.000000e+00 : f32
    %258 = vector.broadcast %cst_108 : f32 to vector<1x256xf32>
    %259 = vector.broadcast %cst_109 : f32 to vector<1x256xf32>
    %260 = arith.select %257, %258, %259 : vector<1x256xi1>, vector<1x256xf32>
    %c15_i32 = arith.constant 15 : i32
    %261 = vector.broadcast %c15_i32 : i32 to vector<1x256xi32>
    %262 = arith.cmpi sge, %0, %261 : vector<1x256xi32>
    %cst_110 = arith.constant 1.000000e+00 : f32
    %cst_111 = arith.constant 0.000000e+00 : f32
    %263 = vector.broadcast %cst_110 : f32 to vector<1x256xf32>
    %264 = vector.broadcast %cst_111 : f32 to vector<1x256xf32>
    %265 = arith.select %262, %263, %264 : vector<1x256xi1>, vector<1x256xf32>
    %266 = arith.addf %260, %265 : vector<1x256xf32>
    %cst_112 = arith.constant 1.000000e+00 : f32
    %267 = vector.broadcast %cst_112 : f32 to vector<1x256xf32>
    %268 = arith.mulf %266, %267 : vector<1x256xf32>
    %269 = vector.extract_strided_slice %250 {offsets = [0, 254], sizes = [1, 2], strides = [1, 1]} : vector<1x256xf32> to vector<1x2xf32>
    %270 = vector.extract_strided_slice %250 {offsets = [0, 0], sizes = [1, 254], strides = [1, 1]} : vector<1x256xf32> to vector<1x254xf32>
    %271 = tpu.concatenate %269, %270 in 1 : vector<1x2xf32>, vector<1x254xf32> -> vector<1x256xf32>
    %272 = arith.mulf %268, %271 : vector<1x256xf32>
    %c-1_i32_113 = arith.constant -1 : i32
    %273 = vector.broadcast %c-1_i32_113 : i32 to vector<1x256xi32>
    %274 = arith.addi %0, %273 : vector<1x256xi32>
    %c0_i32_114 = arith.constant 0 : i32
    %275 = vector.broadcast %c0_i32_114 : i32 to vector<1x256xi32>
    %276 = arith.cmpi sge, %274, %275 : vector<1x256xi32>
    %c16_i32_115 = arith.constant 16 : i32
    %277 = vector.broadcast %c16_i32_115 : i32 to vector<1x256xi32>
    %278 = arith.cmpi slt, %274, %277 : vector<1x256xi32>
    %279 = arith.andi %276, %278 : vector<1x256xi1>
    %cst_116 = arith.constant 1.000000e+00 : f32
    %cst_117 = arith.constant 0.000000e+00 : f32
    %280 = vector.broadcast %cst_116 : f32 to vector<1x256xf32>
    %281 = vector.broadcast %cst_117 : f32 to vector<1x256xf32>
    %282 = arith.select %279, %280, %281 : vector<1x256xi1>, vector<1x256xf32>
    %c15_i32_118 = arith.constant 15 : i32
    %283 = vector.broadcast %c15_i32_118 : i32 to vector<1x256xi32>
    %284 = arith.cmpi sge, %0, %283 : vector<1x256xi32>
    %cst_119 = arith.constant 1.000000e+00 : f32
    %cst_120 = arith.constant 0.000000e+00 : f32
    %285 = vector.broadcast %cst_119 : f32 to vector<1x256xf32>
    %286 = vector.broadcast %cst_120 : f32 to vector<1x256xf32>
    %287 = arith.select %284, %285, %286 : vector<1x256xi1>, vector<1x256xf32>
    %288 = arith.addf %282, %287 : vector<1x256xf32>
    %cst_121 = arith.constant 1.000000e+00 : f32
    %289 = vector.broadcast %cst_121 : f32 to vector<1x256xf32>
    %290 = arith.mulf %288, %289 : vector<1x256xf32>
    %291 = vector.extract_strided_slice %250 {offsets = [0, 255], sizes = [1, 1], strides = [1, 1]} : vector<1x256xf32> to vector<1x1xf32>
    %292 = vector.extract_strided_slice %250 {offsets = [0, 0], sizes = [1, 255], strides = [1, 1]} : vector<1x256xf32> to vector<1x255xf32>
    %293 = tpu.concatenate %291, %292 in 1 : vector<1x1xf32>, vector<1x255xf32> -> vector<1x256xf32>
    %294 = arith.mulf %290, %293 : vector<1x256xf32>
    %295 = arith.addf %272, %294 : vector<1x256xf32>
    %c0_i32_122 = arith.constant 0 : i32
    %296 = vector.broadcast %c0_i32_122 : i32 to vector<1x256xi32>
    %297 = arith.addi %0, %296 : vector<1x256xi32>
    %c0_i32_123 = arith.constant 0 : i32
    %298 = vector.broadcast %c0_i32_123 : i32 to vector<1x256xi32>
    %299 = arith.cmpi sge, %297, %298 : vector<1x256xi32>
    %c16_i32_124 = arith.constant 16 : i32
    %300 = vector.broadcast %c16_i32_124 : i32 to vector<1x256xi32>
    %301 = arith.cmpi slt, %297, %300 : vector<1x256xi32>
    %302 = arith.andi %299, %301 : vector<1x256xi1>
    %cst_125 = arith.constant 1.000000e+00 : f32
    %cst_126 = arith.constant 0.000000e+00 : f32
    %303 = vector.broadcast %cst_125 : f32 to vector<1x256xf32>
    %304 = vector.broadcast %cst_126 : f32 to vector<1x256xf32>
    %305 = arith.select %302, %303, %304 : vector<1x256xi1>, vector<1x256xf32>
    %c1_i32_127 = arith.constant 1 : i32
    %306 = vector.broadcast %c1_i32_127 : i32 to vector<1x256xi32>
    %307 = arith.cmpi sge, %0, %306 : vector<1x256xi32>
    %c2_i32 = arith.constant 2 : i32
    %308 = vector.broadcast %c2_i32 : i32 to vector<1x256xi32>
    %309 = arith.cmpi slt, %0, %308 : vector<1x256xi32>
    %310 = arith.andi %307, %309 : vector<1x256xi1>
    %c14_i32 = arith.constant 14 : i32
    %311 = vector.broadcast %c14_i32 : i32 to vector<1x256xi32>
    %312 = arith.cmpi sge, %0, %311 : vector<1x256xi32>
    %c15_i32_128 = arith.constant 15 : i32
    %313 = vector.broadcast %c15_i32_128 : i32 to vector<1x256xi32>
    %314 = arith.cmpi slt, %0, %313 : vector<1x256xi32>
    %315 = arith.andi %312, %314 : vector<1x256xi1>
    %316 = arith.ori %310, %315 : vector<1x256xi1>
    %cst_129 = arith.constant 1.000000e+00 : f32
    %cst_130 = arith.constant 0.000000e+00 : f32
    %317 = vector.broadcast %cst_129 : f32 to vector<1x256xf32>
    %318 = vector.broadcast %cst_130 : f32 to vector<1x256xf32>
    %319 = arith.select %316, %317, %318 : vector<1x256xi1>, vector<1x256xf32>
    %320 = arith.addf %305, %319 : vector<1x256xf32>
    %cst_131 = arith.constant 1.000000e+00 : f32
    %321 = vector.broadcast %cst_131 : f32 to vector<1x256xf32>
    %322 = arith.mulf %320, %321 : vector<1x256xf32>
    %323 = arith.mulf %322, %250 : vector<1x256xf32>
    %324 = arith.addf %295, %323 : vector<1x256xf32>
    %c1_i32_132 = arith.constant 1 : i32
    %325 = vector.broadcast %c1_i32_132 : i32 to vector<1x256xi32>
    %326 = arith.addi %0, %325 : vector<1x256xi32>
    %c0_i32_133 = arith.constant 0 : i32
    %327 = vector.broadcast %c0_i32_133 : i32 to vector<1x256xi32>
    %328 = arith.cmpi sge, %326, %327 : vector<1x256xi32>
    %c16_i32_134 = arith.constant 16 : i32
    %329 = vector.broadcast %c16_i32_134 : i32 to vector<1x256xi32>
    %330 = arith.cmpi slt, %326, %329 : vector<1x256xi32>
    %331 = arith.andi %328, %330 : vector<1x256xi1>
    %cst_135 = arith.constant 1.000000e+00 : f32
    %cst_136 = arith.constant 0.000000e+00 : f32
    %332 = vector.broadcast %cst_135 : f32 to vector<1x256xf32>
    %333 = vector.broadcast %cst_136 : f32 to vector<1x256xf32>
    %334 = arith.select %331, %332, %333 : vector<1x256xi1>, vector<1x256xf32>
    %c1_i32_137 = arith.constant 1 : i32
    %335 = vector.broadcast %c1_i32_137 : i32 to vector<1x256xi32>
    %336 = arith.cmpi slt, %0, %335 : vector<1x256xi32>
    %cst_138 = arith.constant 1.000000e+00 : f32
    %cst_139 = arith.constant 0.000000e+00 : f32
    %337 = vector.broadcast %cst_138 : f32 to vector<1x256xf32>
    %338 = vector.broadcast %cst_139 : f32 to vector<1x256xf32>
    %339 = arith.select %336, %337, %338 : vector<1x256xi1>, vector<1x256xf32>
    %340 = arith.addf %334, %339 : vector<1x256xf32>
    %cst_140 = arith.constant 1.000000e+00 : f32
    %341 = vector.broadcast %cst_140 : f32 to vector<1x256xf32>
    %342 = arith.mulf %340, %341 : vector<1x256xf32>
    %343 = vector.extract_strided_slice %250 {offsets = [0, 1], sizes = [1, 255], strides = [1, 1]} : vector<1x256xf32> to vector<1x255xf32>
    %344 = vector.extract_strided_slice %250 {offsets = [0, 0], sizes = [1, 1], strides = [1, 1]} : vector<1x256xf32> to vector<1x1xf32>
    %345 = tpu.concatenate %343, %344 in 1 : vector<1x255xf32>, vector<1x1xf32> -> vector<1x256xf32>
    %346 = arith.mulf %342, %345 : vector<1x256xf32>
    %347 = arith.addf %324, %346 : vector<1x256xf32>
    %c2_i32_141 = arith.constant 2 : i32
    %348 = vector.broadcast %c2_i32_141 : i32 to vector<1x256xi32>
    %349 = arith.addi %0, %348 : vector<1x256xi32>
    %c0_i32_142 = arith.constant 0 : i32
    %350 = vector.broadcast %c0_i32_142 : i32 to vector<1x256xi32>
    %351 = arith.cmpi sge, %349, %350 : vector<1x256xi32>
    %c16_i32_143 = arith.constant 16 : i32
    %352 = vector.broadcast %c16_i32_143 : i32 to vector<1x256xi32>
    %353 = arith.cmpi slt, %349, %352 : vector<1x256xi32>
    %354 = arith.andi %351, %353 : vector<1x256xi1>
    %cst_144 = arith.constant 1.000000e+00 : f32
    %cst_145 = arith.constant 0.000000e+00 : f32
    %355 = vector.broadcast %cst_144 : f32 to vector<1x256xf32>
    %356 = vector.broadcast %cst_145 : f32 to vector<1x256xf32>
    %357 = arith.select %354, %355, %356 : vector<1x256xi1>, vector<1x256xf32>
    %c1_i32_146 = arith.constant 1 : i32
    %358 = vector.broadcast %c1_i32_146 : i32 to vector<1x256xi32>
    %359 = arith.cmpi slt, %0, %358 : vector<1x256xi32>
    %cst_147 = arith.constant 1.000000e+00 : f32
    %cst_148 = arith.constant 0.000000e+00 : f32
    %360 = vector.broadcast %cst_147 : f32 to vector<1x256xf32>
    %361 = vector.broadcast %cst_148 : f32 to vector<1x256xf32>
    %362 = arith.select %359, %360, %361 : vector<1x256xi1>, vector<1x256xf32>
    %363 = arith.addf %357, %362 : vector<1x256xf32>
    %cst_149 = arith.constant 1.000000e+00 : f32
    %364 = vector.broadcast %cst_149 : f32 to vector<1x256xf32>
    %365 = arith.mulf %363, %364 : vector<1x256xf32>
    %366 = vector.extract_strided_slice %250 {offsets = [0, 2], sizes = [1, 254], strides = [1, 1]} : vector<1x256xf32> to vector<1x254xf32>
    %367 = vector.extract_strided_slice %250 {offsets = [0, 0], sizes = [1, 2], strides = [1, 1]} : vector<1x256xf32> to vector<1x2xf32>
    %368 = tpu.concatenate %366, %367 in 1 : vector<1x254xf32>, vector<1x2xf32> -> vector<1x256xf32>
    %369 = arith.mulf %365, %368 : vector<1x256xf32>
    %370 = arith.addf %347, %369 : vector<1x256xf32>
    %c-32_i32 = arith.constant -32 : i32
    %371 = vector.broadcast %c-32_i32 : i32 to vector<1x256xi32>
    %372 = arith.addi %1, %371 : vector<1x256xi32>
    %c0_i32_150 = arith.constant 0 : i32
    %373 = vector.broadcast %c0_i32_150 : i32 to vector<1x256xi32>
    %374 = arith.cmpi sge, %372, %373 : vector<1x256xi32>
    %c256_i32_151 = arith.constant 256 : i32
    %375 = vector.broadcast %c256_i32_151 : i32 to vector<1x256xi32>
    %376 = arith.cmpi slt, %372, %375 : vector<1x256xi32>
    %377 = arith.andi %374, %376 : vector<1x256xi1>
    %cst_152 = arith.constant 1.000000e+00 : f32
    %cst_153 = arith.constant 0.000000e+00 : f32
    %378 = vector.broadcast %cst_152 : f32 to vector<1x256xf32>
    %379 = vector.broadcast %cst_153 : f32 to vector<1x256xf32>
    %380 = arith.select %377, %378, %379 : vector<1x256xi1>, vector<1x256xf32>
    %c240_i32 = arith.constant 240 : i32
    %381 = vector.broadcast %c240_i32 : i32 to vector<1x256xi32>
    %382 = arith.cmpi sge, %1, %381 : vector<1x256xi32>
    %cst_154 = arith.constant 1.000000e+00 : f32
    %cst_155 = arith.constant 0.000000e+00 : f32
    %383 = vector.broadcast %cst_154 : f32 to vector<1x256xf32>
    %384 = vector.broadcast %cst_155 : f32 to vector<1x256xf32>
    %385 = arith.select %382, %383, %384 : vector<1x256xi1>, vector<1x256xf32>
    %386 = arith.addf %380, %385 : vector<1x256xf32>
    %cst_156 = arith.constant 4.000000e-02 : f32
    %387 = vector.broadcast %cst_156 : f32 to vector<1x256xf32>
    %388 = arith.mulf %386, %387 : vector<1x256xf32>
    %389 = vector.extract_strided_slice %370 {offsets = [0, 224], sizes = [1, 32], strides = [1, 1]} : vector<1x256xf32> to vector<1x32xf32>
    %390 = vector.extract_strided_slice %370 {offsets = [0, 0], sizes = [1, 224], strides = [1, 1]} : vector<1x256xf32> to vector<1x224xf32>
    %391 = tpu.concatenate %389, %390 in 1 : vector<1x32xf32>, vector<1x224xf32> -> vector<1x256xf32>
    %392 = arith.mulf %388, %391 : vector<1x256xf32>
    %c-16_i32_157 = arith.constant -16 : i32
    %393 = vector.broadcast %c-16_i32_157 : i32 to vector<1x256xi32>
    %394 = arith.addi %1, %393 : vector<1x256xi32>
    %c0_i32_158 = arith.constant 0 : i32
    %395 = vector.broadcast %c0_i32_158 : i32 to vector<1x256xi32>
    %396 = arith.cmpi sge, %394, %395 : vector<1x256xi32>
    %c256_i32_159 = arith.constant 256 : i32
    %397 = vector.broadcast %c256_i32_159 : i32 to vector<1x256xi32>
    %398 = arith.cmpi slt, %394, %397 : vector<1x256xi32>
    %399 = arith.andi %396, %398 : vector<1x256xi1>
    %cst_160 = arith.constant 1.000000e+00 : f32
    %cst_161 = arith.constant 0.000000e+00 : f32
    %400 = vector.broadcast %cst_160 : f32 to vector<1x256xf32>
    %401 = vector.broadcast %cst_161 : f32 to vector<1x256xf32>
    %402 = arith.select %399, %400, %401 : vector<1x256xi1>, vector<1x256xf32>
    %c240_i32_162 = arith.constant 240 : i32
    %403 = vector.broadcast %c240_i32_162 : i32 to vector<1x256xi32>
    %404 = arith.cmpi sge, %1, %403 : vector<1x256xi32>
    %cst_163 = arith.constant 1.000000e+00 : f32
    %cst_164 = arith.constant 0.000000e+00 : f32
    %405 = vector.broadcast %cst_163 : f32 to vector<1x256xf32>
    %406 = vector.broadcast %cst_164 : f32 to vector<1x256xf32>
    %407 = arith.select %404, %405, %406 : vector<1x256xi1>, vector<1x256xf32>
    %408 = arith.addf %402, %407 : vector<1x256xf32>
    %cst_165 = arith.constant 4.000000e-02 : f32
    %409 = vector.broadcast %cst_165 : f32 to vector<1x256xf32>
    %410 = arith.mulf %408, %409 : vector<1x256xf32>
    %411 = vector.extract_strided_slice %370 {offsets = [0, 240], sizes = [1, 16], strides = [1, 1]} : vector<1x256xf32> to vector<1x16xf32>
    %412 = vector.extract_strided_slice %370 {offsets = [0, 0], sizes = [1, 240], strides = [1, 1]} : vector<1x256xf32> to vector<1x240xf32>
    %413 = tpu.concatenate %411, %412 in 1 : vector<1x16xf32>, vector<1x240xf32> -> vector<1x256xf32>
    %414 = arith.mulf %410, %413 : vector<1x256xf32>
    %415 = arith.addf %392, %414 : vector<1x256xf32>
    %c0_i32_166 = arith.constant 0 : i32
    %416 = vector.broadcast %c0_i32_166 : i32 to vector<1x256xi32>
    %417 = arith.addi %1, %416 : vector<1x256xi32>
    %c0_i32_167 = arith.constant 0 : i32
    %418 = vector.broadcast %c0_i32_167 : i32 to vector<1x256xi32>
    %419 = arith.cmpi sge, %417, %418 : vector<1x256xi32>
    %c256_i32_168 = arith.constant 256 : i32
    %420 = vector.broadcast %c256_i32_168 : i32 to vector<1x256xi32>
    %421 = arith.cmpi slt, %417, %420 : vector<1x256xi32>
    %422 = arith.andi %419, %421 : vector<1x256xi1>
    %cst_169 = arith.constant 1.000000e+00 : f32
    %cst_170 = arith.constant 0.000000e+00 : f32
    %423 = vector.broadcast %cst_169 : f32 to vector<1x256xf32>
    %424 = vector.broadcast %cst_170 : f32 to vector<1x256xf32>
    %425 = arith.select %422, %423, %424 : vector<1x256xi1>, vector<1x256xf32>
    %c16_i32_171 = arith.constant 16 : i32
    %426 = vector.broadcast %c16_i32_171 : i32 to vector<1x256xi32>
    %427 = arith.cmpi sge, %1, %426 : vector<1x256xi32>
    %c32_i32 = arith.constant 32 : i32
    %428 = vector.broadcast %c32_i32 : i32 to vector<1x256xi32>
    %429 = arith.cmpi slt, %1, %428 : vector<1x256xi32>
    %430 = arith.andi %427, %429 : vector<1x256xi1>
    %c224_i32 = arith.constant 224 : i32
    %431 = vector.broadcast %c224_i32 : i32 to vector<1x256xi32>
    %432 = arith.cmpi sge, %1, %431 : vector<1x256xi32>
    %c240_i32_172 = arith.constant 240 : i32
    %433 = vector.broadcast %c240_i32_172 : i32 to vector<1x256xi32>
    %434 = arith.cmpi slt, %1, %433 : vector<1x256xi32>
    %435 = arith.andi %432, %434 : vector<1x256xi1>
    %436 = arith.ori %430, %435 : vector<1x256xi1>
    %cst_173 = arith.constant 1.000000e+00 : f32
    %cst_174 = arith.constant 0.000000e+00 : f32
    %437 = vector.broadcast %cst_173 : f32 to vector<1x256xf32>
    %438 = vector.broadcast %cst_174 : f32 to vector<1x256xf32>
    %439 = arith.select %436, %437, %438 : vector<1x256xi1>, vector<1x256xf32>
    %440 = arith.addf %425, %439 : vector<1x256xf32>
    %cst_175 = arith.constant 4.000000e-02 : f32
    %441 = vector.broadcast %cst_175 : f32 to vector<1x256xf32>
    %442 = arith.mulf %440, %441 : vector<1x256xf32>
    %443 = arith.mulf %442, %370 : vector<1x256xf32>
    %444 = arith.addf %415, %443 : vector<1x256xf32>
    %c16_i32_176 = arith.constant 16 : i32
    %445 = vector.broadcast %c16_i32_176 : i32 to vector<1x256xi32>
    %446 = arith.addi %1, %445 : vector<1x256xi32>
    %c0_i32_177 = arith.constant 0 : i32
    %447 = vector.broadcast %c0_i32_177 : i32 to vector<1x256xi32>
    %448 = arith.cmpi sge, %446, %447 : vector<1x256xi32>
    %c256_i32_178 = arith.constant 256 : i32
    %449 = vector.broadcast %c256_i32_178 : i32 to vector<1x256xi32>
    %450 = arith.cmpi slt, %446, %449 : vector<1x256xi32>
    %451 = arith.andi %448, %450 : vector<1x256xi1>
    %cst_179 = arith.constant 1.000000e+00 : f32
    %cst_180 = arith.constant 0.000000e+00 : f32
    %452 = vector.broadcast %cst_179 : f32 to vector<1x256xf32>
    %453 = vector.broadcast %cst_180 : f32 to vector<1x256xf32>
    %454 = arith.select %451, %452, %453 : vector<1x256xi1>, vector<1x256xf32>
    %c16_i32_181 = arith.constant 16 : i32
    %455 = vector.broadcast %c16_i32_181 : i32 to vector<1x256xi32>
    %456 = arith.cmpi slt, %1, %455 : vector<1x256xi32>
    %cst_182 = arith.constant 1.000000e+00 : f32
    %cst_183 = arith.constant 0.000000e+00 : f32
    %457 = vector.broadcast %cst_182 : f32 to vector<1x256xf32>
    %458 = vector.broadcast %cst_183 : f32 to vector<1x256xf32>
    %459 = arith.select %456, %457, %458 : vector<1x256xi1>, vector<1x256xf32>
    %460 = arith.addf %454, %459 : vector<1x256xf32>
    %cst_184 = arith.constant 4.000000e-02 : f32
    %461 = vector.broadcast %cst_184 : f32 to vector<1x256xf32>
    %462 = arith.mulf %460, %461 : vector<1x256xf32>
    %463 = vector.extract_strided_slice %370 {offsets = [0, 16], sizes = [1, 240], strides = [1, 1]} : vector<1x256xf32> to vector<1x240xf32>
    %464 = vector.extract_strided_slice %370 {offsets = [0, 0], sizes = [1, 16], strides = [1, 1]} : vector<1x256xf32> to vector<1x16xf32>
    %465 = tpu.concatenate %463, %464 in 1 : vector<1x240xf32>, vector<1x16xf32> -> vector<1x256xf32>
    %466 = arith.mulf %462, %465 : vector<1x256xf32>
    %467 = arith.addf %444, %466 : vector<1x256xf32>
    %c32_i32_185 = arith.constant 32 : i32
    %468 = vector.broadcast %c32_i32_185 : i32 to vector<1x256xi32>
    %469 = arith.addi %1, %468 : vector<1x256xi32>
    %c0_i32_186 = arith.constant 0 : i32
    %470 = vector.broadcast %c0_i32_186 : i32 to vector<1x256xi32>
    %471 = arith.cmpi sge, %469, %470 : vector<1x256xi32>
    %c256_i32_187 = arith.constant 256 : i32
    %472 = vector.broadcast %c256_i32_187 : i32 to vector<1x256xi32>
    %473 = arith.cmpi slt, %469, %472 : vector<1x256xi32>
    %474 = arith.andi %471, %473 : vector<1x256xi1>
    %cst_188 = arith.constant 1.000000e+00 : f32
    %cst_189 = arith.constant 0.000000e+00 : f32
    %475 = vector.broadcast %cst_188 : f32 to vector<1x256xf32>
    %476 = vector.broadcast %cst_189 : f32 to vector<1x256xf32>
    %477 = arith.select %474, %475, %476 : vector<1x256xi1>, vector<1x256xf32>
    %c16_i32_190 = arith.constant 16 : i32
    %478 = vector.broadcast %c16_i32_190 : i32 to vector<1x256xi32>
    %479 = arith.cmpi slt, %1, %478 : vector<1x256xi32>
    %cst_191 = arith.constant 1.000000e+00 : f32
    %cst_192 = arith.constant 0.000000e+00 : f32
    %480 = vector.broadcast %cst_191 : f32 to vector<1x256xf32>
    %481 = vector.broadcast %cst_192 : f32 to vector<1x256xf32>
    %482 = arith.select %479, %480, %481 : vector<1x256xi1>, vector<1x256xf32>
    %483 = arith.addf %477, %482 : vector<1x256xf32>
    %cst_193 = arith.constant 4.000000e-02 : f32
    %484 = vector.broadcast %cst_193 : f32 to vector<1x256xf32>
    %485 = arith.mulf %483, %484 : vector<1x256xf32>
    %486 = vector.extract_strided_slice %370 {offsets = [0, 32], sizes = [1, 224], strides = [1, 1]} : vector<1x256xf32> to vector<1x224xf32>
    %487 = vector.extract_strided_slice %370 {offsets = [0, 0], sizes = [1, 32], strides = [1, 1]} : vector<1x256xf32> to vector<1x32xf32>
    %488 = tpu.concatenate %486, %487 in 1 : vector<1x224xf32>, vector<1x32xf32> -> vector<1x256xf32>
    %489 = arith.mulf %485, %488 : vector<1x256xf32>
    %490 = arith.addf %467, %489 : vector<1x256xf32>
    %491 = arith.subf %250, %490 : vector<1x256xf32>
    %492 = math.absf %491 : vector<1x256xf32>
    %cst_194 = arith.constant 9.99999997E-7 : f32
    %493 = vector.broadcast %cst_194 : f32 to vector<1x256xf32>
    %494 = arith.addf %492, %493 : vector<1x256xf32>
    %495 = arith.divf %490, %494 : vector<1x256xf32>
    %c0_195 = arith.constant 0 : index
    %c0_196 = arith.constant 0 : index
    %c0_197 = arith.constant 0 : index
    %496 = vector.load %arg10[%c0_195, %c0_196, %c0_197] : memref<1x1x256xf32, #tpu.memory_space<vmem>>, vector<1x1x256xf32>
    %497 = vector.shape_cast %496 : vector<1x1x256xf32> to vector<1x256xf32>
    %498 = vector.shape_cast %495 : vector<1x256xf32> to vector<1x1x256xf32>
    tpu.vector_store %arg10[%c0_195, %c0_196, %c0_197], %498 {strides = array<i32>} : memref<1x1x256xf32, #tpu.memory_space<vmem>>, vector<1x1x256xf32>,
    return
  }
  func.func @transform_0(%arg0: i32) -> (i32, i32) {
    %c0_i32 = arith.constant 0 : i32
    %c0_i32_0 = arith.constant 0 : i32
    %c0_i32_1 = arith.constant 0 : i32
    return %c0_i32, %c0_i32_0 : i32, i32
  }
  func.func @transform_1(%arg0: i32) -> (i32, i32, i32) {
    %c0_i32 = arith.constant 0 : i32
    %c0_i32_0 = arith.constant 0 : i32
    %c0_i32_1 = arith.constant 0 : i32
    return %arg0, %c0_i32, %c0_i32_0 : i32, i32, i32
  }
  func.func @transform_2(%arg0: i32) -> (i32, i32, i32) {
    %c0_i32 = arith.constant 0 : i32
    %c0_i32_0 = arith.constant 0 : i32
    %c0_i32_1 = arith.constant 0 : i32
    %c0_i32_2 = arith.constant 0 : i32
    return %c0_i32, %c0_i32_0, %c0_i32_1 : i32, i32, i32
  }
  func.func @transform_3(%arg0: i32) -> (i32, i32) {
    %c0_i32 = arith.constant 0 : i32
    %c0_i32_0 = arith.constant 0 : i32
    %c0_i32_1 = arith.constant 0 : i32
    return %c0_i32, %c0_i32_0 : i32, i32
  }
  func.func @transform_4(%arg0: i32) -> (i32, i32, i32) {
    %c0_i32 = arith.constant 0 : i32
    %c0_i32_0 = arith.constant 0 : i32
    %c0_i32_1 = arith.constant 0 : i32
    %c0_i32_2 = arith.constant 0 : i32
    return %c0_i32, %c0_i32_0, %c0_i32_1 : i32, i32, i32
  }
  func.func @transform_5(%arg0: i32) -> (i32, i32) {
    %c0_i32 = arith.constant 0 : i32
    %c0_i32_0 = arith.constant 0 : i32
    %c0_i32_1 = arith.constant 0 : i32
    return %c0_i32, %c0_i32_0 : i32, i32
  }
  func.func @transform_6(%arg0: i32) -> (i32, i32) {
    %c0_i32 = arith.constant 0 : i32
    %c0_i32_0 = arith.constant 0 : i32
    %c0_i32_1 = arith.constant 0 : i32
    return %c0_i32, %c0_i32_0 : i32, i32
  }
  func.func @transform_7(%arg0: i32) -> (i32, i32) {
    %c0_i32 = arith.constant 0 : i32
    %c0_i32_0 = arith.constant 0 : i32
    %c0_i32_1 = arith.constant 0 : i32
    return %c0_i32, %c0_i32_0 : i32, i32
  }
  func.func @transform_8(%arg0: i32) -> (i32, i32, i32) {
    %c0_i32 = arith.constant 0 : i32
    %c0_i32_0 = arith.constant 0 : i32
    %c0_i32_1 = arith.constant 0 : i32
    return %arg0, %c0_i32, %c0_i32_0 : i32, i32, i32
  }
  func.func @transform_9(%arg0: i32) -> (i32, i32, i32) {
    %c0_i32 = arith.constant 0 : i32
    %c0_i32_0 = arith.constant 0 : i32
    %c0_i32_1 = arith.constant 0 : i32
    return %arg0, %c0_i32, %c0_i32_0 : i32, i32, i32
  }
}

</mosaic_0001>

<llo_original>
// kernel: _lambda_.1
$region0: #{_lambda_.1}
  #allocation0 [shape = 'u32[]', space=smem, size = 0x4, offset = 0x4, fixed_abs, tag = 'smem constant byte address 0x4 - core index']
  #allocation1 [shape = 'u32[144,128]{1,0:T(1,128)}', space=vmem, size = 0x12000, scoped, tag = 'internal scratch']
  #allocation2 [shape = 'f32[1,1]{1,0:T(1,128)S(1)}', space=vmem, size = 0x200, scoped, tag = 'scoped memory for _lambda_.1']
  %s0 = inlined_call_operand.vmem [shape: s32[1,256], index: 0, kind: input, shape index: {}]
  %s1 = inlined_call_operand.vmem [shape: f32[2,3,256], index: 1, kind: input, shape index: {}]
  %s2 = inlined_call_operand.hbm [shape: f32[9,32,4], index: 2, kind: input, shape index: {}]
  %s3 = inlined_call_operand.vmem [shape: f32[32,1], index: 3, kind: input, shape index: {}]
  %s4 = inlined_call_operand.hbm [shape: f32[9,16,32], index: 4, kind: input, shape index: {}]
  %s5 = inlined_call_operand.vmem [shape: f32[16,1], index: 5, kind: input, shape index: {}]
  %s6 = inlined_call_operand.vmem [shape: f32[1,16], index: 6, kind: input, shape index: {}]
  %s7 = inlined_call_operand.<no memory space> [shape: f32[1,1], index: 7, kind: input, shape index: {}]
  %s8 = inlined_call_operand.vmem [shape: f32[2,3,256], index: 8, kind: output, shape index: {0}]
  %s9 = inlined_call_operand.vmem [shape: f32[2,1,256], index: 9, kind: output, shape index: {1}]
  %10 = xla_tuple %s8, %s9
  %s11 = sld [smem:[#allocation0]]
  $region81: #{_lambda_.1} parent=0
    _
  %s13 = ssub.s32 1, %s11
  %s14 = scalar_select 0, %s13, %s11
  %v15 = vstv %s7
  %16 = vst [vmem:[#allocation2] sm:$0x1] %v15
  $region1: #{_lambda_.1} parent=0
    #allocation3 [shape = 'u8[147456]{0}', space=vmem, size = 0x24000, scoped, tag = 'input window, operand 2, single buffered']
    #allocation4 [shape = 's32[2]{0}', space=sflag, size = 0x8, scoped, tag = 'scoped memory for _lambda_.1']
    #allocation5 [shape = 'u8[73728]{0}', space=vmem, size = 0x12000, scoped, tag = 'input window, operand 4, single buffered']
    #allocation6 [shape = 's32[1]{0}', space=sflag, size = 0x4, scoped, tag = 'scoped memory for _lambda_.1']
    %17 = vsyncpa [#allocation4], 0
    %18 = vsyncpa [#allocation6], 0
    loop: start=0, step=1, limit=4
    $region2: #{_lambda_.1} parent=1 // loop_pre_header
      _
    $region3: #{_lambda_.1} parent=1 // loop_header
      %s20 = sphi 0, %s24
      %p21 = scmp.ge.s32.totalorder %s20, 4
      %s28 = sphi 0, %s28
      %s30 = sphi 0, %s28
      %s31 = sphi 0, %s30
      %s45 = sphi 0, %s31
      %s51 = sphi 0, %s53
      %s54 = sphi 0, %s51
      %s55 = sphi 0, %s54
      %s71 = sphi 0, %s55
      %s75 = sphi 0, %s75
      %s77 = sphi 0, %s75
      %s78 = sphi 0, %s77
      %s92 = sphi 0, %s78
      %s96 = sphi 0, %s96
      %s98 = sphi 0, %s96
      %s99 = sphi 0, %s98
      %s113 = sphi 0, %s99
      %s117 = sphi 0, %s117
      %s119 = sphi 0, %s117
      %s120 = sphi 0, %s119
      %s134 = sphi 0, %s120
      %s138 = sphi 0, %s138
      %s140 = sphi 0, %s138
      %s141 = sphi 0, %s140
      %s155 = sphi 0, %s141
      %s159 = sphi 0, %s159
      %s161 = sphi 0, %s159
      %s162 = sphi 0, %s161
      %s176 = sphi 0, %s162
      %s180 = sphi 0, %s180
      %s182 = sphi 0, %s180
      %s183 = sphi 0, %s182
      %s197 = sphi 0, %s183
      %s203 = sphi 0, %s205
      %s206 = sphi 0, %s203
      %s207 = sphi 0, %s206
      %s223 = sphi 0, %s207
      %s229 = sphi 0, %s231
      %s232 = sphi 0, %s229
      %s233 = sphi 0, %s232
      %s249 = sphi 0, %s233
    $region4: #{_lambda_.1} parent=1 // loop_header_branch
      %23 = sbr.rel (%p21) target = $region8
    $region5: #{_lambda_.1} parent=1 // loop_body
      %s25 = ssub.s32 %s20, 1
      %s26 = ssub.s32 %s20, 2
      %s27 = sadd.s32 %s20, 1
      %s29 = sadd.s32 %s28, 1
      %p32 = scmp.eq.s32.totalorder %s20, 1
      %p33 = scmp.ne.s32.totalorder %s28, %s30
      %p34 = scmp.eq.s32.totalorder %s20, 0
      %p35 = por %p33, %p34
      %p36 = scmp.ne.s32.totalorder %s28, %s30
      %p37 = scmp.eq.s32.totalorder %s25, 1
      %p38 = por %p36, %p37
      %p39 = scmp.ne.s32.totalorder %s30, %s31
      %p40 = scmp.eq.s32.totalorder %s25, 0
      %p41 = por %p39, %p40
      %p42 = scmp.ne.s32.totalorder %s30, %s31
      %p43 = scmp.eq.s32.totalorder %s26, 1
      %p44 = por %p42, %p43
      %p46 = scmp.ne.s32.totalorder %s31, %s45
      %p47 = scmp.eq.s32.totalorder %s26, 0
      %p48 = por %p46, %p47
      %s49 = ssub.s32 %s20, %s27
      %p50 = scmp.eq.s32.totalorder %s49, 0
      %s52 = sadd.s32 %s51, 1
      %s53 = scalar_select %p50, %s51, %s52
      %p56 = pneg %p50
      %p57 = scmp.eq.s32.totalorder %s20, 1
      %p58 = por %p56, %p57
      %p59 = scmp.ne.s32.totalorder %s51, %s54
      %p60 = scmp.eq.s32.totalorder %s20, 0
      %p61 = por %p59, %p60
      %p62 = scmp.ne.s32.totalorder %s51, %s54
      %p63 = scmp.eq.s32.totalorder %s25, 1
      %p64 = por %p62, %p63
      %p65 = scmp.ne.s32.totalorder %s54, %s55
      %p66 = scmp.eq.s32.totalorder %s25, 0
      %p67 = por %p65, %p66
      %p68 = scmp.ne.s32.totalorder %s54, %s55
      %p69 = scmp.eq.s32.totalorder %s26, 1
      %p70 = por %p68, %p69
      %p72 = scmp.ne.s32.totalorder %s55, %s71
      %p73 = scmp.eq.s32.totalorder %s26, 0
      %p74 = por %p72, %p73
      %s76 = sadd.s32 %s75, 1
      %p79 = scmp.eq.s32.totalorder %s20, 1
      %p80 = scmp.ne.s32.totalorder %s75, %s77
      %p81 = scmp.eq.s32.totalorder %s20, 0
      %p82 = por %p80, %p81
      %p83 = scmp.ne.s32.totalorder %s75, %s77
      %p84 = scmp.eq.s32.totalorder %s25, 1
      %p85 = por %p83, %p84
      %p86 = scmp.ne.s32.totalorder %s77, %s78
      %p87 = scmp.eq.s32.totalorder %s25, 0
      %p88 = por %p86, %p87
      %p89 = scmp.ne.s32.totalorder %s77, %s78
      %p90 = scmp.eq.s32.totalorder %s26, 1
      %p91 = por %p89, %p90
      %p93 = scmp.ne.s32.totalorder %s78, %s92
      %p94 = scmp.eq.s32.totalorder %s26, 0
      %p95 = por %p93, %p94
      %s97 = sadd.s32 %s96, 1
      %p100 = scmp.eq.s32.totalorder %s20, 1
      %p101 = scmp.ne.s32.totalorder %s96, %s98
      %p102 = scmp.eq.s32.totalorder %s20, 0
      %p103 = por %p101, %p102
      %p104 = scmp.ne.s32.totalorder %s96, %s98
      %p105 = scmp.eq.s32.totalorder %s25, 1
      %p106 = por %p104, %p105
      %p107 = scmp.ne.s32.totalorder %s98, %s99
      %p108 = scmp.eq.s32.totalorder %s25, 0
      %p109 = por %p107, %p108
      %p110 = scmp.ne.s32.totalorder %s98, %s99
      %p111 = scmp.eq.s32.totalorder %s26, 1
      %p112 = por %p110, %p111
      %p114 = scmp.ne.s32.totalorder %s99, %s113
      %p115 = scmp.eq.s32.totalorder %s26, 0
      %p116 = por %p114, %p115
      %s118 = sadd.s32 %s117, 1
      %p121 = scmp.eq.s32.totalorder %s20, 1
      %p122 = scmp.ne.s32.totalorder %s117, %s119
      %p123 = scmp.eq.s32.totalorder %s20, 0
      %p124 = por %p122, %p123
      %p125 = scmp.ne.s32.totalorder %s117, %s119
      %p126 = scmp.eq.s32.totalorder %s25, 1
      %p127 = por %p125, %p126
      %p128 = scmp.ne.s32.totalorder %s119, %s120
      %p129 = scmp.eq.s32.totalorder %s25, 0
      %p130 = por %p128, %p129
      %p131 = scmp.ne.s32.totalorder %s119, %s120
      %p132 = scmp.eq.s32.totalorder %s26, 1
      %p133 = por %p131, %p132
      %p135 = scmp.ne.s32.totalorder %s120, %s134
      %p136 = scmp.eq.s32.totalorder %s26, 0
      %p137 = por %p135, %p136
      %s139 = sadd.s32 %s138, 1
      %p142 = scmp.eq.s32.totalorder %s20, 1
      %p143 = scmp.ne.s32.totalorder %s138, %s140
      %p144 = scmp.eq.s32.totalorder %s20, 0
      %p145 = por %p143, %p144
      %p146 = scmp.ne.s32.totalorder %s138, %s140
      %p147 = scmp.eq.s32.totalorder %s25, 1
      %p148 = por %p146, %p147
      %p149 = scmp.ne.s32.totalorder %s140, %s141
      %p150 = scmp.eq.s32.totalorder %s25, 0
      %p151 = por %p149, %p150
      %p152 = scmp.ne.s32.totalorder %s140, %s141
      %p153 = scmp.eq.s32.totalorder %s26, 1
      %p154 = por %p152, %p153
      %p156 = scmp.ne.s32.totalorder %s141, %s155
      %p157 = scmp.eq.s32.totalorder %s26, 0
      %p158 = por %p156, %p157
      %s160 = sadd.s32 %s159, 1
      %p163 = scmp.eq.s32.totalorder %s20, 1
      %p164 = scmp.ne.s32.totalorder %s159, %s161
      %p165 = scmp.eq.s32.totalorder %s20, 0
      %p166 = por %p164, %p165
      %p167 = scmp.ne.s32.totalorder %s159, %s161
      %p168 = scmp.eq.s32.totalorder %s25, 1
      %p169 = por %p167, %p168
      %p170 = scmp.ne.s32.totalorder %s161, %s162
      %p171 = scmp.eq.s32.totalorder %s25, 0
      %p172 = por %p170, %p171
      %p173 = scmp.ne.s32.totalorder %s161, %s162
      %p174 = scmp.eq.s32.totalorder %s26, 1
      %p175 = por %p173, %p174
      %p177 = scmp.ne.s32.totalorder %s162, %s176
      %p178 = scmp.eq.s32.totalorder %s26, 0
      %p179 = por %p177, %p178
      %s181 = sadd.s32 %s180, 1
      %p184 = scmp.eq.s32.totalorder %s20, 1
      %p185 = scmp.ne.s32.totalorder %s180, %s182
      %p186 = scmp.eq.s32.totalorder %s20, 0
      %p187 = por %p185, %p186
      %p188 = scmp.ne.s32.totalorder %s180, %s182
      %p189 = scmp.eq.s32.totalorder %s25, 1
      %p190 = por %p188, %p189
      %p191 = scmp.ne.s32.totalorder %s182, %s183
      %p192 = scmp.eq.s32.totalorder %s25, 0
      %p193 = por %p191, %p192
      %p194 = scmp.ne.s32.totalorder %s182, %s183
      %p195 = scmp.eq.s32.totalorder %s26, 1
      %p196 = por %p194, %p195
      %p198 = scmp.ne.s32.totalorder %s183, %s197
      %p199 = scmp.eq.s32.totalorder %s26, 0
      %p200 = por %p198, %p199
      %s201 = ssub.s32 %s20, %s27
      %p202 = scmp.eq.s32.totalorder %s201, 0
      %s204 = sadd.s32 %s203, 1
      %s205 = scalar_select %p202, %s203, %s204
      %p208 = pneg %p202
      %p209 = scmp.eq.s32.totalorder %s20, 1
      %p210 = por %p208, %p209
      %p211 = scmp.ne.s32.totalorder %s203, %s206
      %p212 = scmp.eq.s32.totalorder %s20, 0
      %p213 = por %p211, %p212
      %p214 = scmp.ne.s32.totalorder %s203, %s206
      %p215 = scmp.eq.s32.totalorder %s25, 1
      %p216 = por %p214, %p215
      %p217 = scmp.ne.s32.totalorder %s206, %s207
      %p218 = scmp.eq.s32.totalorder %s25, 0
      %p219 = por %p217, %p218
      %p220 = scmp.ne.s32.totalorder %s206, %s207
      %p221 = scmp.eq.s32.totalorder %s26, 1
      %p222 = por %p220, %p221
      %p224 = scmp.ne.s32.totalorder %s207, %s223
      %p225 = scmp.eq.s32.totalorder %s26, 0
      %p226 = por %p224, %p225
      %s227 = ssub.s32 %s20, %s27
      %p228 = scmp.eq.s32.totalorder %s227, 0
      %s230 = sadd.s32 %s229, 1
      %s231 = scalar_select %p228, %s229, %s230
      %p234 = pneg %p228
      %p235 = scmp.eq.s32.totalorder %s20, 1
      %p236 = por %p234, %p235
      %p237 = scmp.ne.s32.totalorder %s229, %s232
      %p238 = scmp.eq.s32.totalorder %s20, 0
      %p239 = por %p237, %p238
      %p240 = scmp.ne.s32.totalorder %s229, %s232
      %p241 = scmp.eq.s32.totalorder %s25, 1
      %p242 = por %p240, %p241
      %p243 = scmp.ne.s32.totalorder %s232, %s233
      %p244 = scmp.eq.s32.totalorder %s25, 0
      %p245 = por %p243, %p244
      %p246 = scmp.ne.s32.totalorder %s232, %s233
      %p247 = scmp.eq.s32.totalorder %s26, 1
      %p248 = por %p246, %p247
      %p250 = scmp.ne.s32.totalorder %s233, %s249
      %p251 = scmp.eq.s32.totalorder %s26, 0
      %p252 = por %p250, %p251
      %p253 = scmp.le.s32.totalorder 1, %s20
      %p254 = scmp.lt.s32.totalorder %s20, 3
      %p255 = pnand %p253, %p254
      %p256 = pneg %p255
      // Predicated region
      $region9: #{_lambda_.1} parent=5 // pred_check
        _
      $region10: #{_lambda_.1} parent=5 // pred_check_branch
        %258 = sbr.rel (%p255) target = $region12
      $region11: #{_lambda_.1} parent=5 // pred_region
        %s259 = ssub.s32 %s20, 1
        // Predicated region
        $region13: #{_lambda_.1} parent=11 // pred_check
          %p260 = pneg %p41
        $region14: #{_lambda_.1} parent=11 // pred_check_branch
          %262 = sbr.rel (%p260) target = $region16
        $region15: #{_lambda_.1} parent=11 // pred_region
          _
        $region16: #{_lambda_.1} parent=11 // pred_fallthru
          _
        // Predicated region
        $region17: #{_lambda_.1} parent=11 // pred_check
          %p263 = pneg %p88
        $region18: #{_lambda_.1} parent=11 // pred_check_branch
          %265 = sbr.rel (%p263) target = $region20
        $region19: #{_lambda_.1} parent=11 // pred_region
          %s267 = ssub.s32 4608, 4608
          %268 = vsyncadd [#allocation4], %s267
          %s269 = sshll.u32 [#allocation3], 4
          %s270 = int_to_ptr.vmem [resolvable:$true] %s269
          %275 = dma.hbm_to_vmem [thread:$0]  %s2, 4608, %s270, [#allocation4], 128, 128, 8
        $region20: #{_lambda_.1} parent=11 // pred_fallthru
          _
        // Predicated region
        $region21: #{_lambda_.1} parent=11 // pred_check
          %p276 = pneg %p109
        $region22: #{_lambda_.1} parent=11 // pred_check_branch
          %278 = sbr.rel (%p276) target = $region24
        $region23: #{_lambda_.1} parent=11 // pred_region
          _
        $region24: #{_lambda_.1} parent=11 // pred_fallthru
          _
        // Predicated region
        $region25: #{_lambda_.1} parent=11 // pred_check
          %p279 = pneg %p130
        $region26: #{_lambda_.1} parent=11 // pred_check_branch
          %281 = sbr.rel (%p279) target = $region28
        $region27: #{_lambda_.1} parent=11 // pred_region
          %s283 = ssub.s32 2304, 2304
          %284 = vsyncadd [#allocation6], %s283
          %s285 = sshll.u32 [#allocation5], 4
          %s286 = int_to_ptr.vmem [resolvable:$true] %s285
          %291 = dma.hbm_to_vmem [thread:$0]  %s4, 2304, %s286, [#allocation6], 128, 128, 8
        $region28: #{_lambda_.1} parent=11 // pred_fallthru
          _
        // Predicated region
        $region29: #{_lambda_.1} parent=11 // pred_check
          %p292 = pneg %p151
        $region30: #{_lambda_.1} parent=11 // pred_check_branch
          %294 = sbr.rel (%p292) target = $region32
        $region31: #{_lambda_.1} parent=11 // pred_region
          _
        $region32: #{_lambda_.1} parent=11 // pred_fallthru
          _
        // Predicated region
        $region33: #{_lambda_.1} parent=11 // pred_check
          %p295 = pneg %p172
        $region34: #{_lambda_.1} parent=11 // pred_check_branch
          %297 = sbr.rel (%p295) target = $region36
        $region35: #{_lambda_.1} parent=11 // pred_region
          _
        $region36: #{_lambda_.1} parent=11 // pred_fallthru
          _
        // Predicated region
        $region37: #{_lambda_.1} parent=11 // pred_check
          %p298 = pneg %p193
        $region38: #{_lambda_.1} parent=11 // pred_check_branch
          %300 = sbr.rel (%p298) target = $region40
        $region39: #{_lambda_.1} parent=11 // pred_region
          _
        $region40: #{_lambda_.1} parent=11 // pred_fallthru
          _
      $region12: #{_lambda_.1} parent=5 // pred_fallthru
        _
      %p301 = scmp.lt.s32.totalorder %s20, 2
      // Predicated region
      $region41: #{_lambda_.1} parent=5 // pred_check
        %p302 = pneg %p301
      $region42: #{_lambda_.1} parent=5 // pred_check_branch
        %304 = sbr.rel (%p302) target = $region44
      $region43: #{_lambda_.1} parent=5 // pred_region
        // Predicated region
        $region45: #{_lambda_.1} parent=43 // pred_check
          %p305 = pneg %p61
        $region46: #{_lambda_.1} parent=43 // pred_check_branch
          %307 = sbr.rel (%p305) target = $region48
        $region47: #{_lambda_.1} parent=43 // pred_region
          %p308 = scmp.lt.s32.totalorder %s20, 1
          %s309 = scalar_select %p308, %s20, 1
          %s310 = smul.addr %s309, 2
          %s311 = smul.addr %s310, 4
          %s312 = scalar_lea.vmem %s1, %s311
        $region48: #{_lambda_.1} parent=43 // pred_fallthru
          _
      $region44: #{_lambda_.1} parent=5 // pred_fallthru
        _
      %p313 = scmp.le.s32.totalorder 1, %s20
      %p314 = scmp.lt.s32.totalorder %s20, 3
      %p315 = pnand %p313, %p314
      %p316 = pneg %p315
      // Predicated region
      $region49: #{_lambda_.1} parent=5 // pred_check
        _
      $region50: #{_lambda_.1} parent=5 // pred_check_branch
        %318 = sbr.rel (%p315) target = $region52
      $region51: #{_lambda_.1} parent=5 // pred_region
        %s319 = ssub.s32 %s20, 1
        // Predicated region
        $region53: #{_lambda_.1} parent=51 // pred_check
          %p320 = pneg %p88
        $region54: #{_lambda_.1} parent=51 // pred_check_branch
          %322 = sbr.rel (%p320) target = $region56
        $region55: #{_lambda_.1} parent=51 // pred_region
          %323 = dma.done [#allocation4], 4608
        $region56: #{_lambda_.1} parent=51 // pred_fallthru
          _
        // Predicated region
        $region57: #{_lambda_.1} parent=51 // pred_check
          %p324 = pneg %p130
        $region58: #{_lambda_.1} parent=51 // pred_check_branch
          %326 = sbr.rel (%p324) target = $region60
        $region59: #{_lambda_.1} parent=51 // pred_region
          %327 = dma.done [#allocation6], 2304
        $region60: #{_lambda_.1} parent=51 // pred_fallthru
          _
        %p328 = pneg %p41
        %p329 = pneg %p38
        %p330 = scmp.lt.s32.totalorder %s25, 1
        %s331 = scalar_select %p330, %s25, 1
        %s332 = smul.addr %s331, 2
        %s333 = smul.addr %s332, 4
        %s334 = scalar_lea.vmem %s1, %s333
        %p335 = pneg %p67
        %p336 = pneg %p64
        %p337 = pneg %p88
        %p338 = pneg %p85
        %p339 = pneg %p109
        %p340 = pneg %p106
        %p341 = pneg %p130
        %p342 = pneg %p127
        %p343 = pneg %p151
        %p344 = pneg %p148
        %p345 = pneg %p172
        %p346 = pneg %p169
        %p347 = pneg %p193
        %p348 = pneg %p190
        %p349 = pneg %p219
        %p350 = pneg %p216
        %p351 = scmp.lt.s32.totalorder %s25, 1
        %s352 = scalar_select %p351, %s25, 1
        %s353 = smul.addr %s352, 2
        %s354 = smul.addr %s353, 4
        %s355 = scalar_lea.vmem %s8, %s354
        %p356 = pneg %p245
        %p357 = pneg %p242
        %p358 = scmp.lt.s32.totalorder %s25, 1
        %s359 = scalar_select %p358, %s25, 1
        %s360 = smul.addr %s359, 2
        %s361 = scalar_lea.vmem %s9, %s360
        %p362 = scmp.lt.s32.totalorder %s25, 1
        %s363 = scalar_select %p362, %s25, 1
        %s364 = smul.addr %s363, 2
        %s365 = smul.addr %s364, 4
        %s366 = scalar_lea.vmem %s1, %s365
        %p367 = scmp.lt.s32.totalorder %s25, 1
        %s368 = scalar_select %p367, %s25, 1
        %s369 = smul.addr %s368, 2
        %s370 = smul.addr %s369, 4
        %s371 = scalar_lea.vmem %s8, %s370
        %p372 = scmp.lt.s32.totalorder %s25, 1
        %s373 = scalar_select %p372, %s25, 1
        %s374 = smul.addr %s373, 2
        %s375 = scalar_lea.vmem %s9, %s374
        %v376 = vld [vmem:[%s0] sm:$0x3]
        %v377 = vlaneseq
        %v378 = vand.u32 %v377, 127
        %v379 = vadd.s32 %v378, 128
        %v380 = vld [vmem:[%s366] sm:$0x77]
        %v382 = vcombine.high %v380, %v380
        %vm384 = vcmask 1042432
        %v385 = vsel %vm384, %v380, -inf
        %v386 = vrot.slane %v385, 4
        %v387 = vmax.f32 %v385, %v386
        %v388 = vrot.slane %v387, 2
        %v389 = vmax.f32 %v387, %v388
        %v390 = vrot.slane %v389, 1
        %v391 = vmax.f32 %v389, %v390
        %v392 = vsel %vm384, %v382, -inf
        %v393 = vrot.slane %v392, 4
        %v394 = vmax.f32 %v392, %v393
        %v395 = vrot.slane %v394, 2
        %v396 = vmax.f32 %v394, %v395
        %v397 = vrot.slane %v396, 1
        %v398 = vmax.f32 %v396, %v397
        %v399 = vsel %vm384, %v380, %v391
        %v400 = vsel %vm384, %v382, %v398
        %v401 = vadd.s32 %v376, 4294967295
        %vm402 = vcmp.ge.s32.totalorder %v401, 0
        %vm403 = vcmp.lt.s32.totalorder %v401, 16
        %vm404 = vmand %vm402, %vm403
        %v405 = vsel %vm404, 1.0, 0.0
        %v406 = vadd.s32 %v376, 1
        %vm407 = vcmp.ge.s32.totalorder %v406, 0
        %vm408 = vcmp.lt.s32.totalorder %v406, 16
        %vm409 = vmand %vm407, %vm408
        %v410 = vsel %vm409, 1.0, 0.0
        %v411 = vadd.s32 %v378, 4294967280
        %v412 = vadd.s32 %v379, 4294967280
        %vm413 = vcmp.ge.s32.totalorder %v411, 0
        %vm414 = vcmp.ge.s32.totalorder %v412, 0
        %vm415 = vcmp.lt.s32.totalorder %v411, 256
        %vm416 = vcmp.lt.s32.totalorder %v412, 256
        %vm417 = vmand %vm413, %vm415
        %vm418 = vmand %vm414, %vm416
        %v419 = vsel %vm417, 1.0, 0.0
        %v420 = vsel %vm418, 1.0, 0.0
        %v421 = vadd.s32 %v378, 16
        %v422 = vadd.s32 %v379, 16
        %vm423 = vcmp.ge.s32.totalorder %v421, 0
        %vm424 = vcmp.ge.s32.totalorder %v422, 0
        %vm425 = vcmp.lt.s32.totalorder %v421, 256
        %vm426 = vcmp.lt.s32.totalorder %v422, 256
        %vm427 = vmand %vm423, %vm425
        %vm428 = vmand %vm424, %vm426
        %v429 = vsel %vm427, 1.0, 0.0
        %v430 = vsel %vm428, 1.0, 0.0
        %v433 = vcombine.low %v419, %v420
        %v435 = vunpack.c.l.s4 1966171168
        %v436 = vunpack.c.0.s8 %v435
        %v437 = vlaneseq
        %v438 = vshrl.u32 %v437, 7
        %v439 = vsub.s32 %v436, %v438
        %v440 = vrot.slane %v433, %v439
        %v442 = vunpack.c.l.s4 1966171168
        %v443 = vunpack.c.0.s8 %v442
        %v444 = vlaneseq
        %v445 = vshrl.u32 %v444, 7
        %v446 = vsub.s32 %v443, %v445
        %v447 = vrot.slane %v440, %v446
        %v449 = vmul.f32 %v405, %v447
        %v450 = vmul.f32 %v410, %v447
        %v453 = vcombine.low %v429, %v430
        %v455 = vunpack.c.l.s4 1966171168
        %v456 = vunpack.c.0.s8 %v455
        %v457 = vlaneseq
        %v458 = vshrl.u32 %v457, 7
        %v459 = vsub.s32 %v456, %v458
        %v460 = vrot.slane %v453, %v459
        %v462 = vunpack.c.l.s4 1966171168
        %v463 = vunpack.c.0.s8 %v462
        %v464 = vlaneseq
        %v465 = vshrl.u32 %v464, 7
        %v466 = vsub.s32 %v463, %v465
        %v467 = vrot.slane %v460, %v466
        %v469 = vmul.f32 %v405, %v467
        %v470 = vmul.f32 %v410, %v467
        %472 = vrot.lane.b32.xlu0 %v400, 17
        %v473 = vpop.permute.xlu0 %472
        %476 = vrot.lane.b32.xlu0 %v399, 17
        %v477 = vpop.permute.xlu0 %476
        %vm478 = vcmask 138240
        %v479 = vsel %vm478, %v477, %v473
        %v482 = vsel %vm478, %v473, %v477
        %v484 = vlaneseq
        %v485 = vshrl.u32 %v484, 7
        %v486 = vsub.s32 0, %v485
        %v487 = vrot.slane %v449, %v486
        %v488 = vlaneseq
        %v489 = vshrl.u32 %v488, 7
        %v490 = vsub.s32 1, %v489
        %v491 = vrot.slane %v449, %v490
        %v494 = vmul.f32 %v482, %v487
        %v495 = vmul.f32 %v479, %v491
        %v496 = vld [vmem:[#allocation3] sm:$0xff]
        %v497 = vld [vmem:[#allocation3 + $0x8] sm:$0xff]
        %v498 = vld [vmem:[#allocation3 + $0x10] sm:$0xff]
        %v499 = vld [vmem:[#allocation3 + $0x18] sm:$0xff]
        %500 = vrot.lane.b32.xlu0 %v400, 16
        %v501 = vpop.permute.xlu0 %500
        %503 = vrot.lane.b32.xlu0 %v399, 16
        %v504 = vpop.permute.xlu0 %503
        %vm505 = vcmask 130048
        %v506 = vsel %vm505, %v504, %v501
        %v509 = vsel %vm505, %v501, %v504
        %v510 = vmul.f32 %v509, %v419
        %v511 = vmul.f32 %v506, %v420
        %s512 = scalar_lea.vmem [#allocation3], 32
        %v513 = vld [vmem:[%s512] sm:$0xff]
        %v514 = vld [vmem:[%s512 + $0x8] sm:$0xff]
        %v515 = vld [vmem:[%s512 + $0x10] sm:$0xff]
        %v516 = vld [vmem:[%s512 + $0x18] sm:$0xff]
        %vm517 = vcmask 31744
        %v519 = vsel %vm517, %v513, 0
        %v522 = vsel %vm517, %v514, 0
        %v525 = vsel %vm517, %v515, 0
        %v528 = vsel %vm517, %v516, 0
        %vm530 = vcmask 1043456
        %v532 = vsel %vm530, %v510, 0
        %v535 = vsel %vm530, %v511, 0
        %537 = vmatprep.subr.mxu0 %v535
        %538 = vmatpush1.msra.mxu0 %v532
        %539 = vmatprep.subr.mxu0 0.0
        %540 = vmatpush1.msra.mxu0 0.0
        %541 = vmatprep.subr.mxu0 0.0
        %542 = vmatpush1.msra.mxu0 0.0
        %543 = vmatprep.subr.mxu0 0.0
        %544 = vmatpush1.msra.mxu0 0.0
        %545 = vmatprep.subr.mxu0 0.0
        %546 = vmatpush1.msra.mxu0 0.0
        %547 = vmatprep.subr.mxu0 0.0
        %548 = vmatpush1.msra.mxu0 0.0
        %549 = vmatprep.subr.mxu0 0.0
        %550 = vmatpush1.msra.mxu0 0.0
        %551 = vmatprep.subr.mxu0 0.0
        %552 = vmatpush1.msra.mxu0 0.0
        %553 = vmatprep.subr.mxu0 0.0
        %554 = vmatpush1.msra.mxu0 0.0
        %555 = vmatprep.subr.mxu0 0.0
        %556 = vmatpush1.msra.mxu0 0.0
        %557 = vmatprep.subr.mxu0 0.0
        %558 = vmatpush1.msra.mxu0 0.0
        %559 = vmatprep.subr.mxu0 0.0
        %560 = vmatpush1.msra.mxu0 0.0
        %561 = vmatprep.subr.mxu0 0.0
        %562 = vmatpush1.msra.mxu0 0.0
        %563 = vmatprep.subr.mxu0 0.0
        %564 = vmatpush1.msra.mxu0 0.0
        %565 = vmatprep.subr.mxu0 0.0
        %566 = vmatpush1.msra.mxu0 0.0
        %567 = vmatprep.subr.mxu0 0.0
        %568 = vmatpush1.msra.mxu0 0.0
        %569 = vmatprep.subr.mxu0 0.0
        %570 = vmatpush1.msra.mxu0 0.0
        %571 = vmatprep.subr.mxu0 0.0
        %572 = vmatpush1.msra.mxu0 0.0
        %573 = vmatprep.subr.mxu0 0.0
        %574 = vmatpush1.msra.mxu0 0.0
        %575 = vmatprep.subr.mxu0 0.0
        %576 = vmatpush1.msra.mxu0 0.0
        %577 = vmatprep.subr.mxu0 0.0
        %578 = vmatpush1.msra.mxu0 0.0
        %579 = vmatprep.subr.mxu0 0.0
        %580 = vmatpush1.msra.mxu0 0.0
        %581 = vmatprep.subr.mxu0 0.0
        %582 = vmatpush1.msra.mxu0 0.0
        %583 = vmatprep.subr.mxu0 0.0
        %584 = vmatpush1.msra.mxu0 0.0
        %585 = vmatprep.subr.mxu0 0.0
        %586 = vmatpush1.msra.mxu0 0.0
        %587 = vmatprep.subr.mxu0 0.0
        %588 = vmatpush1.msra.mxu0 0.0
        %589 = vmatprep.subr.mxu0 0.0
        %590 = vmatpush1.msra.mxu0 0.0
        %591 = vmatprep.subr.mxu0 0.0
        %592 = vmatpush1.msra.mxu0 0.0
        %593 = vmatprep.subr.mxu0 0.0
        %594 = vmatpush1.msra.mxu0 0.0
        %595 = vmatprep.subr.mxu0 0.0
        %596 = vmatpush1.msra.mxu0 0.0
        %597 = vmatprep.subr.mxu0 0.0
        %598 = vmatpush1.msra.mxu0 0.0
        %599 = vmatprep.subr.mxu0 0.0
        %600 = vmatpush1.msra.mxu0 0.0
        %601 = vmatprep.mubr.f32.mxu0 0.0
        %602 = vmatmul.mubr.f32.gmra.mrb[0].mxu0 %v519
        %v603 = vpop.f32.mrb[0].mxu0
        %v604 = vadd.f32 0.0, %v603
        %v605 = vpop.f32.mrb[0].mxu0
        %v606 = vadd.f32 0.0, %v605
        %607 = vmatprep.mubr.f32.mxu0 0.0
        %608 = vmatmul.mubr.f32.gmra.mrb[0].mxu0 %v522
        %v609 = vpop.f32.mrb[0].mxu0
        %v610 = vadd.f32 0.0, %v609
        %v611 = vpop.f32.mrb[0].mxu0
        %v612 = vadd.f32 0.0, %v611
        %613 = vmatprep.mubr.f32.mxu0 0.0
        %614 = vmatmul.mubr.f32.gmra.mrb[0].mxu0 %v525
        %v615 = vpop.f32.mrb[0].mxu0
        %v616 = vadd.f32 0.0, %v615
        %v617 = vpop.f32.mrb[0].mxu0
        %v618 = vadd.f32 0.0, %v617
        %619 = vmatprep.mubr.f32.mxu0 0.0
        %620 = vmatmul.mubr.f32.gmra.mrb[0].mxu0 %v528
        %v621 = vpop.f32.mrb[0].mxu0
        %v622 = vadd.f32 0.0, %v621
        %v623 = vpop.f32.mrb[0].mxu0
        %v624 = vadd.f32 0.0, %v623
        %625 = vdwg.mxu0
        %v627 = vsel %vm517, %v496, 0
        %v630 = vsel %vm517, %v497, 0
        %v633 = vsel %vm517, %v498, 0
        %v636 = vsel %vm517, %v499, 0
        %v639 = vsel %vm530, %v494, 0
        %v642 = vsel %vm530, %v495, 0
        %644 = vmatprep.subr.mxu0 %v642
        %645 = vmatpush1.msra.mxu0 %v639
        %646 = vmatprep.subr.mxu0 0.0
        %647 = vmatpush1.msra.mxu0 0.0
        %648 = vmatprep.subr.mxu0 0.0
        %649 = vmatpush1.msra.mxu0 0.0
        %650 = vmatprep.subr.mxu0 0.0
        %651 = vmatpush1.msra.mxu0 0.0
        %652 = vmatprep.subr.mxu0 0.0
        %653 = vmatpush1.msra.mxu0 0.0
        %654 = vmatprep.subr.mxu0 0.0
        %655 = vmatpush1.msra.mxu0 0.0
        %656 = vmatprep.subr.mxu0 0.0
        %657 = vmatpush1.msra.mxu0 0.0
        %658 = vmatprep.subr.mxu0 0.0
        %659 = vmatpush1.msra.mxu0 0.0
        %660 = vmatprep.subr.mxu0 0.0
        %661 = vmatpush1.msra.mxu0 0.0
        %662 = vmatprep.subr.mxu0 0.0
        %663 = vmatpush1.msra.mxu0 0.0
        %664 = vmatprep.subr.mxu0 0.0
        %665 = vmatpush1.msra.mxu0 0.0
        %666 = vmatprep.subr.mxu0 0.0
        %667 = vmatpush1.msra.mxu0 0.0
        %668 = vmatprep.subr.mxu0 0.0
        %669 = vmatpush1.msra.mxu0 0.0
        %670 = vmatprep.subr.mxu0 0.0
        %671 = vmatpush1.msra.mxu0 0.0
        %672 = vmatprep.subr.mxu0 0.0
        %673 = vmatpush1.msra.mxu0 0.0
        %674 = vmatprep.subr.mxu0 0.0
        %675 = vmatpush1.msra.mxu0 0.0
        %676 = vmatprep.subr.mxu0 0.0
        %677 = vmatpush1.msra.mxu0 0.0
        %678 = vmatprep.subr.mxu0 0.0
        %679 = vmatpush1.msra.mxu0 0.0
        %680 = vmatprep.subr.mxu0 0.0
        %681 = vmatpush1.msra.mxu0 0.0
        %682 = vmatprep.subr.mxu0 0.0
        %683 = vmatpush1.msra.mxu0 0.0
        %684 = vmatprep.subr.mxu0 0.0
        %685 = vmatpush1.msra.mxu0 0.0
        %686 = vmatprep.subr.mxu0 0.0
        %687 = vmatpush1.msra.mxu0 0.0
        %688 = vmatprep.subr.mxu0 0.0
        %689 = vmatpush1.msra.mxu0 0.0
        %690 = vmatprep.subr.mxu0 0.0
        %691 = vmatpush1.msra.mxu0 0.0
        %692 = vmatprep.subr.mxu0 0.0
        %693 = vmatpush1.msra.mxu0 0.0
        %694 = vmatprep.subr.mxu0 0.0
        %695 = vmatpush1.msra.mxu0 0.0
        %696 = vmatprep.subr.mxu0 0.0
        %697 = vmatpush1.msra.mxu0 0.0
        %698 = vmatprep.subr.mxu0 0.0
        %699 = vmatpush1.msra.mxu0 0.0
        %700 = vmatprep.subr.mxu0 0.0
        %701 = vmatpush1.msra.mxu0 0.0
        %702 = vmatprep.subr.mxu0 0.0
        %703 = vmatpush1.msra.mxu0 0.0
        %704 = vmatprep.subr.mxu0 0.0
        %705 = vmatpush1.msra.mxu0 0.0
        %706 = vmatprep.subr.mxu0 0.0
        %707 = vmatpush1.msra.mxu0 0.0
        %708 = vmatprep.mubr.f32.mxu0 0.0
        %709 = vmatmul.mubr.f32.gmra.mrb[0].mxu0 %v627
        %v710 = vpop.f32.mrb[0].mxu0
        %v711 = vadd.f32 %v604, %v710
        %v712 = vpop.f32.mrb[0].mxu0
        %v713 = vadd.f32 %v606, %v712
        %714 = vmatprep.mubr.f32.mxu0 0.0
        %715 = vmatmul.mubr.f32.gmra.mrb[0].mxu0 %v630
        %v716 = vpop.f32.mrb[0].mxu0
        %v717 = vadd.f32 %v610, %v716
        %v718 = vpop.f32.mrb[0].mxu0
        %v719 = vadd.f32 %v612, %v718
        %720 = vmatprep.mubr.f32.mxu0 0.0
        %721 = vmatmul.mubr.f32.gmra.mrb[0].mxu0 %v633
        %v722 = vpop.f32.mrb[0].mxu0
        %v723 = vadd.f32 %v616, %v722
        %v724 = vpop.f32.mrb[0].mxu0
        %v725 = vadd.f32 %v618, %v724
        %726 = vmatprep.mubr.f32.mxu0 0.0
        %727 = vmatmul.mubr.f32.gmra.mrb[0].mxu0 %v636
        %v728 = vpop.f32.mrb[0].mxu0
        %v729 = vadd.f32 %v622, %v728
        %v730 = vpop.f32.mrb[0].mxu0
        %v731 = vadd.f32 %v624, %v730
        %732 = vdwg.mxu0
        %733 = vrot.lane.b32.xlu0 %v400, 15
        %v734 = vpop.permute.xlu0 %733
        %736 = vrot.lane.b32.xlu0 %v399, 15
        %v737 = vpop.permute.xlu0 %736
        %vm738 = vcmask 121856
        %v739 = vsel %vm738, %v737, %v734
        %v742 = vsel %vm738, %v734, %v737
        %v744 = vlaneseq
        %v745 = vshrl.u32 %v744, 7
        %v746 = vsub.s32 0, %v745
        %v747 = vrot.slane %v450, %v746
        %v748 = vlaneseq
        %v749 = vshrl.u32 %v748, 7
        %v750 = vsub.s32 1, %v749
        %v751 = vrot.slane %v450, %v750
        %v754 = vmul.f32 %v742, %v747
        %v755 = vmul.f32 %v739, %v751
        %s756 = scalar_lea.vmem [#allocation3], 64
        %v757 = vld [vmem:[%s756] sm:$0xff]
        %v758 = vld [vmem:[%s756 + $0x8] sm:$0xff]
        %v759 = vld [vmem:[%s756 + $0x10] sm:$0xff]
        %v760 = vld [vmem:[%s756 + $0x18] sm:$0xff]
        %v762 = vsel %vm517, %v757, 0
        %v765 = vsel %vm517, %v758, 0
        %v768 = vsel %vm517, %v759, 0
        %v771 = vsel %vm517, %v760, 0
        %v774 = vsel %vm530, %v754, 0
        %v777 = vsel %vm530, %v755, 0
        %779 = vmatprep.subr.mxu0 %v777
        %780 = vmatpush1.msra.mxu0 %v774
        %781 = vmatprep.subr.mxu0 0.0
        %782 = vmatpush1.msra.mxu0 0.0
        %783 = vmatprep.subr.mxu0 0.0
        %784 = vmatpush1.msra.mxu0 0.0
        %785 = vmatprep.subr.mxu0 0.0
        %786 = vmatpush1.msra.mxu0 0.0
        %787 = vmatprep.subr.mxu0 0.0
        %788 = vmatpush1.msra.mxu0 0.0
        %789 = vmatprep.subr.mxu0 0.0
        %790 = vmatpush1.msra.mxu0 0.0
        %791 = vmatprep.subr.mxu0 0.0
        %792 = vmatpush1.msra.mxu0 0.0
        %793 = vmatprep.subr.mxu0 0.0
        %794 = vmatpush1.msra.mxu0 0.0
        %795 = vmatprep.subr.mxu0 0.0
        %796 = vmatpush1.msra.mxu0 0.0
        %797 = vmatprep.subr.mxu0 0.0
        %798 = vmatpush1.msra.mxu0 0.0
        %799 = vmatprep.subr.mxu0 0.0
        %800 = vmatpush1.msra.mxu0 0.0
        %801 = vmatprep.subr.mxu0 0.0
        %802 = vmatpush1.msra.mxu0 0.0
        %803 = vmatprep.subr.mxu0 0.0
        %804 = vmatpush1.msra.mxu0 0.0
        %805 = vmatprep.subr.mxu0 0.0
        %806 = vmatpush1.msra.mxu0 0.0
        %807 = vmatprep.subr.mxu0 0.0
        %808 = vmatpush1.msra.mxu0 0.0
        %809 = vmatprep.subr.mxu0 0.0
        %810 = vmatpush1.msra.mxu0 0.0
        %811 = vmatprep.subr.mxu0 0.0
        %812 = vmatpush1.msra.mxu0 0.0
        %813 = vmatprep.subr.mxu0 0.0
        %814 = vmatpush1.msra.mxu0 0.0
        %815 = vmatprep.subr.mxu0 0.0
        %816 = vmatpush1.msra.mxu0 0.0
        %817 = vmatprep.subr.mxu0 0.0
        %818 = vmatpush1.msra.mxu0 0.0
        %819 = vmatprep.subr.mxu0 0.0
        %820 = vmatpush1.msra.mxu0 0.0
        %821 = vmatprep.subr.mxu0 0.0
        %822 = vmatpush1.msra.mxu0 0.0
        %823 = vmatprep.subr.mxu0 0.0
        %824 = vmatpush1.msra.mxu0 0.0
        %825 = vmatprep.subr.mxu0 0.0
        %826 = vmatpush1.msra.mxu0 0.0
        %827 = vmatprep.subr.mxu0 0.0
        %828 = vmatpush1.msra.mxu0 0.0
        %829 = vmatprep.subr.mxu0 0.0
        %830 = vmatpush1.msra.mxu0 0.0
        %831 = vmatprep.subr.mxu0 0.0
        %832 = vmatpush1.msra.mxu0 0.0
        %833 = vmatprep.subr.mxu0 0.0
        %834 = vmatpush1.msra.mxu0 0.0
        %835 = vmatprep.subr.mxu0 0.0
        %836 = vmatpush1.msra.mxu0 0.0
        %837 = vmatprep.subr.mxu0 0.0
        %838 = vmatpush1.msra.mxu0 0.0
        %839 = vmatprep.subr.mxu0 0.0
        %840 = vmatpush1.msra.mxu0 0.0
        %841 = vmatprep.subr.mxu0 0.0
        %842 = vmatpush1.msra.mxu0 0.0
        %843 = vmatprep.mubr.f32.mxu0 0.0
        %844 = vmatmul.mubr.f32.gmra.mrb[0].mxu0 %v762
        %v845 = vpop.f32.mrb[0].mxu0
        %v846 = vadd.f32 0.0, %v845
        %v847 = vpop.f32.mrb[0].mxu0
        %v848 = vadd.f32 0.0, %v847
        %849 = vmatprep.mubr.f32.mxu0 0.0
        %850 = vmatmul.mubr.f32.gmra.mrb[0].mxu0 %v765
        %v851 = vpop.f32.mrb[0].mxu0
        %v852 = vadd.f32 0.0, %v851
        %v853 = vpop.f32.mrb[0].mxu0
        %v854 = vadd.f32 0.0, %v853
        %855 = vmatprep.mubr.f32.mxu0 0.0
        %856 = vmatmul.mubr.f32.gmra.mrb[0].mxu0 %v768
        %v857 = vpop.f32.mrb[0].mxu0
        %v858 = vadd.f32 0.0, %v857
        %v859 = vpop.f32.mrb[0].mxu0
        %v860 = vadd.f32 0.0, %v859
        %861 = vmatprep.mubr.f32.mxu0 0.0
        %862 = vmatmul.mubr.f32.gmra.mrb[0].mxu0 %v771
        %v863 = vpop.f32.mrb[0].mxu0
        %v864 = vadd.f32 0.0, %v863
        %v865 = vpop.f32.mrb[0].mxu0
        %v866 = vadd.f32 0.0, %v865
        %867 = vdwg.mxu0
        %v868 = vadd.f32 %v711, %v846
        %v869 = vadd.f32 %v713, %v848
        %v870 = vadd.f32 %v717, %v852
        %v871 = vadd.f32 %v719, %v854
        %v872 = vadd.f32 %v723, %v858
        %v873 = vadd.f32 %v725, %v860
        %v874 = vadd.f32 %v729, %v864
        %v875 = vadd.f32 %v731, %v866
        %876 = vrot.lane.b32.xlu0 %v400, 1
        %v877 = vpop.permute.xlu0 %876
        %879 = vrot.lane.b32.xlu0 %v399, 1
        %v880 = vpop.permute.xlu0 %879
        %vm881 = vcmask 7168
        %v882 = vsel %vm881, %v880, %v877
        %v885 = vsel %vm881, %v877, %v880
        %v887 = vlaneseq
        %v888 = vshrl.u32 %v887, 7
        %v889 = vsub.s32 0, %v888
        %v890 = vrot.slane %v405, %v889
        %v891 = vlaneseq
        %v892 = vshrl.u32 %v891, 7
        %v893 = vsub.s32 1, %v892
        %v894 = vrot.slane %v405, %v893
        %v897 = vmul.f32 %v885, %v890
        %v898 = vmul.f32 %v882, %v894
        %s899 = scalar_lea.vmem [#allocation3], 96
        %v900 = vld [vmem:[%s899] sm:$0xff]
        %v901 = vld [vmem:[%s899 + $0x8] sm:$0xff]
        %v902 = vld [vmem:[%s899 + $0x10] sm:$0xff]
        %v903 = vld [vmem:[%s899 + $0x18] sm:$0xff]
        %v905 = vsel %vm517, %v900, 0
        %v908 = vsel %vm517, %v901, 0
        %v911 = vsel %vm517, %v902, 0
        %v914 = vsel %vm517, %v903, 0
        %v917 = vsel %vm530, %v897, 0
        %v920 = vsel %vm530, %v898, 0
        %922 = vmatprep.subr.mxu0 %v920
        %923 = vmatpush1.msra.mxu0 %v917
        %924 = vmatprep.subr.mxu0 0.0
        %925 = vmatpush1.msra.mxu0 0.0
        %926 = vmatprep.subr.mxu0 0.0
        %927 = vmatpush1.msra.mxu0 0.0
        %928 = vmatprep.subr.mxu0 0.0
        %929 = vmatpush1.msra.mxu0 0.0
        %930 = vmatprep.subr.mxu0 0.0
        %931 = vmatpush1.msra.mxu0 0.0
        %932 = vmatprep.subr.mxu0 0.0
        %933 = vmatpush1.msra.mxu0 0.0
        %934 = vmatprep.subr.mxu0 0.0
        %935 = vmatpush1.msra.mxu0 0.0
        %936 = vmatprep.subr.mxu0 0.0
        %937 = vmatpush1.msra.mxu0 0.0
        %938 = vmatprep.subr.mxu0 0.0
        %939 = vmatpush1.msra.mxu0 0.0
        %940 = vmatprep.subr.mxu0 0.0
        %941 = vmatpush1.msra.mxu0 0.0
        %942 = vmatprep.subr.mxu0 0.0
        %943 = vmatpush1.msra.mxu0 0.0
        %944 = vmatprep.subr.mxu0 0.0
        %945 = vmatpush1.msra.mxu0 0.0
        %946 = vmatprep.subr.mxu0 0.0
        %947 = vmatpush1.msra.mxu0 0.0
        %948 = vmatprep.subr.mxu0 0.0
        %949 = vmatpush1.msra.mxu0 0.0
        %950 = vmatprep.subr.mxu0 0.0
        %951 = vmatpush1.msra.mxu0 0.0
        %952 = vmatprep.subr.mxu0 0.0
        %953 = vmatpush1.msra.mxu0 0.0
        %954 = vmatprep.subr.mxu0 0.0
        %955 = vmatpush1.msra.mxu0 0.0
        %956 = vmatprep.subr.mxu0 0.0
        %957 = vmatpush1.msra.mxu0 0.0
        %958 = vmatprep.subr.mxu0 0.0
        %959 = vmatpush1.msra.mxu0 0.0
        %960 = vmatprep.subr.mxu0 0.0
        %961 = vmatpush1.msra.mxu0 0.0
        %962 = vmatprep.subr.mxu0 0.0
        %963 = vmatpush1.msra.mxu0 0.0
        %964 = vmatprep.subr.mxu0 0.0
        %965 = vmatpush1.msra.mxu0 0.0
        %966 = vmatprep.subr.mxu0 0.0
        %967 = vmatpush1.msra.mxu0 0.0
        %968 = vmatprep.subr.mxu0 0.0
        %969 = vmatpush1.msra.mxu0 0.0
        %970 = vmatprep.subr.mxu0 0.0
        %971 = vmatpush1.msra.mxu0 0.0
        %972 = vmatprep.subr.mxu0 0.0
        %973 = vmatpush1.msra.mxu0 0.0
        %974 = vmatprep.subr.mxu0 0.0
        %975 = vmatpush1.msra.mxu0 0.0
        %976 = vmatprep.subr.mxu0 0.0
        %977 = vmatpush1.msra.mxu0 0.0
        %978 = vmatprep.subr.mxu0 0.0
        %979 = vmatpush1.msra.mxu0 0.0
        %980 = vmatprep.subr.mxu0 0.0
        %981 = vmatpush1.msra.mxu0 0.0
        %982 = vmatprep.subr.mxu0 0.0
        %983 = vmatpush1.msra.mxu0 0.0
        %984 = vmatprep.subr.mxu0 0.0
        %985 = vmatpush1.msra.mxu0 0.0
        %986 = vmatprep.mubr.f32.mxu0 0.0
        %987 = vmatmul.mubr.f32.gmra.mrb[0].mxu0 %v905
        %v988 = vpop.f32.mrb[0].mxu0
        %v989 = vadd.f32 0.0, %v988
        %v990 = vpop.f32.mrb[0].mxu0
        %v991 = vadd.f32 0.0, %v990
        %992 = vmatprep.mubr.f32.mxu0 0.0
        %993 = vmatmul.mubr.f32.gmra.mrb[0].mxu0 %v908
        %v994 = vpop.f32.mrb[0].mxu0
        %v995 = vadd.f32 0.0, %v994
        %v996 = vpop.f32.mrb[0].mxu0
        %v997 = vadd.f32 0.0, %v996
        %998 = vmatprep.mubr.f32.mxu0 0.0
        %999 = vmatmul.mubr.f32.gmra.mrb[0].mxu0 %v911
        %v1000 = vpop.f32.mrb[0].mxu0
        %v1001 = vadd.f32 0.0, %v1000
        %v1002 = vpop.f32.mrb[0].mxu0
        %v1003 = vadd.f32 0.0, %v1002
        %1004 = vmatprep.mubr.f32.mxu0 0.0
        %1005 = vmatmul.mubr.f32.gmra.mrb[0].mxu0 %v914
        %v1006 = vpop.f32.mrb[0].mxu0
        %v1007 = vadd.f32 0.0, %v1006
        %v1008 = vpop.f32.mrb[0].mxu0
        %v1009 = vadd.f32 0.0, %v1008
        %1010 = vdwg.mxu0
        %v1011 = vadd.f32 %v868, %v989
        %v1012 = vadd.f32 %v869, %v991
        %v1013 = vadd.f32 %v870, %v995
        %v1014 = vadd.f32 %v871, %v997
        %v1015 = vadd.f32 %v872, %v1001
        %v1016 = vadd.f32 %v873, %v1003
        %v1017 = vadd.f32 %v874, %v1007
        %v1018 = vadd.f32 %v875, %v1009
        %s1019 = scalar_lea.vmem [#allocation3], 128
        %v1020 = vld [vmem:[%s1019] sm:$0xff]
        %v1021 = vld [vmem:[%s1019 + $0x8] sm:$0xff]
        %v1022 = vld [vmem:[%s1019 + $0x10] sm:$0xff]
        %v1023 = vld [vmem:[%s1019 + $0x18] sm:$0xff]
        %v1025 = vsel %vm517, %v1020, 0
        %v1028 = vsel %vm517, %v1021, 0
        %v1031 = vsel %vm517, %v1022, 0
        %v1034 = vsel %vm517, %v1023, 0
        %v1036 = vsel %vm530, %v399, 0
        %v1038 = vsel %vm530, %v400, 0
        %1040 = vmatprep.subr.mxu0 %v1038
        %1041 = vmatpush1.msra.mxu0 %v1036
        %1042 = vmatprep.subr.mxu0 0.0
        %1043 = vmatpush1.msra.mxu0 0.0
        %1044 = vmatprep.subr.mxu0 0.0
        %1045 = vmatpush1.msra.mxu0 0.0
        %1046 = vmatprep.subr.mxu0 0.0
        %1047 = vmatpush1.msra.mxu0 0.0
        %1048 = vmatprep.subr.mxu0 0.0
        %1049 = vmatpush1.msra.mxu0 0.0
        %1050 = vmatprep.subr.mxu0 0.0
        %1051 = vmatpush1.msra.mxu0 0.0
        %1052 = vmatprep.subr.mxu0 0.0
        %1053 = vmatpush1.msra.mxu0 0.0
        %1054 = vmatprep.subr.mxu0 0.0
        %1055 = vmatpush1.msra.mxu0 0.0
        %1056 = vmatprep.subr.mxu0 0.0
        %1057 = vmatpush1.msra.mxu0 0.0
        %1058 = vmatprep.subr.mxu0 0.0
        %1059 = vmatpush1.msra.mxu0 0.0
        %1060 = vmatprep.subr.mxu0 0.0
        %1061 = vmatpush1.msra.mxu0 0.0
        %1062 = vmatprep.subr.mxu0 0.0
        %1063 = vmatpush1.msra.mxu0 0.0
        %1064 = vmatprep.subr.mxu0 0.0
        %1065 = vmatpush1.msra.mxu0 0.0
        %1066 = vmatprep.subr.mxu0 0.0
        %1067 = vmatpush1.msra.mxu0 0.0
        %1068 = vmatprep.subr.mxu0 0.0
        %1069 = vmatpush1.msra.mxu0 0.0
        %1070 = vmatprep.subr.mxu0 0.0
        %1071 = vmatpush1.msra.mxu0 0.0
        %1072 = vmatprep.subr.mxu0 0.0
        %1073 = vmatpush1.msra.mxu0 0.0
        %1074 = vmatprep.subr.mxu0 0.0
        %1075 = vmatpush1.msra.mxu0 0.0
        %1076 = vmatprep.subr.mxu0 0.0
        %1077 = vmatpush1.msra.mxu0 0.0
        %1078 = vmatprep.subr.mxu0 0.0
        %1079 = vmatpush1.msra.mxu0 0.0
        %1080 = vmatprep.subr.mxu0 0.0
        %1081 = vmatpush1.msra.mxu0 0.0
        %1082 = vmatprep.subr.mxu0 0.0
        %1083 = vmatpush1.msra.mxu0 0.0
        %1084 = vmatprep.subr.mxu0 0.0
        %1085 = vmatpush1.msra.mxu0 0.0
        %1086 = vmatprep.subr.mxu0 0.0
        %1087 = vmatpush1.msra.mxu0 0.0
        %1088 = vmatprep.subr.mxu0 0.0
        %1089 = vmatpush1.msra.mxu0 0.0
        %1090 = vmatprep.subr.mxu0 0.0
        %1091 = vmatpush1.msra.mxu0 0.0
        %1092 = vmatprep.subr.mxu0 0.0
        %1093 = vmatpush1.msra.mxu0 0.0
        %1094 = vmatprep.subr.mxu0 0.0
        %1095 = vmatpush1.msra.mxu0 0.0
        %1096 = vmatprep.subr.mxu0 0.0
        %1097 = vmatpush1.msra.mxu0 0.0
        %1098 = vmatprep.subr.mxu0 0.0
        %1099 = vmatpush1.msra.mxu0 0.0
        %1100 = vmatprep.subr.mxu0 0.0
        %1101 = vmatpush1.msra.mxu0 0.0
        %1102 = vmatprep.subr.mxu0 0.0
        %1103 = vmatpush1.msra.mxu0 0.0
        %1104 = vmatprep.mubr.f32.mxu0 0.0
        %1105 = vmatmul.mubr.f32.gmra.mrb[0].mxu0 %v1025
        %v1106 = vpop.f32.mrb[0].mxu0
        %v1107 = vadd.f32 0.0, %v1106
        %v1108 = vpop.f32.mrb[0].mxu0
        %v1109 = vadd.f32 0.0, %v1108
        %1110 = vmatprep.mubr.f32.mxu0 0.0
        %1111 = vmatmul.mubr.f32.gmra.mrb[0].mxu0 %v1028
        %v1112 = vpop.f32.mrb[0].mxu0
        %v1113 = vadd.f32 0.0, %v1112
        %v1114 = vpop.f32.mrb[0].mxu0
        %v1115 = vadd.f32 0.0, %v1114
        %1116 = vmatprep.mubr.f32.mxu0 0.0
        %1117 = vmatmul.mubr.f32.gmra.mrb[0].mxu0 %v1031
        %v1118 = vpop.f32.mrb[0].mxu0
        %v1119 = vadd.f32 0.0, %v1118
        %v1120 = vpop.f32.mrb[0].mxu0
        %v1121 = vadd.f32 0.0, %v1120
        %1122 = vmatprep.mubr.f32.mxu0 0.0
        %1123 = vmatmul.mubr.f32.gmra.mrb[0].mxu0 %v1034
        %v1124 = vpop.f32.mrb[0].mxu0
        %v1125 = vadd.f32 0.0, %v1124
        %v1126 = vpop.f32.mrb[0].mxu0
        %v1127 = vadd.f32 0.0, %v1126
        %1128 = vdwg.mxu0
        %v1129 = vadd.f32 %v1011, %v1107
        %v1130 = vadd.f32 %v1012, %v1109
        %v1131 = vadd.f32 %v1013, %v1113
        %v1132 = vadd.f32 %v1014, %v1115
        %v1133 = vadd.f32 %v1015, %v1119
        %v1134 = vadd.f32 %v1016, %v1121
        %v1135 = vadd.f32 %v1017, %v1125
        %v1136 = vadd.f32 %v1018, %v1127
        %1137 = vrot.lane.b32.xlu0 %v399, 127
        %v1138 = vpop.permute.xlu0 %1137
        %1139 = vrot.lane.b32.xlu0 %v400, 127
        %v1140 = vpop.permute.xlu0 %1139
        %vm1141 = vcmask 1039360
        %v1142 = vsel %vm1141, %v1138, %v1140
        %v1146 = vsel %vm1141, %v1140, %v1138
        %v1148 = vlaneseq
        %v1149 = vshrl.u32 %v1148, 7
        %v1150 = vsub.s32 0, %v1149
        %v1151 = vrot.slane %v410, %v1150
        %v1152 = vlaneseq
        %v1153 = vshrl.u32 %v1152, 7
        %v1154 = vsub.s32 1, %v1153
        %v1155 = vrot.slane %v410, %v1154
        %v1158 = vmul.f32 %v1142, %v1151
        %v1159 = vmul.f32 %v1146, %v1155
        %s1160 = scalar_lea.vmem [#allocation3], 160
        %v1161 = vld [vmem:[%s1160] sm:$0xff]
        %v1162 = vld [vmem:[%s1160 + $0x8] sm:$0xff]
        %v1163 = vld [vmem:[%s1160 + $0x10] sm:$0xff]
        %v1164 = vld [vmem:[%s1160 + $0x18] sm:$0xff]
        %v1166 = vsel %vm517, %v1161, 0
        %v1169 = vsel %vm517, %v1162, 0
        %v1172 = vsel %vm517, %v1163, 0
        %v1175 = vsel %vm517, %v1164, 0
        %v1178 = vsel %vm530, %v1158, 0
        %v1181 = vsel %vm530, %v1159, 0
        %1183 = vmatprep.subr.mxu0 %v1181
        %1184 = vmatpush1.msra.mxu0 %v1178
        %1185 = vmatprep.subr.mxu0 0.0
        %1186 = vmatpush1.msra.mxu0 0.0
        %1187 = vmatprep.subr.mxu0 0.0
        %1188 = vmatpush1.msra.mxu0 0.0
        %1189 = vmatprep.subr.mxu0 0.0
        %1190 = vmatpush1.msra.mxu0 0.0
        %1191 = vmatprep.subr.mxu0 0.0
        %1192 = vmatpush1.msra.mxu0 0.0
        %1193 = vmatprep.subr.mxu0 0.0
        %1194 = vmatpush1.msra.mxu0 0.0
        %1195 = vmatprep.subr.mxu0 0.0
        %1196 = vmatpush1.msra.mxu0 0.0
        %1197 = vmatprep.subr.mxu0 0.0
        %1198 = vmatpush1.msra.mxu0 0.0
        %1199 = vmatprep.subr.mxu0 0.0
        %1200 = vmatpush1.msra.mxu0 0.0
        %1201 = vmatprep.subr.mxu0 0.0
        %1202 = vmatpush1.msra.mxu0 0.0
        %1203 = vmatprep.subr.mxu0 0.0
        %1204 = vmatpush1.msra.mxu0 0.0
        %1205 = vmatprep.subr.mxu0 0.0
        %1206 = vmatpush1.msra.mxu0 0.0
        %1207 = vmatprep.subr.mxu0 0.0
        %1208 = vmatpush1.msra.mxu0 0.0
        %1209 = vmatprep.subr.mxu0 0.0
        %1210 = vmatpush1.msra.mxu0 0.0
        %1211 = vmatprep.subr.mxu0 0.0
        %1212 = vmatpush1.msra.mxu0 0.0
        %1213 = vmatprep.subr.mxu0 0.0
        %1214 = vmatpush1.msra.mxu0 0.0
        %1215 = vmatprep.subr.mxu0 0.0
        %1216 = vmatpush1.msra.mxu0 0.0
        %1217 = vmatprep.subr.mxu0 0.0
        %1218 = vmatpush1.msra.mxu0 0.0
        %1219 = vmatprep.subr.mxu0 0.0
        %1220 = vmatpush1.msra.mxu0 0.0
        %1221 = vmatprep.subr.mxu0 0.0
        %1222 = vmatpush1.msra.mxu0 0.0
        %1223 = vmatprep.subr.mxu0 0.0
        %1224 = vmatpush1.msra.mxu0 0.0
        %1225 = vmatprep.subr.mxu0 0.0
        %1226 = vmatpush1.msra.mxu0 0.0
        %1227 = vmatprep.subr.mxu0 0.0
        %1228 = vmatpush1.msra.mxu0 0.0
        %1229 = vmatprep.subr.mxu0 0.0
        %1230 = vmatpush1.msra.mxu0 0.0
        %1231 = vmatprep.subr.mxu0 0.0
        %1232 = vmatpush1.msra.mxu0 0.0
        %1233 = vmatprep.subr.mxu0 0.0
        %1234 = vmatpush1.msra.mxu0 0.0
        %1235 = vmatprep.subr.mxu0 0.0
        %1236 = vmatpush1.msra.mxu0 0.0
        %1237 = vmatprep.subr.mxu0 0.0
        %1238 = vmatpush1.msra.mxu0 0.0
        %1239 = vmatprep.subr.mxu0 0.0
        %1240 = vmatpush1.msra.mxu0 0.0
        %1241 = vmatprep.subr.mxu0 0.0
        %1242 = vmatpush1.msra.mxu0 0.0
        %1243 = vmatprep.subr.mxu0 0.0
        %1244 = vmatpush1.msra.mxu0 0.0
        %1245 = vmatprep.subr.mxu0 0.0
        %1246 = vmatpush1.msra.mxu0 0.0
        %1247 = vmatprep.mubr.f32.mxu0 0.0
        %1248 = vmatmul.mubr.f32.gmra.mrb[0].mxu0 %v1166
        %v1249 = vpop.f32.mrb[0].mxu0
        %v1250 = vadd.f32 0.0, %v1249
        %v1251 = vpop.f32.mrb[0].mxu0
        %v1252 = vadd.f32 0.0, %v1251
        %1253 = vmatprep.mubr.f32.mxu0 0.0
        %1254 = vmatmul.mubr.f32.gmra.mrb[0].mxu0 %v1169
        %v1255 = vpop.f32.mrb[0].mxu0
        %v1256 = vadd.f32 0.0, %v1255
        %v1257 = vpop.f32.mrb[0].mxu0
        %v1258 = vadd.f32 0.0, %v1257
        %1259 = vmatprep.mubr.f32.mxu0 0.0
        %1260 = vmatmul.mubr.f32.gmra.mrb[0].mxu0 %v1172
        %v1261 = vpop.f32.mrb[0].mxu0
        %v1262 = vadd.f32 0.0, %v1261
        %v1263 = vpop.f32.mrb[0].mxu0
        %v1264 = vadd.f32 0.0, %v1263
        %1265 = vmatprep.mubr.f32.mxu0 0.0
        %1266 = vmatmul.mubr.f32.gmra.mrb[0].mxu0 %v1175
        %v1267 = vpop.f32.mrb[0].mxu0
        %v1268 = vadd.f32 0.0, %v1267
        %v1269 = vpop.f32.mrb[0].mxu0
        %v1270 = vadd.f32 0.0, %v1269
        %1271 = vdwg.mxu0
        %v1272 = vadd.f32 %v1129, %v1250
        %v1273 = vadd.f32 %v1130, %v1252
        %v1274 = vadd.f32 %v1131, %v1256
        %v1275 = vadd.f32 %v1132, %v1258
        %v1276 = vadd.f32 %v1133, %v1262
        %v1277 = vadd.f32 %v1134, %v1264
        %v1278 = vadd.f32 %v1135, %v1268
        %v1279 = vadd.f32 %v1136, %v1270
        %1280 = vrot.lane.b32.xlu0 %v399, 113
        %v1281 = vpop.permute.xlu0 %1280
        %1282 = vrot.lane.b32.xlu0 %v400, 113
        %v1283 = vpop.permute.xlu0 %1282
        %vm1284 = vcmask 924672
        %v1285 = vsel %vm1284, %v1281, %v1283
        %v1289 = vsel %vm1284, %v1283, %v1281
        %v1291 = vlaneseq
        %v1292 = vshrl.u32 %v1291, 7
        %v1293 = vsub.s32 0, %v1292
        %v1294 = vrot.slane %v469, %v1293
        %v1295 = vlaneseq
        %v1296 = vshrl.u32 %v1295, 7
        %v1297 = vsub.s32 1, %v1296
        %v1298 = vrot.slane %v469, %v1297
        %v1301 = vmul.f32 %v1285, %v1294
        %v1302 = vmul.f32 %v1289, %v1298
        %s1303 = scalar_lea.vmem [#allocation3], 192
        %v1304 = vld [vmem:[%s1303] sm:$0xff]
        %v1305 = vld [vmem:[%s1303 + $0x8] sm:$0xff]
        %v1306 = vld [vmem:[%s1303 + $0x10] sm:$0xff]
        %v1307 = vld [vmem:[%s1303 + $0x18] sm:$0xff]
        %v1309 = vsel %vm517, %v1304, 0
        %v1312 = vsel %vm517, %v1305, 0
        %v1315 = vsel %vm517, %v1306, 0
        %v1318 = vsel %vm517, %v1307, 0
        %v1321 = vsel %vm530, %v1301, 0
        %v1324 = vsel %vm530, %v1302, 0
        %1326 = vmatprep.subr.mxu0 %v1324
        %1327 = vmatpush1.msra.mxu0 %v1321
        %1328 = vmatprep.subr.mxu0 0.0
        %1329 = vmatpush1.msra.mxu0 0.0
        %1330 = vmatprep.subr.mxu0 0.0
        %1331 = vmatpush1.msra.mxu0 0.0
        %1332 = vmatprep.subr.mxu0 0.0
        %1333 = vmatpush1.msra.mxu0 0.0
        %1334 = vmatprep.subr.mxu0 0.0
        %1335 = vmatpush1.msra.mxu0 0.0
        %1336 = vmatprep.subr.mxu0 0.0
        %1337 = vmatpush1.msra.mxu0 0.0
        %1338 = vmatprep.subr.mxu0 0.0
        %1339 = vmatpush1.msra.mxu0 0.0
        %1340 = vmatprep.subr.mxu0 0.0
        %1341 = vmatpush1.msra.mxu0 0.0
        %1342 = vmatprep.subr.mxu0 0.0
        %1343 = vmatpush1.msra.mxu0 0.0
        %1344 = vmatprep.subr.mxu0 0.0
        %1345 = vmatpush1.msra.mxu0 0.0
        %1346 = vmatprep.subr.mxu0 0.0
        %1347 = vmatpush1.msra.mxu0 0.0
        %1348 = vmatprep.subr.mxu0 0.0
        %1349 = vmatpush1.msra.mxu0 0.0
        %1350 = vmatprep.subr.mxu0 0.0
        %1351 = vmatpush1.msra.mxu0 0.0
        %1352 = vmatprep.subr.mxu0 0.0
        %1353 = vmatpush1.msra.mxu0 0.0
        %1354 = vmatprep.subr.mxu0 0.0
        %1355 = vmatpush1.msra.mxu0 0.0
        %1356 = vmatprep.subr.mxu0 0.0
        %1357 = vmatpush1.msra.mxu0 0.0
        %1358 = vmatprep.subr.mxu0 0.0
        %1359 = vmatpush1.msra.mxu0 0.0
        %1360 = vmatprep.subr.mxu0 0.0
        %1361 = vmatpush1.msra.mxu0 0.0
        %1362 = vmatprep.subr.mxu0 0.0
        %1363 = vmatpush1.msra.mxu0 0.0
        %1364 = vmatprep.subr.mxu0 0.0
        %1365 = vmatpush1.msra.mxu0 0.0
        %1366 = vmatprep.subr.mxu0 0.0
        %1367 = vmatpush1.msra.mxu0 0.0
        %1368 = vmatprep.subr.mxu0 0.0
        %1369 = vmatpush1.msra.mxu0 0.0
        %1370 = vmatprep.subr.mxu0 0.0
        %1371 = vmatpush1.msra.mxu0 0.0
        %1372 = vmatprep.subr.mxu0 0.0
        %1373 = vmatpush1.msra.mxu0 0.0
        %1374 = vmatprep.subr.mxu0 0.0
        %1375 = vmatpush1.msra.mxu0 0.0
        %1376 = vmatprep.subr.mxu0 0.0
        %1377 = vmatpush1.msra.mxu0 0.0
        %1378 = vmatprep.subr.mxu0 0.0
        %1379 = vmatpush1.msra.mxu0 0.0
        %1380 = vmatprep.subr.mxu0 0.0
        %1381 = vmatpush1.msra.mxu0 0.0
        %1382 = vmatprep.subr.mxu0 0.0
        %1383 = vmatpush1.msra.mxu0 0.0
        %1384 = vmatprep.subr.mxu0 0.0
        %1385 = vmatpush1.msra.mxu0 0.0
        %1386 = vmatprep.subr.mxu0 0.0
        %1387 = vmatpush1.msra.mxu0 0.0
        %1388 = vmatprep.subr.mxu0 0.0
        %1389 = vmatpush1.msra.mxu0 0.0
        %1390 = vmatprep.mubr.f32.mxu0 0.0
        %1391 = vmatmul.mubr.f32.gmra.mrb[0].mxu0 %v1309
        %v1392 = vpop.f32.mrb[0].mxu0
        %v1393 = vadd.f32 0.0, %v1392
        %v1394 = vpop.f32.mrb[0].mxu0
        %v1395 = vadd.f32 0.0, %v1394
        %1396 = vmatprep.mubr.f32.mxu0 0.0
        %1397 = vmatmul.mubr.f32.gmra.mrb[0].mxu0 %v1312
        %v1398 = vpop.f32.mrb[0].mxu0
        %v1399 = vadd.f32 0.0, %v1398
        %v1400 = vpop.f32.mrb[0].mxu0
        %v1401 = vadd.f32 0.0, %v1400
        %1402 = vmatprep.mubr.f32.mxu0 0.0
        %1403 = vmatmul.mubr.f32.gmra.mrb[0].mxu0 %v1315
        %v1404 = vpop.f32.mrb[0].mxu0
        %v1405 = vadd.f32 0.0, %v1404
        %v1406 = vpop.f32.mrb[0].mxu0
        %v1407 = vadd.f32 0.0, %v1406
        %1408 = vmatprep.mubr.f32.mxu0 0.0
        %1409 = vmatmul.mubr.f32.gmra.mrb[0].mxu0 %v1318
        %v1410 = vpop.f32.mrb[0].mxu0
        %v1411 = vadd.f32 0.0, %v1410
        %v1412 = vpop.f32.mrb[0].mxu0
        %v1413 = vadd.f32 0.0, %v1412
        %1414 = vdwg.mxu0
        %v1415 = vadd.f32 %v1272, %v1393
        %v1416 = vadd.f32 %v1273, %v1395
        %v1417 = vadd.f32 %v1274, %v1399
        %v1418 = vadd.f32 %v1275, %v1401
        %v1419 = vadd.f32 %v1276, %v1405
        %v1420 = vadd.f32 %v1277, %v1407
        %v1421 = vadd.f32 %v1278, %v1411
        %v1422 = vadd.f32 %v1279, %v1413
        %1423 = vrot.lane.b32.xlu0 %v399, 112
        %v1424 = vpop.permute.xlu0 %1423
        %1425 = vrot.lane.b32.xlu0 %v400, 112
        %v1426 = vpop.permute.xlu0 %1425
        %vm1427 = vcmask 916480
        %v1428 = vsel %vm1427, %v1424, %v1426
        %v1432 = vsel %vm1427, %v1426, %v1424
        %v1433 = vmul.f32 %v1428, %v429
        %v1434 = vmul.f32 %v1432, %v430
        %s1435 = scalar_lea.vmem [#allocation3], 224
        %v1436 = vld [vmem:[%s1435] sm:$0xff]
        %v1437 = vld [vmem:[%s1435 + $0x8] sm:$0xff]
        %v1438 = vld [vmem:[%s1435 + $0x10] sm:$0xff]
        %v1439 = vld [vmem:[%s1435 + $0x18] sm:$0xff]
        %v1441 = vsel %vm517, %v1436, 0
        %v1444 = vsel %vm517, %v1437, 0
        %v1447 = vsel %vm517, %v1438, 0
        %v1450 = vsel %vm517, %v1439, 0
        %v1453 = vsel %vm530, %v1433, 0
        %v1456 = vsel %vm530, %v1434, 0
        %1458 = vmatprep.subr.mxu0 %v1456
        %1459 = vmatpush1.msra.mxu0 %v1453
        %1460 = vmatprep.subr.mxu0 0.0
        %1461 = vmatpush1.msra.mxu0 0.0
        %1462 = vmatprep.subr.mxu0 0.0
        %1463 = vmatpush1.msra.mxu0 0.0
        %1464 = vmatprep.subr.mxu0 0.0
        %1465 = vmatpush1.msra.mxu0 0.0
        %1466 = vmatprep.subr.mxu0 0.0
        %1467 = vmatpush1.msra.mxu0 0.0
        %1468 = vmatprep.subr.mxu0 0.0
        %1469 = vmatpush1.msra.mxu0 0.0
        %1470 = vmatprep.subr.mxu0 0.0
        %1471 = vmatpush1.msra.mxu0 0.0
        %1472 = vmatprep.subr.mxu0 0.0
        %1473 = vmatpush1.msra.mxu0 0.0
        %1474 = vmatprep.subr.mxu0 0.0
        %1475 = vmatpush1.msra.mxu0 0.0
        %1476 = vmatprep.subr.mxu0 0.0
        %1477 = vmatpush1.msra.mxu0 0.0
        %1478 = vmatprep.subr.mxu0 0.0
        %1479 = vmatpush1.msra.mxu0 0.0
        %1480 = vmatprep.subr.mxu0 0.0
        %1481 = vmatpush1.msra.mxu0 0.0
        %1482 = vmatprep.subr.mxu0 0.0
        %1483 = vmatpush1.msra.mxu0 0.0
        %1484 = vmatprep.subr.mxu0 0.0
        %1485 = vmatpush1.msra.mxu0 0.0
        %1486 = vmatprep.subr.mxu0 0.0
        %1487 = vmatpush1.msra.mxu0 0.0
        %1488 = vmatprep.subr.mxu0 0.0
        %1489 = vmatpush1.msra.mxu0 0.0
        %1490 = vmatprep.subr.mxu0 0.0
        %1491 = vmatpush1.msra.mxu0 0.0
        %1492 = vmatprep.subr.mxu0 0.0
        %1493 = vmatpush1.msra.mxu0 0.0
        %1494 = vmatprep.subr.mxu0 0.0
        %1495 = vmatpush1.msra.mxu0 0.0
        %1496 = vmatprep.subr.mxu0 0.0
        %1497 = vmatpush1.msra.mxu0 0.0
        %1498 = vmatprep.subr.mxu0 0.0
        %1499 = vmatpush1.msra.mxu0 0.0
        %1500 = vmatprep.subr.mxu0 0.0
        %1501 = vmatpush1.msra.mxu0 0.0
        %1502 = vmatprep.subr.mxu0 0.0
        %1503 = vmatpush1.msra.mxu0 0.0
        %1504 = vmatprep.subr.mxu0 0.0
        %1505 = vmatpush1.msra.mxu0 0.0
        %1506 = vmatprep.subr.mxu0 0.0
        %1507 = vmatpush1.msra.mxu0 0.0
        %1508 = vmatprep.subr.mxu0 0.0
        %1509 = vmatpush1.msra.mxu0 0.0
        %1510 = vmatprep.subr.mxu0 0.0
        %1511 = vmatpush1.msra.mxu0 0.0
        %1512 = vmatprep.subr.mxu0 0.0
        %1513 = vmatpush1.msra.mxu0 0.0
        %1514 = vmatprep.subr.mxu0 0.0
        %1515 = vmatpush1.msra.mxu0 0.0
        %1516 = vmatprep.subr.mxu0 0.0
        %1517 = vmatpush1.msra.mxu0 0.0
        %1518 = vmatprep.subr.mxu0 0.0
        %1519 = vmatpush1.msra.mxu0 0.0
        %1520 = vmatprep.subr.mxu0 0.0
        %1521 = vmatpush1.msra.mxu0 0.0
        %1522 = vmatprep.mubr.f32.mxu0 0.0
        %1523 = vmatmul.mubr.f32.gmra.mrb[0].mxu0 %v1441
        %v1524 = vpop.f32.mrb[0].mxu0
        %v1525 = vadd.f32 0.0, %v1524
        %v1526 = vpop.f32.mrb[0].mxu0
        %v1527 = vadd.f32 0.0, %v1526
        %1528 = vmatprep.mubr.f32.mxu0 0.0
        %1529 = vmatmul.mubr.f32.gmra.mrb[0].mxu0 %v1444
        %v1530 = vpop.f32.mrb[0].mxu0
        %v1531 = vadd.f32 0.0, %v1530
        %v1532 = vpop.f32.mrb[0].mxu0
        %v1533 = vadd.f32 0.0, %v1532
        %1534 = vmatprep.mubr.f32.mxu0 0.0
        %1535 = vmatmul.mubr.f32.gmra.mrb[0].mxu0 %v1447
        %v1536 = vpop.f32.mrb[0].mxu0
        %v1537 = vadd.f32 0.0, %v1536
        %v1538 = vpop.f32.mrb[0].mxu0
        %v1539 = vadd.f32 0.0, %v1538
        %1540 = vmatprep.mubr.f32.mxu0 0.0
        %1541 = vmatmul.mubr.f32.gmra.mrb[0].mxu0 %v1450
        %v1542 = vpop.f32.mrb[0].mxu0
        %v1543 = vadd.f32 0.0, %v1542
        %v1544 = vpop.f32.mrb[0].mxu0
        %v1545 = vadd.f32 0.0, %v1544
        %1546 = vdwg.mxu0
        %v1547 = vadd.f32 %v1415, %v1525
        %v1548 = vadd.f32 %v1416, %v1527
        %v1549 = vadd.f32 %v1417, %v1531
        %v1550 = vadd.f32 %v1418, %v1533
        %v1551 = vadd.f32 %v1419, %v1537
        %v1552 = vadd.f32 %v1420, %v1539
        %v1553 = vadd.f32 %v1421, %v1543
        %v1554 = vadd.f32 %v1422, %v1545
        %1555 = vrot.lane.b32.xlu0 %v399, 111
        %v1556 = vpop.permute.xlu0 %1555
        %1557 = vrot.lane.b32.xlu0 %v400, 111
        %v1558 = vpop.permute.xlu0 %1557
        %vm1559 = vcmask 908288
        %v1560 = vsel %vm1559, %v1556, %v1558
        %v1564 = vsel %vm1559, %v1558, %v1556
        %v1566 = vlaneseq
        %v1567 = vshrl.u32 %v1566, 7
        %v1568 = vsub.s32 0, %v1567
        %v1569 = vrot.slane %v470, %v1568
        %v1570 = vlaneseq
        %v1571 = vshrl.u32 %v1570, 7
        %v1572 = vsub.s32 1, %v1571
        %v1573 = vrot.slane %v470, %v1572
        %v1576 = vmul.f32 %v1560, %v1569
        %v1577 = vmul.f32 %v1564, %v1573
        %s1578 = scalar_lea.vmem [#allocation3], 256
        %v1579 = vld [vmem:[%s1578] sm:$0xff]
        %v1580 = vld [vmem:[%s1578 + $0x8] sm:$0xff]
        %v1581 = vld [vmem:[%s1578 + $0x10] sm:$0xff]
        %v1582 = vld [vmem:[%s1578 + $0x18] sm:$0xff]
        %v1584 = vsel %vm517, %v1579, 0
        %v1587 = vsel %vm517, %v1580, 0
        %v1590 = vsel %vm517, %v1581, 0
        %v1593 = vsel %vm517, %v1582, 0
        %v1596 = vsel %vm530, %v1576, 0
        %v1599 = vsel %vm530, %v1577, 0
        %1601 = vmatprep.subr.mxu0 %v1599
        %1602 = vmatpush1.msra.mxu0 %v1596
        %1603 = vmatprep.subr.mxu0 0.0
        %1604 = vmatpush1.msra.mxu0 0.0
        %1605 = vmatprep.subr.mxu0 0.0
        %1606 = vmatpush1.msra.mxu0 0.0
        %1607 = vmatprep.subr.mxu0 0.0
        %1608 = vmatpush1.msra.mxu0 0.0
        %1609 = vmatprep.subr.mxu0 0.0
        %1610 = vmatpush1.msra.mxu0 0.0
        %1611 = vmatprep.subr.mxu0 0.0
        %1612 = vmatpush1.msra.mxu0 0.0
        %1613 = vmatprep.subr.mxu0 0.0
        %1614 = vmatpush1.msra.mxu0 0.0
        %1615 = vmatprep.subr.mxu0 0.0
        %1616 = vmatpush1.msra.mxu0 0.0
        %1617 = vmatprep.subr.mxu0 0.0
        %1618 = vmatpush1.msra.mxu0 0.0
        %1619 = vmatprep.subr.mxu0 0.0
        %1620 = vmatpush1.msra.mxu0 0.0
        %1621 = vmatprep.subr.mxu0 0.0
        %1622 = vmatpush1.msra.mxu0 0.0
        %1623 = vmatprep.subr.mxu0 0.0
        %1624 = vmatpush1.msra.mxu0 0.0
        %1625 = vmatprep.subr.mxu0 0.0
        %1626 = vmatpush1.msra.mxu0 0.0
        %1627 = vmatprep.subr.mxu0 0.0
        %1628 = vmatpush1.msra.mxu0 0.0
        %1629 = vmatprep.subr.mxu0 0.0
        %1630 = vmatpush1.msra.mxu0 0.0
        %1631 = vmatprep.subr.mxu0 0.0
        %1632 = vmatpush1.msra.mxu0 0.0
        %1633 = vmatprep.subr.mxu0 0.0
        %1634 = vmatpush1.msra.mxu0 0.0
        %1635 = vmatprep.subr.mxu0 0.0
        %1636 = vmatpush1.msra.mxu0 0.0
        %1637 = vmatprep.subr.mxu0 0.0
        %1638 = vmatpush1.msra.mxu0 0.0
        %1639 = vmatprep.subr.mxu0 0.0
        %1640 = vmatpush1.msra.mxu0 0.0
        %1641 = vmatprep.subr.mxu0 0.0
        %1642 = vmatpush1.msra.mxu0 0.0
        %1643 = vmatprep.subr.mxu0 0.0
        %1644 = vmatpush1.msra.mxu0 0.0
        %1645 = vmatprep.subr.mxu0 0.0
        %1646 = vmatpush1.msra.mxu0 0.0
        %1647 = vmatprep.subr.mxu0 0.0
        %1648 = vmatpush1.msra.mxu0 0.0
        %1649 = vmatprep.subr.mxu0 0.0
        %1650 = vmatpush1.msra.mxu0 0.0
        %1651 = vmatprep.subr.mxu0 0.0
        %1652 = vmatpush1.msra.mxu0 0.0
        %1653 = vmatprep.subr.mxu0 0.0
        %1654 = vmatpush1.msra.mxu0 0.0
        %1655 = vmatprep.subr.mxu0 0.0
        %1656 = vmatpush1.msra.mxu0 0.0
        %1657 = vmatprep.subr.mxu0 0.0
        %1658 = vmatpush1.msra.mxu0 0.0
        %1659 = vmatprep.subr.mxu0 0.0
        %1660 = vmatpush1.msra.mxu0 0.0
        %1661 = vmatprep.subr.mxu0 0.0
        %1662 = vmatpush1.msra.mxu0 0.0
        %1663 = vmatprep.subr.mxu0 0.0
        %1664 = vmatpush1.msra.mxu0 0.0
        %1665 = vmatprep.mubr.f32.mxu0 0.0
        %1666 = vmatmul.mubr.f32.gmra.mrb[0].mxu0 %v1584
        %v1667 = vpop.f32.mrb[0].mxu0
        %v1668 = vadd.f32 0.0, %v1667
        %v1669 = vpop.f32.mrb[0].mxu0
        %v1670 = vadd.f32 0.0, %v1669
        %1671 = vmatprep.mubr.f32.mxu0 0.0
        %1672 = vmatmul.mubr.f32.gmra.mrb[0].mxu0 %v1587
        %v1673 = vpop.f32.mrb[0].mxu0
        %v1674 = vadd.f32 0.0, %v1673
        %v1675 = vpop.f32.mrb[0].mxu0
        %v1676 = vadd.f32 0.0, %v1675
        %1677 = vmatprep.mubr.f32.mxu0 0.0
        %1678 = vmatmul.mubr.f32.gmra.mrb[0].mxu0 %v1590
        %v1679 = vpop.f32.mrb[0].mxu0
        %v1680 = vadd.f32 0.0, %v1679
        %v1681 = vpop.f32.mrb[0].mxu0
        %v1682 = vadd.f32 0.0, %v1681
        %1683 = vmatprep.mubr.f32.mxu0 0.0
        %1684 = vmatmul.mubr.f32.gmra.mrb[0].mxu0 %v1593
        %v1685 = vpop.f32.mrb[0].mxu0
        %v1686 = vadd.f32 0.0, %v1685
        %v1687 = vpop.f32.mrb[0].mxu0
        %v1688 = vadd.f32 0.0, %v1687
        %1689 = vdwg.mxu0
        %v1690 = vadd.f32 %v1547, %v1668
        %v1691 = vadd.f32 %v1548, %v1670
        %v1692 = vadd.f32 %v1549, %v1674
        %v1693 = vadd.f32 %v1550, %v1676
        %v1694 = vadd.f32 %v1551, %v1680
        %v1695 = vadd.f32 %v1552, %v1682
        %v1696 = vadd.f32 %v1553, %v1686
        %v1697 = vadd.f32 %v1554, %v1688
        %v1698 = vld [vmem:[%s3] sm:$0xff]
        %v1699 = vld [vmem:[%s3 + $0x8] sm:$0xff]
        %v1700 = vld [vmem:[%s3 + $0x10] sm:$0xff]
        %v1701 = vld [vmem:[%s3 + $0x18] sm:$0xff]
        %1703 = vset.pattern.permute.xlu0 0
        %1704 = vperm.xlu0 %1703, %v1698
        %v1705 = vpop.permute.xlu0 %1704
        %1708 = vset.pattern.permute.xlu0 0
        %1709 = vperm.xlu0 %1708, %v1699
        %v1710 = vpop.permute.xlu0 %1709
        %1713 = vset.pattern.permute.xlu0 0
        %1714 = vperm.xlu0 %1713, %v1700
        %v1715 = vpop.permute.xlu0 %1714
        %1718 = vset.pattern.permute.xlu0 0
        %1719 = vperm.xlu0 %1718, %v1701
        %v1720 = vpop.permute.xlu0 %1719
        %v1722 = vadd.f32 %v1690, %v1705
        %v1723 = vadd.f32 %v1691, %v1705
        %v1724 = vadd.f32 %v1692, %v1710
        %v1725 = vadd.f32 %v1693, %v1710
        %v1726 = vadd.f32 %v1694, %v1715
        %v1727 = vadd.f32 %v1695, %v1715
        %v1728 = vadd.f32 %v1696, %v1720
        %v1729 = vadd.f32 %v1697, %v1720
        %vm1730 = vcmp.gt.f32.partialorder %v1722, 0.0
        %vm1731 = vcmp.gt.f32.partialorder %v1723, 0.0
        %vm1732 = vcmp.gt.f32.partialorder %v1724, 0.0
        %vm1733 = vcmp.gt.f32.partialorder %v1725, 0.0
        %vm1734 = vcmp.gt.f32.partialorder %v1726, 0.0
        %vm1735 = vcmp.gt.f32.partialorder %v1727, 0.0
        %vm1736 = vcmp.gt.f32.partialorder %v1728, 0.0
        %vm1737 = vcmp.gt.f32.partialorder %v1729, 0.0
        %v1738 = vmul.f32 %v1722, 0.01
        %v1739 = vmul.f32 %v1723, 0.01
        %v1740 = vmul.f32 %v1724, 0.01
        %v1741 = vmul.f32 %v1725, 0.01
        %v1742 = vmul.f32 %v1726, 0.01
        %v1743 = vmul.f32 %v1727, 0.01
        %v1744 = vmul.f32 %v1728, 0.01
        %v1745 = vmul.f32 %v1729, 0.01
        %v1746 = vsel %vm1730, %v1722, %v1738
        %v1747 = vsel %vm1731, %v1723, %v1739
        %v1748 = vsel %vm1732, %v1724, %v1740
        %v1749 = vsel %vm1733, %v1725, %v1741
        %v1750 = vsel %vm1734, %v1726, %v1742
        %v1751 = vsel %vm1735, %v1727, %v1743
        %v1752 = vsel %vm1736, %v1728, %v1744
        %v1753 = vsel %vm1737, %v1729, %v1745
        %1758 = vrot.lane.b32.xlu0 %v1747, 17
        %v1759 = vpop.permute.xlu0 %1758
        %1760 = vrot.lane.b32.xlu0 %v1749, 17
        %v1761 = vpop.permute.xlu0 %1760
        %1762 = vrot.lane.b32.xlu0 %v1751, 17
        %v1763 = vpop.permute.xlu0 %1762
        %1764 = vrot.lane.b32.xlu0 %v1753, 17
        %v1765 = vpop.permute.xlu0 %1764
        %1774 = vrot.lane.b32.xlu0 %v1746, 17
        %v1775 = vpop.permute.xlu0 %1774
        %1776 = vrot.lane.b32.xlu0 %v1748, 17
        %v1777 = vpop.permute.xlu0 %1776
        %1778 = vrot.lane.b32.xlu0 %v1750, 17
        %v1779 = vpop.permute.xlu0 %1778
        %1780 = vrot.lane.b32.xlu0 %v1752, 17
        %v1781 = vpop.permute.xlu0 %1780
        %v1782 = vsel %vm478, %v1775, %v1759
        %v1783 = vsel %vm478, %v1777, %v1761
        %v1784 = vsel %vm478, %v1779, %v1763
        %v1785 = vsel %vm478, %v1781, %v1765
        %v1794 = vsel %vm478, %v1759, %v1775
        %v1795 = vsel %vm478, %v1761, %v1777
        %v1796 = vsel %vm478, %v1763, %v1779
        %v1797 = vsel %vm478, %v1765, %v1781
        %v1798 = vld [vmem:[#allocation5] sm:$0xff]
        %v1799 = vld [vmem:[#allocation5 + $0x8] sm:$0xff]
        %vm1800 = vcmask 261120
        %v1802 = vsel %vm1800, %v1798, 0
        %v1805 = vsel %vm1800, %v1799, 0
        %1807 = vmatprep.subr.mxu0 %v1782
        %1808 = vmatpush1.msra.mxu0 %v1794
        %1809 = vmatprep.subr.mxu0 %v1783
        %1810 = vmatpush1.msra.mxu0 %v1795
        %1811 = vmatprep.subr.mxu0 %v1784
        %1812 = vmatpush1.msra.mxu0 %v1796
        %1813 = vmatprep.subr.mxu0 %v1785
        %1814 = vmatpush1.msra.mxu0 %v1797
        %1815 = vmatprep.subr.mxu0 0.0
        %1816 = vmatpush1.msra.mxu0 0.0
        %1817 = vmatprep.subr.mxu0 0.0
        %1818 = vmatpush1.msra.mxu0 0.0
        %1819 = vmatprep.subr.mxu0 0.0
        %1820 = vmatpush1.msra.mxu0 0.0
        %1821 = vmatprep.subr.mxu0 0.0
        %1822 = vmatpush1.msra.mxu0 0.0
        %1823 = vmatprep.subr.mxu0 0.0
        %1824 = vmatpush1.msra.mxu0 0.0
        %1825 = vmatprep.subr.mxu0 0.0
        %1826 = vmatpush1.msra.mxu0 0.0
        %1827 = vmatprep.subr.mxu0 0.0
        %1828 = vmatpush1.msra.mxu0 0.0
        %1829 = vmatprep.subr.mxu0 0.0
        %1830 = vmatpush1.msra.mxu0 0.0
        %1831 = vmatprep.subr.mxu0 0.0
        %1832 = vmatpush1.msra.mxu0 0.0
        %1833 = vmatprep.subr.mxu0 0.0
        %1834 = vmatpush1.msra.mxu0 0.0
        %1835 = vmatprep.subr.mxu0 0.0
        %1836 = vmatpush1.msra.mxu0 0.0
        %1837 = vmatprep.subr.mxu0 0.0
        %1838 = vmatpush1.msra.mxu0 0.0
        %1839 = vmatprep.subr.mxu0 0.0
        %1840 = vmatpush1.msra.mxu0 0.0
        %1841 = vmatprep.subr.mxu0 0.0
        %1842 = vmatpush1.msra.mxu0 0.0
        %1843 = vmatprep.subr.mxu0 0.0
        %1844 = vmatpush1.msra.mxu0 0.0
        %1845 = vmatprep.subr.mxu0 0.0
        %1846 = vmatpush1.msra.mxu0 0.0
        %1847 = vmatprep.subr.mxu0 0.0
        %1848 = vmatpush1.msra.mxu0 0.0
        %1849 = vmatprep.subr.mxu0 0.0
        %1850 = vmatpush1.msra.mxu0 0.0
        %1851 = vmatprep.subr.mxu0 0.0
        %1852 = vmatpush1.msra.mxu0 0.0
        %1853 = vmatprep.subr.mxu0 0.0
        %1854 = vmatpush1.msra.mxu0 0.0
        %1855 = vmatprep.subr.mxu0 0.0
        %1856 = vmatpush1.msra.mxu0 0.0
        %1857 = vmatprep.subr.mxu0 0.0
        %1858 = vmatpush1.msra.mxu0 0.0
        %1859 = vmatprep.subr.mxu0 0.0
        %1860 = vmatpush1.msra.mxu0 0.0
        %1861 = vmatprep.subr.mxu0 0.0
        %1862 = vmatpush1.msra.mxu0 0.0
        %1863 = vmatprep.subr.mxu0 0.0
        %1864 = vmatpush1.msra.mxu0 0.0
        %1865 = vmatprep.subr.mxu0 0.0
        %1866 = vmatpush1.msra.mxu0 0.0
        %1867 = vmatprep.subr.mxu0 0.0
        %1868 = vmatpush1.msra.mxu0 0.0
        %1869 = vmatprep.subr.mxu0 0.0
        %1870 = vmatpush1.msra.mxu0 0.0
        %1871 = vmatprep.mubr.f32.mxu0 0.0
        %1872 = vmatmul.mubr.f32.gmra.mrb[0].mxu0 %v1802
        %v1873 = vpop.f32.mrb[0].mxu0
        %v1874 = vadd.f32 0.0, %v1873
        %v1875 = vpop.f32.mrb[0].mxu0
        %v1876 = vadd.f32 0.0, %v1875
        %1877 = vmatprep.mubr.f32.mxu0 0.0
        %1878 = vmatmul.mubr.f32.gmra.mrb[0].mxu0 %v1805
        %v1879 = vpop.f32.mrb[0].mxu0
        %v1880 = vadd.f32 0.0, %v1879
        %v1881 = vpop.f32.mrb[0].mxu0
        %v1882 = vadd.f32 0.0, %v1881
        %1883 = vdwg.mxu0
        %v1884 = vmul.f32 %v1874, %v487
        %v1885 = vmul.f32 %v1876, %v491
        %v1886 = vmul.f32 %v1880, %v487
        %v1887 = vmul.f32 %v1882, %v491
        %1888 = vrot.lane.b32.xlu0 %v1747, 16
        %v1889 = vpop.permute.xlu0 %1888
        %1890 = vrot.lane.b32.xlu0 %v1749, 16
        %v1891 = vpop.permute.xlu0 %1890
        %1892 = vrot.lane.b32.xlu0 %v1751, 16
        %v1893 = vpop.permute.xlu0 %1892
        %1894 = vrot.lane.b32.xlu0 %v1753, 16
        %v1895 = vpop.permute.xlu0 %1894
        %1900 = vrot.lane.b32.xlu0 %v1746, 16
        %v1901 = vpop.permute.xlu0 %1900
        %1902 = vrot.lane.b32.xlu0 %v1748, 16
        %v1903 = vpop.permute.xlu0 %1902
        %1904 = vrot.lane.b32.xlu0 %v1750, 16
        %v1905 = vpop.permute.xlu0 %1904
        %1906 = vrot.lane.b32.xlu0 %v1752, 16
        %v1907 = vpop.permute.xlu0 %1906
        %v1908 = vsel %vm505, %v1901, %v1889
        %v1909 = vsel %vm505, %v1903, %v1891
        %v1910 = vsel %vm505, %v1905, %v1893
        %v1911 = vsel %vm505, %v1907, %v1895
        %v1920 = vsel %vm505, %v1889, %v1901
        %v1921 = vsel %vm505, %v1891, %v1903
        %v1922 = vsel %vm505, %v1893, %v1905
        %v1923 = vsel %vm505, %v1895, %v1907
        %s1924 = scalar_lea.vmem [#allocation5], 16
        %v1925 = vld [vmem:[%s1924] sm:$0xff]
        %v1926 = vld [vmem:[%s1924 + $0x8] sm:$0xff]
        %v1928 = vsel %vm1800, %v1925, 0
        %v1931 = vsel %vm1800, %v1926, 0
        %1933 = vmatprep.subr.mxu0 %v1908
        %1934 = vmatpush1.msra.mxu0 %v1920
        %1935 = vmatprep.subr.mxu0 %v1909
        %1936 = vmatpush1.msra.mxu0 %v1921
        %1937 = vmatprep.subr.mxu0 %v1910
        %1938 = vmatpush1.msra.mxu0 %v1922
        %1939 = vmatprep.subr.mxu0 %v1911
        %1940 = vmatpush1.msra.mxu0 %v1923
        %1941 = vmatprep.subr.mxu0 0.0
        %1942 = vmatpush1.msra.mxu0 0.0
        %1943 = vmatprep.subr.mxu0 0.0
        %1944 = vmatpush1.msra.mxu0 0.0
        %1945 = vmatprep.subr.mxu0 0.0
        %1946 = vmatpush1.msra.mxu0 0.0
        %1947 = vmatprep.subr.mxu0 0.0
        %1948 = vmatpush1.msra.mxu0 0.0
        %1949 = vmatprep.subr.mxu0 0.0
        %1950 = vmatpush1.msra.mxu0 0.0
        %1951 = vmatprep.subr.mxu0 0.0
        %1952 = vmatpush1.msra.mxu0 0.0
        %1953 = vmatprep.subr.mxu0 0.0
        %1954 = vmatpush1.msra.mxu0 0.0
        %1955 = vmatprep.subr.mxu0 0.0
        %1956 = vmatpush1.msra.mxu0 0.0
        %1957 = vmatprep.subr.mxu0 0.0
        %1958 = vmatpush1.msra.mxu0 0.0
        %1959 = vmatprep.subr.mxu0 0.0
        %1960 = vmatpush1.msra.mxu0 0.0
        %1961 = vmatprep.subr.mxu0 0.0
        %1962 = vmatpush1.msra.mxu0 0.0
        %1963 = vmatprep.subr.mxu0 0.0
        %1964 = vmatpush1.msra.mxu0 0.0
        %1965 = vmatprep.subr.mxu0 0.0
        %1966 = vmatpush1.msra.mxu0 0.0
        %1967 = vmatprep.subr.mxu0 0.0
        %1968 = vmatpush1.msra.mxu0 0.0
        %1969 = vmatprep.subr.mxu0 0.0
        %1970 = vmatpush1.msra.mxu0 0.0
        %1971 = vmatprep.subr.mxu0 0.0
        %1972 = vmatpush1.msra.mxu0 0.0
        %1973 = vmatprep.subr.mxu0 0.0
        %1974 = vmatpush1.msra.mxu0 0.0
        %1975 = vmatprep.subr.mxu0 0.0
        %1976 = vmatpush1.msra.mxu0 0.0
        %1977 = vmatprep.subr.mxu0 0.0
        %1978 = vmatpush1.msra.mxu0 0.0
        %1979 = vmatprep.subr.mxu0 0.0
        %1980 = vmatpush1.msra.mxu0 0.0
        %1981 = vmatprep.subr.mxu0 0.0
        %1982 = vmatpush1.msra.mxu0 0.0
        %1983 = vmatprep.subr.mxu0 0.0
        %1984 = vmatpush1.msra.mxu0 0.0
        %1985 = vmatprep.subr.mxu0 0.0
        %1986 = vmatpush1.msra.mxu0 0.0
        %1987 = vmatprep.subr.mxu0 0.0
        %1988 = vmatpush1.msra.mxu0 0.0
        %1989 = vmatprep.subr.mxu0 0.0
        %1990 = vmatpush1.msra.mxu0 0.0
        %1991 = vmatprep.subr.mxu0 0.0
        %1992 = vmatpush1.msra.mxu0 0.0
        %1993 = vmatprep.subr.mxu0 0.0
        %1994 = vmatpush1.msra.mxu0 0.0
        %1995 = vmatprep.subr.mxu0 0.0
        %1996 = vmatpush1.msra.mxu0 0.0
        %1997 = vmatprep.mubr.f32.mxu0 0.0
        %1998 = vmatmul.mubr.f32.gmra.mrb[0].mxu0 %v1928
        %v1999 = vpop.f32.mrb[0].mxu0
        %v2000 = vadd.f32 0.0, %v1999
        %v2001 = vpop.f32.mrb[0].mxu0
        %v2002 = vadd.f32 0.0, %v2001
        %2003 = vmatprep.mubr.f32.mxu0 0.0
        %2004 = vmatmul.mubr.f32.gmra.mrb[0].mxu0 %v1931
        %v2005 = vpop.f32.mrb[0].mxu0
        %v2006 = vadd.f32 0.0, %v2005
        %v2007 = vpop.f32.mrb[0].mxu0
        %v2008 = vadd.f32 0.0, %v2007
        %2009 = vdwg.mxu0
        %v2010 = vmul.f32 %v2000, %v419
        %v2011 = vmul.f32 %v2002, %v420
        %v2012 = vmul.f32 %v2006, %v419
        %v2013 = vmul.f32 %v2008, %v420
        %v2014 = vadd.f32 %v1884, %v2010
        %v2015 = vadd.f32 %v1885, %v2011
        %v2016 = vadd.f32 %v1886, %v2012
        %v2017 = vadd.f32 %v1887, %v2013
        %2018 = vrot.lane.b32.xlu0 %v1747, 15
        %v2019 = vpop.permute.xlu0 %2018
        %2020 = vrot.lane.b32.xlu0 %v1749, 15
        %v2021 = vpop.permute.xlu0 %2020
        %2022 = vrot.lane.b32.xlu0 %v1751, 15
        %v2023 = vpop.permute.xlu0 %2022
        %2024 = vrot.lane.b32.xlu0 %v1753, 15
        %v2025 = vpop.permute.xlu0 %2024
        %2030 = vrot.lane.b32.xlu0 %v1746, 15
        %v2031 = vpop.permute.xlu0 %2030
        %2032 = vrot.lane.b32.xlu0 %v1748, 15
        %v2033 = vpop.permute.xlu0 %2032
        %2034 = vrot.lane.b32.xlu0 %v1750, 15
        %v2035 = vpop.permute.xlu0 %2034
        %2036 = vrot.lane.b32.xlu0 %v1752, 15
        %v2037 = vpop.permute.xlu0 %2036
        %v2038 = vsel %vm738, %v2031, %v2019
        %v2039 = vsel %vm738, %v2033, %v2021
        %v2040 = vsel %vm738, %v2035, %v2023
        %v2041 = vsel %vm738, %v2037, %v2025
        %v2050 = vsel %vm738, %v2019, %v2031
        %v2051 = vsel %vm738, %v2021, %v2033
        %v2052 = vsel %vm738, %v2023, %v2035
        %v2053 = vsel %vm738, %v2025, %v2037
        %s2054 = scalar_lea.vmem [#allocation5], 32
        %v2055 = vld [vmem:[%s2054] sm:$0xff]
        %v2056 = vld [vmem:[%s2054 + $0x8] sm:$0xff]
        %v2058 = vsel %vm1800, %v2055, 0
        %v2061 = vsel %vm1800, %v2056, 0
        %2063 = vmatprep.subr.mxu0 %v2038
        %2064 = vmatpush1.msra.mxu0 %v2050
        %2065 = vmatprep.subr.mxu0 %v2039
        %2066 = vmatpush1.msra.mxu0 %v2051
        %2067 = vmatprep.subr.mxu0 %v2040
        %2068 = vmatpush1.msra.mxu0 %v2052
        %2069 = vmatprep.subr.mxu0 %v2041
        %2070 = vmatpush1.msra.mxu0 %v2053
        %2071 = vmatprep.subr.mxu0 0.0
        %2072 = vmatpush1.msra.mxu0 0.0
        %2073 = vmatprep.subr.mxu0 0.0
        %2074 = vmatpush1.msra.mxu0 0.0
        %2075 = vmatprep.subr.mxu0 0.0
        %2076 = vmatpush1.msra.mxu0 0.0
        %2077 = vmatprep.subr.mxu0 0.0
        %2078 = vmatpush1.msra.mxu0 0.0
        %2079 = vmatprep.subr.mxu0 0.0
        %2080 = vmatpush1.msra.mxu0 0.0
        %2081 = vmatprep.subr.mxu0 0.0
        %2082 = vmatpush1.msra.mxu0 0.0
        %2083 = vmatprep.subr.mxu0 0.0
        %2084 = vmatpush1.msra.mxu0 0.0
        %2085 = vmatprep.subr.mxu0 0.0
        %2086 = vmatpush1.msra.mxu0 0.0
        %2087 = vmatprep.subr.mxu0 0.0
        %2088 = vmatpush1.msra.mxu0 0.0
        %2089 = vmatprep.subr.mxu0 0.0
        %2090 = vmatpush1.msra.mxu0 0.0
        %2091 = vmatprep.subr.mxu0 0.0
        %2092 = vmatpush1.msra.mxu0 0.0
        %2093 = vmatprep.subr.mxu0 0.0
        %2094 = vmatpush1.msra.mxu0 0.0
        %2095 = vmatprep.subr.mxu0 0.0
        %2096 = vmatpush1.msra.mxu0 0.0
        %2097 = vmatprep.subr.mxu0 0.0
        %2098 = vmatpush1.msra.mxu0 0.0
        %2099 = vmatprep.subr.mxu0 0.0
        %2100 = vmatpush1.msra.mxu0 0.0
        %2101 = vmatprep.subr.mxu0 0.0
        %2102 = vmatpush1.msra.mxu0 0.0
        %2103 = vmatprep.subr.mxu0 0.0
        %2104 = vmatpush1.msra.mxu0 0.0
        %2105 = vmatprep.subr.mxu0 0.0
        %2106 = vmatpush1.msra.mxu0 0.0
        %2107 = vmatprep.subr.mxu0 0.0
        %2108 = vmatpush1.msra.mxu0 0.0
        %2109 = vmatprep.subr.mxu0 0.0
        %2110 = vmatpush1.msra.mxu0 0.0
        %2111 = vmatprep.subr.mxu0 0.0
        %2112 = vmatpush1.msra.mxu0 0.0
        %2113 = vmatprep.subr.mxu0 0.0
        %2114 = vmatpush1.msra.mxu0 0.0
        %2115 = vmatprep.subr.mxu0 0.0
        %2116 = vmatpush1.msra.mxu0 0.0
        %2117 = vmatprep.subr.mxu0 0.0
        %2118 = vmatpush1.msra.mxu0 0.0
        %2119 = vmatprep.subr.mxu0 0.0
        %2120 = vmatpush1.msra.mxu0 0.0
        %2121 = vmatprep.subr.mxu0 0.0
        %2122 = vmatpush1.msra.mxu0 0.0
        %2123 = vmatprep.subr.mxu0 0.0
        %2124 = vmatpush1.msra.mxu0 0.0
        %2125 = vmatprep.subr.mxu0 0.0
        %2126 = vmatpush1.msra.mxu0 0.0
        %2127 = vmatprep.mubr.f32.mxu0 0.0
        %2128 = vmatmul.mubr.f32.gmra.mrb[0].mxu0 %v2058
        %v2129 = vpop.f32.mrb[0].mxu0
        %v2130 = vadd.f32 0.0, %v2129
        %v2131 = vpop.f32.mrb[0].mxu0
        %v2132 = vadd.f32 0.0, %v2131
        %2133 = vmatprep.mubr.f32.mxu0 0.0
        %2134 = vmatmul.mubr.f32.gmra.mrb[0].mxu0 %v2061
        %v2135 = vpop.f32.mrb[0].mxu0
        %v2136 = vadd.f32 0.0, %v2135
        %v2137 = vpop.f32.mrb[0].mxu0
        %v2138 = vadd.f32 0.0, %v2137
        %2139 = vdwg.mxu0
        %v2140 = vmul.f32 %v2130, %v747
        %v2141 = vmul.f32 %v2132, %v751
        %v2142 = vmul.f32 %v2136, %v747
        %v2143 = vmul.f32 %v2138, %v751
        %v2144 = vadd.f32 %v2014, %v2140
        %v2145 = vadd.f32 %v2015, %v2141
        %v2146 = vadd.f32 %v2016, %v2142
        %v2147 = vadd.f32 %v2017, %v2143
        %2148 = vrot.lane.b32.xlu0 %v1747, 1
        %v2149 = vpop.permute.xlu0 %2148
        %2150 = vrot.lane.b32.xlu0 %v1749, 1
        %v2151 = vpop.permute.xlu0 %2150
        %2152 = vrot.lane.b32.xlu0 %v1751, 1
        %v2153 = vpop.permute.xlu0 %2152
        %2154 = vrot.lane.b32.xlu0 %v1753, 1
        %v2155 = vpop.permute.xlu0 %2154
        %2160 = vrot.lane.b32.xlu0 %v1746, 1
        %v2161 = vpop.permute.xlu0 %2160
        %2162 = vrot.lane.b32.xlu0 %v1748, 1
        %v2163 = vpop.permute.xlu0 %2162
        %2164 = vrot.lane.b32.xlu0 %v1750, 1
        %v2165 = vpop.permute.xlu0 %2164
        %2166 = vrot.lane.b32.xlu0 %v1752, 1
        %v2167 = vpop.permute.xlu0 %2166
        %v2168 = vsel %vm881, %v2161, %v2149
        %v2169 = vsel %vm881, %v2163, %v2151
        %v2170 = vsel %vm881, %v2165, %v2153
        %v2171 = vsel %vm881, %v2167, %v2155
        %v2180 = vsel %vm881, %v2149, %v2161
        %v2181 = vsel %vm881, %v2151, %v2163
        %v2182 = vsel %vm881, %v2153, %v2165
        %v2183 = vsel %vm881, %v2155, %v2167
        %s2184 = scalar_lea.vmem [#allocation5], 48
        %v2185 = vld [vmem:[%s2184] sm:$0xff]
        %v2186 = vld [vmem:[%s2184 + $0x8] sm:$0xff]
        %v2188 = vsel %vm1800, %v2185, 0
        %v2191 = vsel %vm1800, %v2186, 0
        %2193 = vmatprep.subr.mxu0 %v2168
        %2194 = vmatpush1.msra.mxu0 %v2180
        %2195 = vmatprep.subr.mxu0 %v2169
        %2196 = vmatpush1.msra.mxu0 %v2181
        %2197 = vmatprep.subr.mxu0 %v2170
        %2198 = vmatpush1.msra.mxu0 %v2182
        %2199 = vmatprep.subr.mxu0 %v2171
        %2200 = vmatpush1.msra.mxu0 %v2183
        %2201 = vmatprep.subr.mxu0 0.0
        %2202 = vmatpush1.msra.mxu0 0.0
        %2203 = vmatprep.subr.mxu0 0.0
        %2204 = vmatpush1.msra.mxu0 0.0
        %2205 = vmatprep.subr.mxu0 0.0
        %2206 = vmatpush1.msra.mxu0 0.0
        %2207 = vmatprep.subr.mxu0 0.0
        %2208 = vmatpush1.msra.mxu0 0.0
        %2209 = vmatprep.subr.mxu0 0.0
        %2210 = vmatpush1.msra.mxu0 0.0
        %2211 = vmatprep.subr.mxu0 0.0
        %2212 = vmatpush1.msra.mxu0 0.0
        %2213 = vmatprep.subr.mxu0 0.0
        %2214 = vmatpush1.msra.mxu0 0.0
        %2215 = vmatprep.subr.mxu0 0.0
        %2216 = vmatpush1.msra.mxu0 0.0
        %2217 = vmatprep.subr.mxu0 0.0
        %2218 = vmatpush1.msra.mxu0 0.0
        %2219 = vmatprep.subr.mxu0 0.0
        %2220 = vmatpush1.msra.mxu0 0.0
        %2221 = vmatprep.subr.mxu0 0.0
        %2222 = vmatpush1.msra.mxu0 0.0
        %2223 = vmatprep.subr.mxu0 0.0
        %2224 = vmatpush1.msra.mxu0 0.0
        %2225 = vmatprep.subr.mxu0 0.0
        %2226 = vmatpush1.msra.mxu0 0.0
        %2227 = vmatprep.subr.mxu0 0.0
        %2228 = vmatpush1.msra.mxu0 0.0
        %2229 = vmatprep.subr.mxu0 0.0
        %2230 = vmatpush1.msra.mxu0 0.0
        %2231 = vmatprep.subr.mxu0 0.0
        %2232 = vmatpush1.msra.mxu0 0.0
        %2233 = vmatprep.subr.mxu0 0.0
        %2234 = vmatpush1.msra.mxu0 0.0
        %2235 = vmatprep.subr.mxu0 0.0
        %2236 = vmatpush1.msra.mxu0 0.0
        %2237 = vmatprep.subr.mxu0 0.0
        %2238 = vmatpush1.msra.mxu0 0.0
        %2239 = vmatprep.subr.mxu0 0.0
        %2240 = vmatpush1.msra.mxu0 0.0
        %2241 = vmatprep.subr.mxu0 0.0
        %2242 = vmatpush1.msra.mxu0 0.0
        %2243 = vmatprep.subr.mxu0 0.0
        %2244 = vmatpush1.msra.mxu0 0.0
        %2245 = vmatprep.subr.mxu0 0.0
        %2246 = vmatpush1.msra.mxu0 0.0
        %2247 = vmatprep.subr.mxu0 0.0
        %2248 = vmatpush1.msra.mxu0 0.0
        %2249 = vmatprep.subr.mxu0 0.0
        %2250 = vmatpush1.msra.mxu0 0.0
        %2251 = vmatprep.subr.mxu0 0.0
        %2252 = vmatpush1.msra.mxu0 0.0
        %2253 = vmatprep.subr.mxu0 0.0
        %2254 = vmatpush1.msra.mxu0 0.0
        %2255 = vmatprep.subr.mxu0 0.0
        %2256 = vmatpush1.msra.mxu0 0.0
        %2257 = vmatprep.mubr.f32.mxu0 0.0
        %2258 = vmatmul.mubr.f32.gmra.mrb[0].mxu0 %v2188
        %v2259 = vpop.f32.mrb[0].mxu0
        %v2260 = vadd.f32 0.0, %v2259
        %v2261 = vpop.f32.mrb[0].mxu0
        %v2262 = vadd.f32 0.0, %v2261
        %2263 = vmatprep.mubr.f32.mxu0 0.0
        %2264 = vmatmul.mubr.f32.gmra.mrb[0].mxu0 %v2191
        %v2265 = vpop.f32.mrb[0].mxu0
        %v2266 = vadd.f32 0.0, %v2265
        %v2267 = vpop.f32.mrb[0].mxu0
        %v2268 = vadd.f32 0.0, %v2267
        %2269 = vdwg.mxu0
        %v2270 = vmul.f32 %v2260, %v890
        %v2271 = vmul.f32 %v2262, %v894
        %v2272 = vmul.f32 %v2266, %v890
        %v2273 = vmul.f32 %v2268, %v894
        %v2274 = vadd.f32 %v2144, %v2270
        %v2275 = vadd.f32 %v2145, %v2271
        %v2276 = vadd.f32 %v2146, %v2272
        %v2277 = vadd.f32 %v2147, %v2273
        %s2278 = scalar_lea.vmem [#allocation5], 64
        %v2279 = vld [vmem:[%s2278] sm:$0xff]
        %v2280 = vld [vmem:[%s2278 + $0x8] sm:$0xff]
        %v2282 = vsel %vm1800, %v2279, 0
        %v2285 = vsel %vm1800, %v2280, 0
        %2287 = vmatprep.subr.mxu0 %v1747
        %2288 = vmatpush1.msra.mxu0 %v1746
        %2289 = vmatprep.subr.mxu0 %v1749
        %2290 = vmatpush1.msra.mxu0 %v1748
        %2291 = vmatprep.subr.mxu0 %v1751
        %2292 = vmatpush1.msra.mxu0 %v1750
        %2293 = vmatprep.subr.mxu0 %v1753
        %2294 = vmatpush1.msra.mxu0 %v1752
        %2295 = vmatprep.subr.mxu0 0.0
        %2296 = vmatpush1.msra.mxu0 0.0
        %2297 = vmatprep.subr.mxu0 0.0
        %2298 = vmatpush1.msra.mxu0 0.0
        %2299 = vmatprep.subr.mxu0 0.0
        %2300 = vmatpush1.msra.mxu0 0.0
        %2301 = vmatprep.subr.mxu0 0.0
        %2302 = vmatpush1.msra.mxu0 0.0
        %2303 = vmatprep.subr.mxu0 0.0
        %2304 = vmatpush1.msra.mxu0 0.0
        %2305 = vmatprep.subr.mxu0 0.0
        %2306 = vmatpush1.msra.mxu0 0.0
        %2307 = vmatprep.subr.mxu0 0.0
        %2308 = vmatpush1.msra.mxu0 0.0
        %2309 = vmatprep.subr.mxu0 0.0
        %2310 = vmatpush1.msra.mxu0 0.0
        %2311 = vmatprep.subr.mxu0 0.0
        %2312 = vmatpush1.msra.mxu0 0.0
        %2313 = vmatprep.subr.mxu0 0.0
        %2314 = vmatpush1.msra.mxu0 0.0
        %2315 = vmatprep.subr.mxu0 0.0
        %2316 = vmatpush1.msra.mxu0 0.0
        %2317 = vmatprep.subr.mxu0 0.0
        %2318 = vmatpush1.msra.mxu0 0.0
        %2319 = vmatprep.subr.mxu0 0.0
        %2320 = vmatpush1.msra.mxu0 0.0
        %2321 = vmatprep.subr.mxu0 0.0
        %2322 = vmatpush1.msra.mxu0 0.0
        %2323 = vmatprep.subr.mxu0 0.0
        %2324 = vmatpush1.msra.mxu0 0.0
        %2325 = vmatprep.subr.mxu0 0.0
        %2326 = vmatpush1.msra.mxu0 0.0
        %2327 = vmatprep.subr.mxu0 0.0
        %2328 = vmatpush1.msra.mxu0 0.0
        %2329 = vmatprep.subr.mxu0 0.0
        %2330 = vmatpush1.msra.mxu0 0.0
        %2331 = vmatprep.subr.mxu0 0.0
        %2332 = vmatpush1.msra.mxu0 0.0
        %2333 = vmatprep.subr.mxu0 0.0
        %2334 = vmatpush1.msra.mxu0 0.0
        %2335 = vmatprep.subr.mxu0 0.0
        %2336 = vmatpush1.msra.mxu0 0.0
        %2337 = vmatprep.subr.mxu0 0.0
        %2338 = vmatpush1.msra.mxu0 0.0
        %2339 = vmatprep.subr.mxu0 0.0
        %2340 = vmatpush1.msra.mxu0 0.0
        %2341 = vmatprep.subr.mxu0 0.0
        %2342 = vmatpush1.msra.mxu0 0.0
        %2343 = vmatprep.subr.mxu0 0.0
        %2344 = vmatpush1.msra.mxu0 0.0
        %2345 = vmatprep.subr.mxu0 0.0
        %2346 = vmatpush1.msra.mxu0 0.0
        %2347 = vmatprep.subr.mxu0 0.0
        %2348 = vmatpush1.msra.mxu0 0.0
        %2349 = vmatprep.subr.mxu0 0.0
        %2350 = vmatpush1.msra.mxu0 0.0
        %2351 = vmatprep.mubr.f32.mxu0 0.0
        %2352 = vmatmul.mubr.f32.gmra.mrb[0].mxu0 %v2282
        %v2353 = vpop.f32.mrb[0].mxu0
        %v2354 = vadd.f32 0.0, %v2353
        %v2355 = vpop.f32.mrb[0].mxu0
        %v2356 = vadd.f32 0.0, %v2355
        %2357 = vmatprep.mubr.f32.mxu0 0.0
        %2358 = vmatmul.mubr.f32.gmra.mrb[0].mxu0 %v2285
        %v2359 = vpop.f32.mrb[0].mxu0
        %v2360 = vadd.f32 0.0, %v2359
        %v2361 = vpop.f32.mrb[0].mxu0
        %v2362 = vadd.f32 0.0, %v2361
        %2363 = vdwg.mxu0
        %v2364 = vadd.f32 %v2274, %v2354
        %v2365 = vadd.f32 %v2275, %v2356
        %v2366 = vadd.f32 %v2276, %v2360
        %v2367 = vadd.f32 %v2277, %v2362
        %2368 = vrot.lane.b32.xlu0 %v1746, 127
        %v2369 = vpop.permute.xlu0 %2368
        %2370 = vrot.lane.b32.xlu0 %v1747, 127
        %v2371 = vpop.permute.xlu0 %2370
        %2372 = vrot.lane.b32.xlu0 %v1748, 127
        %v2373 = vpop.permute.xlu0 %2372
        %2374 = vrot.lane.b32.xlu0 %v1749, 127
        %v2375 = vpop.permute.xlu0 %2374
        %2376 = vrot.lane.b32.xlu0 %v1750, 127
        %v2377 = vpop.permute.xlu0 %2376
        %2378 = vrot.lane.b32.xlu0 %v1751, 127
        %v2379 = vpop.permute.xlu0 %2378
        %2380 = vrot.lane.b32.xlu0 %v1752, 127
        %v2381 = vpop.permute.xlu0 %2380
        %2382 = vrot.lane.b32.xlu0 %v1753, 127
        %v2383 = vpop.permute.xlu0 %2382
        %v2384 = vsel %vm1141, %v2369, %v2371
        %v2385 = vsel %vm1141, %v2373, %v2375
        %v2386 = vsel %vm1141, %v2377, %v2379
        %v2387 = vsel %vm1141, %v2381, %v2383
        %v2400 = vsel %vm1141, %v2371, %v2369
        %v2401 = vsel %vm1141, %v2375, %v2373
        %v2402 = vsel %vm1141, %v2379, %v2377
        %v2403 = vsel %vm1141, %v2383, %v2381
        %s2404 = scalar_lea.vmem [#allocation5], 80
        %v2405 = vld [vmem:[%s2404] sm:$0xff]
        %v2406 = vld [vmem:[%s2404 + $0x8] sm:$0xff]
        %v2408 = vsel %vm1800, %v2405, 0
        %v2411 = vsel %vm1800, %v2406, 0
        %2413 = vmatprep.subr.mxu0 %v2400
        %2414 = vmatpush1.msra.mxu0 %v2384
        %2415 = vmatprep.subr.mxu0 %v2401
        %2416 = vmatpush1.msra.mxu0 %v2385
        %2417 = vmatprep.subr.mxu0 %v2402
        %2418 = vmatpush1.msra.mxu0 %v2386
        %2419 = vmatprep.subr.mxu0 %v2403
        %2420 = vmatpush1.msra.mxu0 %v2387
        %2421 = vmatprep.subr.mxu0 0.0
        %2422 = vmatpush1.msra.mxu0 0.0
        %2423 = vmatprep.subr.mxu0 0.0
        %2424 = vmatpush1.msra.mxu0 0.0
        %2425 = vmatprep.subr.mxu0 0.0
        %2426 = vmatpush1.msra.mxu0 0.0
        %2427 = vmatprep.subr.mxu0 0.0
        %2428 = vmatpush1.msra.mxu0 0.0
        %2429 = vmatprep.subr.mxu0 0.0
        %2430 = vmatpush1.msra.mxu0 0.0
        %2431 = vmatprep.subr.mxu0 0.0
        %2432 = vmatpush1.msra.mxu0 0.0
        %2433 = vmatprep.subr.mxu0 0.0
        %2434 = vmatpush1.msra.mxu0 0.0
        %2435 = vmatprep.subr.mxu0 0.0
        %2436 = vmatpush1.msra.mxu0 0.0
        %2437 = vmatprep.subr.mxu0 0.0
        %2438 = vmatpush1.msra.mxu0 0.0
        %2439 = vmatprep.subr.mxu0 0.0
        %2440 = vmatpush1.msra.mxu0 0.0
        %2441 = vmatprep.subr.mxu0 0.0
        %2442 = vmatpush1.msra.mxu0 0.0
        %2443 = vmatprep.subr.mxu0 0.0
        %2444 = vmatpush1.msra.mxu0 0.0
        %2445 = vmatprep.subr.mxu0 0.0
        %2446 = vmatpush1.msra.mxu0 0.0
        %2447 = vmatprep.subr.mxu0 0.0
        %2448 = vmatpush1.msra.mxu0 0.0
        %2449 = vmatprep.subr.mxu0 0.0
        %2450 = vmatpush1.msra.mxu0 0.0
        %2451 = vmatprep.subr.mxu0 0.0
        %2452 = vmatpush1.msra.mxu0 0.0
        %2453 = vmatprep.subr.mxu0 0.0
        %2454 = vmatpush1.msra.mxu0 0.0
        %2455 = vmatprep.subr.mxu0 0.0
        %2456 = vmatpush1.msra.mxu0 0.0
        %2457 = vmatprep.subr.mxu0 0.0
        %2458 = vmatpush1.msra.mxu0 0.0
        %2459 = vmatprep.subr.mxu0 0.0
        %2460 = vmatpush1.msra.mxu0 0.0
        %2461 = vmatprep.subr.mxu0 0.0
        %2462 = vmatpush1.msra.mxu0 0.0
        %2463 = vmatprep.subr.mxu0 0.0
        %2464 = vmatpush1.msra.mxu0 0.0
        %2465 = vmatprep.subr.mxu0 0.0
        %2466 = vmatpush1.msra.mxu0 0.0
        %2467 = vmatprep.subr.mxu0 0.0
        %2468 = vmatpush1.msra.mxu0 0.0
        %2469 = vmatprep.subr.mxu0 0.0
        %2470 = vmatpush1.msra.mxu0 0.0
        %2471 = vmatprep.subr.mxu0 0.0
        %2472 = vmatpush1.msra.mxu0 0.0
        %2473 = vmatprep.subr.mxu0 0.0
        %2474 = vmatpush1.msra.mxu0 0.0
        %2475 = vmatprep.subr.mxu0 0.0
        %2476 = vmatpush1.msra.mxu0 0.0
        %2477 = vmatprep.mubr.f32.mxu0 0.0
        %2478 = vmatmul.mubr.f32.gmra.mrb[0].mxu0 %v2408
        %v2479 = vpop.f32.mrb[0].mxu0
        %v2480 = vadd.f32 0.0, %v2479
        %v2481 = vpop.f32.mrb[0].mxu0
        %v2482 = vadd.f32 0.0, %v2481
        %2483 = vmatprep.mubr.f32.mxu0 0.0
        %2484 = vmatmul.mubr.f32.gmra.mrb[0].mxu0 %v2411
        %v2485 = vpop.f32.mrb[0].mxu0
        %v2486 = vadd.f32 0.0, %v2485
        %v2487 = vpop.f32.mrb[0].mxu0
        %v2488 = vadd.f32 0.0, %v2487
        %2489 = vdwg.mxu0
        %v2490 = vmul.f32 %v2480, %v1151
        %v2491 = vmul.f32 %v2482, %v1155
        %v2492 = vmul.f32 %v2486, %v1151
        %v2493 = vmul.f32 %v2488, %v1155
        %v2494 = vadd.f32 %v2364, %v2490
        %v2495 = vadd.f32 %v2365, %v2491
        %v2496 = vadd.f32 %v2366, %v2492
        %v2497 = vadd.f32 %v2367, %v2493
        %2498 = vrot.lane.b32.xlu0 %v1746, 113
        %v2499 = vpop.permute.xlu0 %2498
        %2500 = vrot.lane.b32.xlu0 %v1747, 113
        %v2501 = vpop.permute.xlu0 %2500
        %2502 = vrot.lane.b32.xlu0 %v1748, 113
        %v2503 = vpop.permute.xlu0 %2502
        %2504 = vrot.lane.b32.xlu0 %v1749, 113
        %v2505 = vpop.permute.xlu0 %2504
        %2506 = vrot.lane.b32.xlu0 %v1750, 113
        %v2507 = vpop.permute.xlu0 %2506
        %2508 = vrot.lane.b32.xlu0 %v1751, 113
        %v2509 = vpop.permute.xlu0 %2508
        %2510 = vrot.lane.b32.xlu0 %v1752, 113
        %v2511 = vpop.permute.xlu0 %2510
        %2512 = vrot.lane.b32.xlu0 %v1753, 113
        %v2513 = vpop.permute.xlu0 %2512
        %v2514 = vsel %vm1284, %v2499, %v2501
        %v2515 = vsel %vm1284, %v2503, %v2505
        %v2516 = vsel %vm1284, %v2507, %v2509
        %v2517 = vsel %vm1284, %v2511, %v2513
        %v2530 = vsel %vm1284, %v2501, %v2499
        %v2531 = vsel %vm1284, %v2505, %v2503
        %v2532 = vsel %vm1284, %v2509, %v2507
        %v2533 = vsel %vm1284, %v2513, %v2511
        %s2534 = scalar_lea.vmem [#allocation5], 96
        %v2535 = vld [vmem:[%s2534] sm:$0xff]
        %v2536 = vld [vmem:[%s2534 + $0x8] sm:$0xff]
        %v2538 = vsel %vm1800, %v2535, 0
        %v2541 = vsel %vm1800, %v2536, 0
        %2543 = vmatprep.subr.mxu0 %v2530
        %2544 = vmatpush1.msra.mxu0 %v2514
        %2545 = vmatprep.subr.mxu0 %v2531
        %2546 = vmatpush1.msra.mxu0 %v2515
        %2547 = vmatprep.subr.mxu0 %v2532
        %2548 = vmatpush1.msra.mxu0 %v2516
        %2549 = vmatprep.subr.mxu0 %v2533
        %2550 = vmatpush1.msra.mxu0 %v2517
        %2551 = vmatprep.subr.mxu0 0.0
        %2552 = vmatpush1.msra.mxu0 0.0
        %2553 = vmatprep.subr.mxu0 0.0
        %2554 = vmatpush1.msra.mxu0 0.0
        %2555 = vmatprep.subr.mxu0 0.0
        %2556 = vmatpush1.msra.mxu0 0.0
        %2557 = vmatprep.subr.mxu0 0.0
        %2558 = vmatpush1.msra.mxu0 0.0
        %2559 = vmatprep.subr.mxu0 0.0
        %2560 = vmatpush1.msra.mxu0 0.0
        %2561 = vmatprep.subr.mxu0 0.0
        %2562 = vmatpush1.msra.mxu0 0.0
        %2563 = vmatprep.subr.mxu0 0.0
        %2564 = vmatpush1.msra.mxu0 0.0
        %2565 = vmatprep.subr.mxu0 0.0
        %2566 = vmatpush1.msra.mxu0 0.0
        %2567 = vmatprep.subr.mxu0 0.0
        %2568 = vmatpush1.msra.mxu0 0.0
        %2569 = vmatprep.subr.mxu0 0.0
        %2570 = vmatpush1.msra.mxu0 0.0
        %2571 = vmatprep.subr.mxu0 0.0
        %2572 = vmatpush1.msra.mxu0 0.0
        %2573 = vmatprep.subr.mxu0 0.0
        %2574 = vmatpush1.msra.mxu0 0.0
        %2575 = vmatprep.subr.mxu0 0.0
        %2576 = vmatpush1.msra.mxu0 0.0
        %2577 = vmatprep.subr.mxu0 0.0
        %2578 = vmatpush1.msra.mxu0 0.0
        %2579 = vmatprep.subr.mxu0 0.0
        %2580 = vmatpush1.msra.mxu0 0.0
        %2581 = vmatprep.subr.mxu0 0.0
        %2582 = vmatpush1.msra.mxu0 0.0
        %2583 = vmatprep.subr.mxu0 0.0
        %2584 = vmatpush1.msra.mxu0 0.0
        %2585 = vmatprep.subr.mxu0 0.0
        %2586 = vmatpush1.msra.mxu0 0.0
        %2587 = vmatprep.subr.mxu0 0.0
        %2588 = vmatpush1.msra.mxu0 0.0
        %2589 = vmatprep.subr.mxu0 0.0
        %2590 = vmatpush1.msra.mxu0 0.0
        %2591 = vmatprep.subr.mxu0 0.0
        %2592 = vmatpush1.msra.mxu0 0.0
        %2593 = vmatprep.subr.mxu0 0.0
        %2594 = vmatpush1.msra.mxu0 0.0
        %2595 = vmatprep.subr.mxu0 0.0
        %2596 = vmatpush1.msra.mxu0 0.0
        %2597 = vmatprep.subr.mxu0 0.0
        %2598 = vmatpush1.msra.mxu0 0.0
        %2599 = vmatprep.subr.mxu0 0.0
        %2600 = vmatpush1.msra.mxu0 0.0
        %2601 = vmatprep.subr.mxu0 0.0
        %2602 = vmatpush1.msra.mxu0 0.0
        %2603 = vmatprep.subr.mxu0 0.0
        %2604 = vmatpush1.msra.mxu0 0.0
        %2605 = vmatprep.subr.mxu0 0.0
        %2606 = vmatpush1.msra.mxu0 0.0
        %2607 = vmatprep.mubr.f32.mxu0 0.0
        %2608 = vmatmul.mubr.f32.gmra.mrb[0].mxu0 %v2538
        %v2609 = vpop.f32.mrb[0].mxu0
        %v2610 = vadd.f32 0.0, %v2609
        %v2611 = vpop.f32.mrb[0].mxu0
        %v2612 = vadd.f32 0.0, %v2611
        %2613 = vmatprep.mubr.f32.mxu0 0.0
        %2614 = vmatmul.mubr.f32.gmra.mrb[0].mxu0 %v2541
        %v2615 = vpop.f32.mrb[0].mxu0
        %v2616 = vadd.f32 0.0, %v2615
        %v2617 = vpop.f32.mrb[0].mxu0
        %v2618 = vadd.f32 0.0, %v2617
        %2619 = vdwg.mxu0
        %v2620 = vmul.f32 %v2610, %v1294
        %v2621 = vmul.f32 %v2612, %v1298
        %v2622 = vmul.f32 %v2616, %v1294
        %v2623 = vmul.f32 %v2618, %v1298
        %v2624 = vadd.f32 %v2494, %v2620
        %v2625 = vadd.f32 %v2495, %v2621
        %v2626 = vadd.f32 %v2496, %v2622
        %v2627 = vadd.f32 %v2497, %v2623
        %2628 = vrot.lane.b32.xlu0 %v1746, 112
        %v2629 = vpop.permute.xlu0 %2628
        %2630 = vrot.lane.b32.xlu0 %v1747, 112
        %v2631 = vpop.permute.xlu0 %2630
        %2632 = vrot.lane.b32.xlu0 %v1748, 112
        %v2633 = vpop.permute.xlu0 %2632
        %2634 = vrot.lane.b32.xlu0 %v1749, 112
        %v2635 = vpop.permute.xlu0 %2634
        %2636 = vrot.lane.b32.xlu0 %v1750, 112
        %v2637 = vpop.permute.xlu0 %2636
        %2638 = vrot.lane.b32.xlu0 %v1751, 112
        %v2639 = vpop.permute.xlu0 %2638
        %2640 = vrot.lane.b32.xlu0 %v1752, 112
        %v2641 = vpop.permute.xlu0 %2640
        %2642 = vrot.lane.b32.xlu0 %v1753, 112
        %v2643 = vpop.permute.xlu0 %2642
        %v2644 = vsel %vm1427, %v2629, %v2631
        %v2645 = vsel %vm1427, %v2633, %v2635
        %v2646 = vsel %vm1427, %v2637, %v2639
        %v2647 = vsel %vm1427, %v2641, %v2643
        %v2660 = vsel %vm1427, %v2631, %v2629
        %v2661 = vsel %vm1427, %v2635, %v2633
        %v2662 = vsel %vm1427, %v2639, %v2637
        %v2663 = vsel %vm1427, %v2643, %v2641
        %s2664 = scalar_lea.vmem [#allocation5], 112
        %v2665 = vld [vmem:[%s2664] sm:$0xff]
        %v2666 = vld [vmem:[%s2664 + $0x8] sm:$0xff]
        %v2668 = vsel %vm1800, %v2665, 0
        %v2671 = vsel %vm1800, %v2666, 0
        %2673 = vmatprep.subr.mxu0 %v2660
        %2674 = vmatpush1.msra.mxu0 %v2644
        %2675 = vmatprep.subr.mxu0 %v2661
        %2676 = vmatpush1.msra.mxu0 %v2645
        %2677 = vmatprep.subr.mxu0 %v2662
        %2678 = vmatpush1.msra.mxu0 %v2646
        %2679 = vmatprep.subr.mxu0 %v2663
        %2680 = vmatpush1.msra.mxu0 %v2647
        %2681 = vmatprep.subr.mxu0 0.0
        %2682 = vmatpush1.msra.mxu0 0.0
        %2683 = vmatprep.subr.mxu0 0.0
        %2684 = vmatpush1.msra.mxu0 0.0
        %2685 = vmatprep.subr.mxu0 0.0
        %2686 = vmatpush1.msra.mxu0 0.0
        %2687 = vmatprep.subr.mxu0 0.0
        %2688 = vmatpush1.msra.mxu0 0.0
        %2689 = vmatprep.subr.mxu0 0.0
        %2690 = vmatpush1.msra.mxu0 0.0
        %2691 = vmatprep.subr.mxu0 0.0
        %2692 = vmatpush1.msra.mxu0 0.0
        %2693 = vmatprep.subr.mxu0 0.0
        %2694 = vmatpush1.msra.mxu0 0.0
        %2695 = vmatprep.subr.mxu0 0.0
        %2696 = vmatpush1.msra.mxu0 0.0
        %2697 = vmatprep.subr.mxu0 0.0
        %2698 = vmatpush1.msra.mxu0 0.0
        %2699 = vmatprep.subr.mxu0 0.0
        %2700 = vmatpush1.msra.mxu0 0.0
        %2701 = vmatprep.subr.mxu0 0.0
        %2702 = vmatpush1.msra.mxu0 0.0
        %2703 = vmatprep.subr.mxu0 0.0
        %2704 = vmatpush1.msra.mxu0 0.0
        %2705 = vmatprep.subr.mxu0 0.0
        %2706 = vmatpush1.msra.mxu0 0.0
        %2707 = vmatprep.subr.mxu0 0.0
        %2708 = vmatpush1.msra.mxu0 0.0
        %2709 = vmatprep.subr.mxu0 0.0
        %2710 = vmatpush1.msra.mxu0 0.0
        %2711 = vmatprep.subr.mxu0 0.0
        %2712 = vmatpush1.msra.mxu0 0.0
        %2713 = vmatprep.subr.mxu0 0.0
        %2714 = vmatpush1.msra.mxu0 0.0
        %2715 = vmatprep.subr.mxu0 0.0
        %2716 = vmatpush1.msra.mxu0 0.0
        %2717 = vmatprep.subr.mxu0 0.0
        %2718 = vmatpush1.msra.mxu0 0.0
        %2719 = vmatprep.subr.mxu0 0.0
        %2720 = vmatpush1.msra.mxu0 0.0
        %2721 = vmatprep.subr.mxu0 0.0
        %2722 = vmatpush1.msra.mxu0 0.0
        %2723 = vmatprep.subr.mxu0 0.0
        %2724 = vmatpush1.msra.mxu0 0.0
        %2725 = vmatprep.subr.mxu0 0.0
        %2726 = vmatpush1.msra.mxu0 0.0
        %2727 = vmatprep.subr.mxu0 0.0
        %2728 = vmatpush1.msra.mxu0 0.0
        %2729 = vmatprep.subr.mxu0 0.0
        %2730 = vmatpush1.msra.mxu0 0.0
        %2731 = vmatprep.subr.mxu0 0.0
        %2732 = vmatpush1.msra.mxu0 0.0
        %2733 = vmatprep.subr.mxu0 0.0
        %2734 = vmatpush1.msra.mxu0 0.0
        %2735 = vmatprep.subr.mxu0 0.0
        %2736 = vmatpush1.msra.mxu0 0.0
        %2737 = vmatprep.mubr.f32.mxu0 0.0
        %2738 = vmatmul.mubr.f32.gmra.mrb[0].mxu0 %v2668
        %v2739 = vpop.f32.mrb[0].mxu0
        %v2740 = vadd.f32 0.0, %v2739
        %v2741 = vpop.f32.mrb[0].mxu0
        %v2742 = vadd.f32 0.0, %v2741
        %2743 = vmatprep.mubr.f32.mxu0 0.0
        %2744 = vmatmul.mubr.f32.gmra.mrb[0].mxu0 %v2671
        %v2745 = vpop.f32.mrb[0].mxu0
        %v2746 = vadd.f32 0.0, %v2745
        %v2747 = vpop.f32.mrb[0].mxu0
        %v2748 = vadd.f32 0.0, %v2747
        %2749 = vdwg.mxu0
        %v2750 = vmul.f32 %v2740, %v429
        %v2751 = vmul.f32 %v2742, %v430
        %v2752 = vmul.f32 %v2746, %v429
        %v2753 = vmul.f32 %v2748, %v430
        %v2754 = vadd.f32 %v2624, %v2750
        %v2755 = vadd.f32 %v2625, %v2751
        %v2756 = vadd.f32 %v2626, %v2752
        %v2757 = vadd.f32 %v2627, %v2753
        %2758 = vrot.lane.b32.xlu0 %v1746, 111
        %v2759 = vpop.permute.xlu0 %2758
        %2760 = vrot.lane.b32.xlu0 %v1747, 111
        %v2761 = vpop.permute.xlu0 %2760
        %2762 = vrot.lane.b32.xlu0 %v1748, 111
        %v2763 = vpop.permute.xlu0 %2762
        %2764 = vrot.lane.b32.xlu0 %v1749, 111
        %v2765 = vpop.permute.xlu0 %2764
        %2766 = vrot.lane.b32.xlu0 %v1750, 111
        %v2767 = vpop.permute.xlu0 %2766
        %2768 = vrot.lane.b32.xlu0 %v1751, 111
        %v2769 = vpop.permute.xlu0 %2768
        %2770 = vrot.lane.b32.xlu0 %v1752, 111
        %v2771 = vpop.permute.xlu0 %2770
        %2772 = vrot.lane.b32.xlu0 %v1753, 111
        %v2773 = vpop.permute.xlu0 %2772
        %v2774 = vsel %vm1559, %v2759, %v2761
        %v2775 = vsel %vm1559, %v2763, %v2765
        %v2776 = vsel %vm1559, %v2767, %v2769
        %v2777 = vsel %vm1559, %v2771, %v2773
        %v2790 = vsel %vm1559, %v2761, %v2759
        %v2791 = vsel %vm1559, %v2765, %v2763
        %v2792 = vsel %vm1559, %v2769, %v2767
        %v2793 = vsel %vm1559, %v2773, %v2771
        %s2794 = scalar_lea.vmem [#allocation5], 128
        %v2795 = vld [vmem:[%s2794] sm:$0xff]
        %v2796 = vld [vmem:[%s2794 + $0x8] sm:$0xff]
        %v2798 = vsel %vm1800, %v2795, 0
        %v2801 = vsel %vm1800, %v2796, 0
        %2803 = vmatprep.subr.mxu0 %v2790
        %2804 = vmatpush1.msra.mxu0 %v2774
        %2805 = vmatprep.subr.mxu0 %v2791
        %2806 = vmatpush1.msra.mxu0 %v2775
        %2807 = vmatprep.subr.mxu0 %v2792
        %2808 = vmatpush1.msra.mxu0 %v2776
        %2809 = vmatprep.subr.mxu0 %v2793
        %2810 = vmatpush1.msra.mxu0 %v2777
        %2811 = vmatprep.subr.mxu0 0.0
        %2812 = vmatpush1.msra.mxu0 0.0
        %2813 = vmatprep.subr.mxu0 0.0
        %2814 = vmatpush1.msra.mxu0 0.0
        %2815 = vmatprep.subr.mxu0 0.0
        %2816 = vmatpush1.msra.mxu0 0.0
        %2817 = vmatprep.subr.mxu0 0.0
        %2818 = vmatpush1.msra.mxu0 0.0
        %2819 = vmatprep.subr.mxu0 0.0
        %2820 = vmatpush1.msra.mxu0 0.0
        %2821 = vmatprep.subr.mxu0 0.0
        %2822 = vmatpush1.msra.mxu0 0.0
        %2823 = vmatprep.subr.mxu0 0.0
        %2824 = vmatpush1.msra.mxu0 0.0
        %2825 = vmatprep.subr.mxu0 0.0
        %2826 = vmatpush1.msra.mxu0 0.0
        %2827 = vmatprep.subr.mxu0 0.0
        %2828 = vmatpush1.msra.mxu0 0.0
        %2829 = vmatprep.subr.mxu0 0.0
        %2830 = vmatpush1.msra.mxu0 0.0
        %2831 = vmatprep.subr.mxu0 0.0
        %2832 = vmatpush1.msra.mxu0 0.0
        %2833 = vmatprep.subr.mxu0 0.0
        %2834 = vmatpush1.msra.mxu0 0.0
        %2835 = vmatprep.subr.mxu0 0.0
        %2836 = vmatpush1.msra.mxu0 0.0
        %2837 = vmatprep.subr.mxu0 0.0
        %2838 = vmatpush1.msra.mxu0 0.0
        %2839 = vmatprep.subr.mxu0 0.0
        %2840 = vmatpush1.msra.mxu0 0.0
        %2841 = vmatprep.subr.mxu0 0.0
        %2842 = vmatpush1.msra.mxu0 0.0
        %2843 = vmatprep.subr.mxu0 0.0
        %2844 = vmatpush1.msra.mxu0 0.0
        %2845 = vmatprep.subr.mxu0 0.0
        %2846 = vmatpush1.msra.mxu0 0.0
        %2847 = vmatprep.subr.mxu0 0.0
        %2848 = vmatpush1.msra.mxu0 0.0
        %2849 = vmatprep.subr.mxu0 0.0
        %2850 = vmatpush1.msra.mxu0 0.0
        %2851 = vmatprep.subr.mxu0 0.0
        %2852 = vmatpush1.msra.mxu0 0.0
        %2853 = vmatprep.subr.mxu0 0.0
        %2854 = vmatpush1.msra.mxu0 0.0
        %2855 = vmatprep.subr.mxu0 0.0
        %2856 = vmatpush1.msra.mxu0 0.0
        %2857 = vmatprep.subr.mxu0 0.0
        %2858 = vmatpush1.msra.mxu0 0.0
        %2859 = vmatprep.subr.mxu0 0.0
        %2860 = vmatpush1.msra.mxu0 0.0
        %2861 = vmatprep.subr.mxu0 0.0
        %2862 = vmatpush1.msra.mxu0 0.0
        %2863 = vmatprep.subr.mxu0 0.0
        %2864 = vmatpush1.msra.mxu0 0.0
        %2865 = vmatprep.subr.mxu0 0.0
        %2866 = vmatpush1.msra.mxu0 0.0
        %2867 = vmatprep.mubr.f32.mxu0 0.0
        %2868 = vmatmul.mubr.f32.gmra.mrb[0].mxu0 %v2798
        %v2869 = vpop.f32.mrb[0].mxu0
        %v2870 = vadd.f32 0.0, %v2869
        %v2871 = vpop.f32.mrb[0].mxu0
        %v2872 = vadd.f32 0.0, %v2871
        %2873 = vmatprep.mubr.f32.mxu0 0.0
        %2874 = vmatmul.mubr.f32.gmra.mrb[0].mxu0 %v2801
        %v2875 = vpop.f32.mrb[0].mxu0
        %v2876 = vadd.f32 0.0, %v2875
        %v2877 = vpop.f32.mrb[0].mxu0
        %v2878 = vadd.f32 0.0, %v2877
        %2879 = vdwg.mxu0
        %v2880 = vmul.f32 %v2870, %v1569
        %v2881 = vmul.f32 %v2872, %v1573
        %v2882 = vmul.f32 %v2876, %v1569
        %v2883 = vmul.f32 %v2878, %v1573
        %v2884 = vadd.f32 %v2754, %v2880
        %v2885 = vadd.f32 %v2755, %v2881
        %v2886 = vadd.f32 %v2756, %v2882
        %v2887 = vadd.f32 %v2757, %v2883
        %v2888 = vld [vmem:[%s5] sm:$0xff]
        %v2889 = vld [vmem:[%s5 + $0x8] sm:$0xff]
        %2891 = vset.pattern.permute.xlu0 0
        %2892 = vperm.xlu0 %2891, %v2888
        %v2893 = vpop.permute.xlu0 %2892
        %2896 = vset.pattern.permute.xlu0 0
        %2897 = vperm.xlu0 %2896, %v2889
        %v2898 = vpop.permute.xlu0 %2897
        %v2900 = vadd.f32 %v2884, %v2893
        %v2901 = vadd.f32 %v2885, %v2893
        %v2902 = vadd.f32 %v2886, %v2898
        %v2903 = vadd.f32 %v2887, %v2898
        %vm2904 = vcmp.gt.f32.partialorder %v2900, 0.0
        %vm2905 = vcmp.gt.f32.partialorder %v2901, 0.0
        %vm2906 = vcmp.gt.f32.partialorder %v2902, 0.0
        %vm2907 = vcmp.gt.f32.partialorder %v2903, 0.0
        %v2908 = vmul.f32 %v2900, 0.01
        %v2909 = vmul.f32 %v2901, 0.01
        %v2910 = vmul.f32 %v2902, 0.01
        %v2911 = vmul.f32 %v2903, 0.01
        %v2912 = vsel %vm2904, %v2900, %v2908
        %v2913 = vsel %vm2905, %v2901, %v2909
        %v2914 = vsel %vm2906, %v2902, %v2910
        %v2915 = vsel %vm2907, %v2903, %v2911
        %v2916 = vld [vmem:[%s6] sm:$0x1]
        %v2917 = vld [vmem:[#allocation2] sm:$0x1]
        %2919 = vset.pattern.permute.xlu0 0
        %2920 = vperm.xlu0 %2919, %v2917
        %v2921 = vpop.permute.xlu0 %2920
        %v2923 = vlaneseq
        %v2924 = vshrl.u32 %v2923, 7
        %v2925 = vsub.s32 0, %v2924
        %v2926 = vrot.slane %v2921, %v2925
        %v2928 = vsel %vm505, %v2916, 0
        %2930 = vmatprep.subr.mxu0 %v2913
        %2931 = vmatpush1.msra.mxu0 %v2912
        %2932 = vmatprep.subr.mxu0 %v2915
        %2933 = vmatpush1.msra.mxu0 %v2914
        %2934 = vmatprep.subr.mxu0 0.0
        %2935 = vmatpush1.msra.mxu0 0.0
        %2936 = vmatprep.subr.mxu0 0.0
        %2937 = vmatpush1.msra.mxu0 0.0
        %2938 = vmatprep.subr.mxu0 0.0
        %2939 = vmatpush1.msra.mxu0 0.0
        %2940 = vmatprep.subr.mxu0 0.0
        %2941 = vmatpush1.msra.mxu0 0.0
        %2942 = vmatprep.subr.mxu0 0.0
        %2943 = vmatpush1.msra.mxu0 0.0
        %2944 = vmatprep.subr.mxu0 0.0
        %2945 = vmatpush1.msra.mxu0 0.0
        %2946 = vmatprep.subr.mxu0 0.0
        %2947 = vmatpush1.msra.mxu0 0.0
        %2948 = vmatprep.subr.mxu0 0.0
        %2949 = vmatpush1.msra.mxu0 0.0
        %2950 = vmatprep.subr.mxu0 0.0
        %2951 = vmatpush1.msra.mxu0 0.0
        %2952 = vmatprep.subr.mxu0 0.0
        %2953 = vmatpush1.msra.mxu0 0.0
        %2954 = vmatprep.subr.mxu0 0.0
        %2955 = vmatpush1.msra.mxu0 0.0
        %2956 = vmatprep.subr.mxu0 0.0
        %2957 = vmatpush1.msra.mxu0 0.0
        %2958 = vmatprep.subr.mxu0 0.0
        %2959 = vmatpush1.msra.mxu0 0.0
        %2960 = vmatprep.subr.mxu0 0.0
        %2961 = vmatpush1.msra.mxu0 0.0
        %2962 = vmatprep.subr.mxu0 0.0
        %2963 = vmatpush1.msra.mxu0 0.0
        %2964 = vmatprep.subr.mxu0 0.0
        %2965 = vmatpush1.msra.mxu0 0.0
        %2966 = vmatprep.subr.mxu0 0.0
        %2967 = vmatpush1.msra.mxu0 0.0
        %2968 = vmatprep.subr.mxu0 0.0
        %2969 = vmatpush1.msra.mxu0 0.0
        %2970 = vmatprep.subr.mxu0 0.0
        %2971 = vmatpush1.msra.mxu0 0.0
        %2972 = vmatprep.subr.mxu0 0.0
        %2973 = vmatpush1.msra.mxu0 0.0
        %2974 = vmatprep.subr.mxu0 0.0
        %2975 = vmatpush1.msra.mxu0 0.0
        %2976 = vmatprep.subr.mxu0 0.0
        %2977 = vmatpush1.msra.mxu0 0.0
        %2978 = vmatprep.subr.mxu0 0.0
        %2979 = vmatpush1.msra.mxu0 0.0
        %2980 = vmatprep.subr.mxu0 0.0
        %2981 = vmatpush1.msra.mxu0 0.0
        %2982 = vmatprep.subr.mxu0 0.0
        %2983 = vmatpush1.msra.mxu0 0.0
        %2984 = vmatprep.subr.mxu0 0.0
        %2985 = vmatpush1.msra.mxu0 0.0
        %2986 = vmatprep.subr.mxu0 0.0
        %2987 = vmatpush1.msra.mxu0 0.0
        %2988 = vmatprep.subr.mxu0 0.0
        %2989 = vmatpush1.msra.mxu0 0.0
        %2990 = vmatprep.subr.mxu0 0.0
        %2991 = vmatpush1.msra.mxu0 0.0
        %2992 = vmatprep.subr.mxu0 0.0
        %2993 = vmatpush1.msra.mxu0 0.0
        %2994 = vmatprep.mubr.f32.mxu0 0.0
        %2995 = vmatmul.mubr.f32.gmra.mrb[0].mxu0 %v2928
        %v2996 = vpop.f32.mrb[0].mxu0
        %v2997 = vadd.f32 %v2926, %v2996
        %v2998 = vpop.f32.mrb[0].mxu0
        %v2999 = vadd.f32 %v2926, %v2998
        %3000 = vdwg.mxu0
        %v3001 = vxor.u32 %v2997, 2147483648
        %v3002 = vxor.u32 %v2999, 2147483648
        %v3003 = vmul.f32 %v3001, 1.442695
        %v3004 = vpow.pop %v3003
        %v3005 = vmul.f32 %v3002, 1.442695
        %v3006 = vpow.pop %v3005
        %v3007 = vadd.f32 %v3004, 1.0
        %v3008 = vadd.f32 %v3006, 1.0
        %v3009 = vrcp.pop %v3007
        %v3010 = vmul.f32 1.0, %v3009
        %v3011 = vrcp.pop %v3008
        %v3012 = vmul.f32 1.0, %v3011
        %v3013 = vlaneseq
        %v3014 = vshrl.u32 %v3013, 7
        %v3015 = vsub.s32 0, %v3014
        %v3016 = vrot.slane %v3010, %v3015
        %v3017 = vlaneseq
        %v3018 = vshrl.u32 %v3017, 7
        %v3019 = vsub.s32 0, %v3018
        %v3020 = vrot.slane %v3012, %v3019
        %v3023 = vcombine.low %v3016, %v3020
        %v3025 = vmul.f32 %v380, %v3023
        %3026 = vst [vmem:[%s371] sm:$0x77] %v3025
        %v3027 = vmul.f32 %v3025, 0.299
        %v3028 = vmul.f32 %v3025, 0.587
        %v3030 = vrot.slane %v3028, 5
        %v3031 = vrot.slane %v3030, 4
        %v3033 = vadd.f32 %v3027, %v3031
        %v3034 = vmul.f32 %v3025, 0.114
        %v3036 = vrot.slane %v3034, 6
        %v3037 = vrot.slane %v3036, 4
        %v3039 = vadd.f32 %v3033, %v3037
        %v3040 = vadd.s32 %v376, 4294967294
        %vm3041 = vcmp.ge.s32.totalorder %v3040, 0
        %vm3042 = vcmp.lt.s32.totalorder %v3040, 16
        %vm3043 = vmand %vm3041, %vm3042
        %v3044 = vsel %vm3043, 1.0, 0.0
        %vm3045 = vcmp.ge.s32.totalorder %v376, 15
        %v3046 = vsel %vm3045, 1.0, 0.0
        %v3047 = vadd.f32 %v3044, %v3046
        %v3049 = vlaneseq
        %v3050 = vshrl.u32 %v3049, 7
        %v3051 = vsub.s32 4, %v3050
        %v3052 = vrot.slane %v3039, %v3051
        %3053 = vrot.lane.b32.xlu0 %v3052, 2
        %v3054 = vpop.permute.xlu0 %3053
        %v3056 = vlaneseq
        %v3057 = vshrl.u32 %v3056, 7
        %v3058 = vsub.s32 0, %v3057
        %v3059 = vrot.slane %v3039, %v3058
        %3060 = vrot.lane.b32.xlu0 %v3059, 2
        %v3061 = vpop.permute.xlu0 %3060
        %vm3062 = vcmask 15360
        %v3063 = vsel %vm3062, %v3061, %v3054
        %v3065 = vsel %vm3062, %v3054, %v3061
        %v3067 = vcombine.low %v3065, %v3063
        %v3069 = vunpack.c.l.s4 1966171168
        %v3070 = vunpack.c.0.s8 %v3069
        %v3071 = vlaneseq
        %v3072 = vshrl.u32 %v3071, 7
        %v3073 = vsub.s32 %v3070, %v3072
        %v3074 = vrot.slane %v3067, %v3073
        %v3076 = vunpack.c.l.s4 1966171168
        %v3077 = vunpack.c.0.s8 %v3076
        %v3078 = vlaneseq
        %v3079 = vshrl.u32 %v3078, 7
        %v3080 = vsub.s32 %v3077, %v3079
        %v3081 = vrot.slane %v3074, %v3080
        %v3083 = vmul.f32 %v3047, %v3081
        %v3084 = vadd.f32 %v405, %v3046
        %3085 = vrot.lane.b32.xlu0 %v3052, 1
        %v3086 = vpop.permute.xlu0 %3085
        %3088 = vrot.lane.b32.xlu0 %v3059, 1
        %v3089 = vpop.permute.xlu0 %3088
        %v3090 = vsel %vm881, %v3089, %v3086
        %v3092 = vsel %vm881, %v3086, %v3089
        %v3094 = vcombine.low %v3092, %v3090
        %v3096 = vunpack.c.l.s4 1966171168
        %v3097 = vunpack.c.0.s8 %v3096
        %v3098 = vlaneseq
        %v3099 = vshrl.u32 %v3098, 7
        %v3100 = vsub.s32 %v3097, %v3099
        %v3101 = vrot.slane %v3094, %v3100
        %v3103 = vunpack.c.l.s4 1966171168
        %v3104 = vunpack.c.0.s8 %v3103
        %v3105 = vlaneseq
        %v3106 = vshrl.u32 %v3105, 7
        %v3107 = vsub.s32 %v3104, %v3106
        %v3108 = vrot.slane %v3101, %v3107
        %v3110 = vmul.f32 %v3084, %v3108
        %v3111 = vadd.f32 %v3083, %v3110
        %vm3112 = vcmp.ge.s32.totalorder %v376, 0
        %vm3113 = vcmp.lt.s32.totalorder %v376, 16
        %vm3114 = vmand %vm3112, %vm3113
        %v3115 = vsel %vm3114, 1.0, 0.0
        %vm3116 = vcmp.ge.s32.totalorder %v376, 1
        %vm3117 = vcmp.lt.s32.totalorder %v376, 2
        %vm3118 = vmand %vm3116, %vm3117
        %vm3119 = vcmp.ge.s32.totalorder %v376, 14
        %vm3120 = vcmp.lt.s32.totalorder %v376, 15
        %vm3121 = vmand %vm3119, %vm3120
        %vm3122 = vmor %vm3118, %vm3121
        %v3123 = vsel %vm3122, 1.0, 0.0
        %v3124 = vadd.f32 %v3115, %v3123
        %v3126 = vunpack.c.l.s4 1966171168
        %v3127 = vunpack.c.0.s8 %v3126
        %v3128 = vlaneseq
        %v3129 = vshrl.u32 %v3128, 7
        %v3130 = vsub.s32 %v3127, %v3129
        %v3131 = vrot.slane %v3039, %v3130
        %v3133 = vunpack.c.l.s4 1966171168
        %v3134 = vunpack.c.0.s8 %v3133
        %v3135 = vlaneseq
        %v3136 = vshrl.u32 %v3135, 7
        %v3137 = vsub.s32 %v3134, %v3136
        %v3138 = vrot.slane %v3131, %v3137
        %v3140 = vmul.f32 %v3124, %v3138
        %v3141 = vadd.f32 %v3111, %v3140
        %vm3142 = vcmp.lt.s32.totalorder %v376, 1
        %v3143 = vsel %vm3142, 1.0, 0.0
        %v3144 = vadd.f32 %v410, %v3143
        %3145 = vrot.lane.b32.xlu0 %v3059, 127
        %v3146 = vpop.permute.xlu0 %3145
        %3147 = vrot.lane.b32.xlu0 %v3052, 127
        %v3148 = vpop.permute.xlu0 %3147
        %v3149 = vsel %vm1141, %v3146, %v3148
        %v3152 = vsel %vm1141, %v3148, %v3146
        %v3154 = vcombine.low %v3149, %v3152
        %v3156 = vunpack.c.l.s4 1966171168
        %v3157 = vunpack.c.0.s8 %v3156
        %v3158 = vlaneseq
        %v3159 = vshrl.u32 %v3158, 7
        %v3160 = vsub.s32 %v3157, %v3159
        %v3161 = vrot.slane %v3154, %v3160
        %v3163 = vunpack.c.l.s4 1966171168
        %v3164 = vunpack.c.0.s8 %v3163
        %v3165 = vlaneseq
        %v3166 = vshrl.u32 %v3165, 7
        %v3167 = vsub.s32 %v3164, %v3166
        %v3168 = vrot.slane %v3161, %v3167
        %v3170 = vmul.f32 %v3144, %v3168
        %v3171 = vadd.f32 %v3141, %v3170
        %v3172 = vadd.s32 %v376, 2
        %vm3173 = vcmp.ge.s32.totalorder %v3172, 0
        %vm3174 = vcmp.lt.s32.totalorder %v3172, 16
        %vm3175 = vmand %vm3173, %vm3174
        %v3176 = vsel %vm3175, 1.0, 0.0
        %v3177 = vadd.f32 %v3176, %v3143
        %3178 = vrot.lane.b32.xlu0 %v3059, 126
        %v3179 = vpop.permute.xlu0 %3178
        %3180 = vrot.lane.b32.xlu0 %v3052, 126
        %v3181 = vpop.permute.xlu0 %3180
        %vm3182 = vcmask 1031168
        %v3183 = vsel %vm3182, %v3179, %v3181
        %v3186 = vsel %vm3182, %v3181, %v3179
        %v3188 = vcombine.low %v3183, %v3186
        %v3190 = vunpack.c.l.s4 1966171168
        %v3191 = vunpack.c.0.s8 %v3190
        %v3192 = vlaneseq
        %v3193 = vshrl.u32 %v3192, 7
        %v3194 = vsub.s32 %v3191, %v3193
        %v3195 = vrot.slane %v3188, %v3194
        %v3197 = vunpack.c.l.s4 1966171168
        %v3198 = vunpack.c.0.s8 %v3197
        %v3199 = vlaneseq
        %v3200 = vshrl.u32 %v3199, 7
        %v3201 = vsub.s32 %v3198, %v3200
        %v3202 = vrot.slane %v3195, %v3201
        %v3204 = vmul.f32 %v3177, %v3202
        %v3205 = vadd.f32 %v3171, %v3204
        %v3206 = vadd.s32 %v378, 4294967264
        %v3207 = vadd.s32 %v379, 4294967264
        %vm3208 = vcmp.ge.s32.totalorder %v3206, 0
        %vm3209 = vcmp.ge.s32.totalorder %v3207, 0
        %vm3210 = vcmp.lt.s32.totalorder %v3206, 256
        %vm3211 = vcmp.lt.s32.totalorder %v3207, 256
        %vm3212 = vmand %vm3208, %vm3210
        %vm3213 = vmand %vm3209, %vm3211
        %v3214 = vsel %vm3212, 1.0, 0.0
        %v3215 = vsel %vm3213, 1.0, 0.0
        %vm3216 = vcmp.ge.s32.totalorder %v378, 240
        %vm3217 = vcmp.ge.s32.totalorder %v379, 240
        %v3218 = vsel %vm3216, 1.0, 0.0
        %v3219 = vsel %vm3217, 1.0, 0.0
        %v3220 = vadd.f32 %v3214, %v3218
        %v3221 = vadd.f32 %v3215, %v3219
        %v3222 = vmul.f32 %v3220, 0.04
        %v3223 = vmul.f32 %v3221, 0.04
        %v3225 = vlaneseq
        %v3226 = vshrl.u32 %v3225, 7
        %v3227 = vsub.s32 1, %v3226
        %v3228 = vrot.slane %v3205, %v3227
        %3229 = vrot.lane.b32.xlu0 %v3228, 32
        %v3230 = vpop.permute.xlu0 %3229
        %v3232 = vlaneseq
        %v3233 = vshrl.u32 %v3232, 7
        %v3234 = vsub.s32 0, %v3233
        %v3235 = vrot.slane %v3205, %v3234
        %3236 = vrot.lane.b32.xlu0 %v3235, 32
        %v3237 = vpop.permute.xlu0 %3236
        %v3238 = vsel %vm1800, %v3237, %v3230
        %v3241 = vsel %vm1800, %v3230, %v3237
        %v3242 = vmul.f32 %v3222, %v3241
        %v3243 = vmul.f32 %v3223, %v3238
        %v3244 = vadd.f32 %v419, %v3218
        %v3245 = vadd.f32 %v420, %v3219
        %v3246 = vmul.f32 %v3244, 0.04
        %v3247 = vmul.f32 %v3245, 0.04
        %3248 = vrot.lane.b32.xlu0 %v3228, 16
        %v3249 = vpop.permute.xlu0 %3248
        %3251 = vrot.lane.b32.xlu0 %v3235, 16
        %v3252 = vpop.permute.xlu0 %3251
        %v3253 = vsel %vm505, %v3252, %v3249
        %v3256 = vsel %vm505, %v3249, %v3252
        %v3257 = vmul.f32 %v3246, %v3256
        %v3258 = vmul.f32 %v3247, %v3253
        %v3259 = vadd.f32 %v3242, %v3257
        %v3260 = vadd.f32 %v3243, %v3258
        %vm3261 = vcmp.ge.s32.totalorder %v378, 0
        %vm3262 = vcmp.ge.s32.totalorder %v379, 0
        %vm3263 = vcmp.lt.s32.totalorder %v378, 256
        %vm3264 = vcmp.lt.s32.totalorder %v379, 256
        %vm3265 = vmand %vm3261, %vm3263
        %vm3266 = vmand %vm3262, %vm3264
        %v3267 = vsel %vm3265, 1.0, 0.0
        %v3268 = vsel %vm3266, 1.0, 0.0
        %vm3269 = vcmp.ge.s32.totalorder %v378, 16
        %vm3270 = vcmp.ge.s32.totalorder %v379, 16
        %vm3271 = vcmp.lt.s32.totalorder %v378, 32
        %vm3272 = vcmp.lt.s32.totalorder %v379, 32
        %vm3273 = vmand %vm3269, %vm3271
        %vm3274 = vmand %vm3270, %vm3272
        %vm3275 = vcmp.ge.s32.totalorder %v378, 224
        %vm3276 = vcmp.ge.s32.totalorder %v379, 224
        %vm3277 = vcmp.lt.s32.totalorder %v378, 240
        %vm3278 = vcmp.lt.s32.totalorder %v379, 240
        %vm3279 = vmand %vm3275, %vm3277
        %vm3280 = vmand %vm3276, %vm3278
        %vm3281 = vmor %vm3273, %vm3279
        %vm3282 = vmor %vm3274, %vm3280
        %v3283 = vsel %vm3281, 1.0, 0.0
        %v3284 = vsel %vm3282, 1.0, 0.0
        %v3285 = vadd.f32 %v3267, %v3283
        %v3286 = vadd.f32 %v3268, %v3284
        %v3287 = vmul.f32 %v3285, 0.04
        %v3288 = vmul.f32 %v3286, 0.04
        %v3291 = vmul.f32 %v3287, %v3235
        %v3292 = vmul.f32 %v3288, %v3228
        %v3293 = vadd.f32 %v3259, %v3291
        %v3294 = vadd.f32 %v3260, %v3292
        %vm3295 = vcmp.lt.s32.totalorder %v378, 16
        %vm3296 = vcmp.lt.s32.totalorder %v379, 16
        %v3297 = vsel %vm3295, 1.0, 0.0
        %v3298 = vsel %vm3296, 1.0, 0.0
        %v3299 = vadd.f32 %v429, %v3297
        %v3300 = vadd.f32 %v430, %v3298
        %v3301 = vmul.f32 %v3299, 0.04
        %v3302 = vmul.f32 %v3300, 0.04
        %3303 = vrot.lane.b32.xlu0 %v3235, 112
        %v3304 = vpop.permute.xlu0 %3303
        %3305 = vrot.lane.b32.xlu0 %v3228, 112
        %v3306 = vpop.permute.xlu0 %3305
        %v3307 = vsel %vm1427, %v3304, %v3306
        %v3311 = vsel %vm1427, %v3306, %v3304
        %v3312 = vmul.f32 %v3301, %v3307
        %v3313 = vmul.f32 %v3302, %v3311
        %v3314 = vadd.f32 %v3293, %v3312
        %v3315 = vadd.f32 %v3294, %v3313
        %v3316 = vadd.s32 %v378, 32
        %v3317 = vadd.s32 %v379, 32
        %vm3318 = vcmp.ge.s32.totalorder %v3316, 0
        %vm3319 = vcmp.ge.s32.totalorder %v3317, 0
        %vm3320 = vcmp.lt.s32.totalorder %v3316, 256
        %vm3321 = vcmp.lt.s32.totalorder %v3317, 256
        %vm3322 = vmand %vm3318, %vm3320
        %vm3323 = vmand %vm3319, %vm3321
        %v3324 = vsel %vm3322, 1.0, 0.0
        %v3325 = vsel %vm3323, 1.0, 0.0
        %v3326 = vadd.f32 %v3324, %v3297
        %v3327 = vadd.f32 %v3325, %v3298
        %v3328 = vmul.f32 %v3326, 0.04
        %v3329 = vmul.f32 %v3327, 0.04
        %3330 = vrot.lane.b32.xlu0 %v3235, 96
        %v3331 = vpop.permute.xlu0 %3330
        %3332 = vrot.lane.b32.xlu0 %v3228, 96
        %v3333 = vpop.permute.xlu0 %3332
        %vm3334 = vcmask 785408
        %v3335 = vsel %vm3334, %v3331, %v3333
        %v3339 = vsel %vm3334, %v3333, %v3331
        %v3340 = vmul.f32 %v3328, %v3335
        %v3341 = vmul.f32 %v3329, %v3339
        %v3342 = vadd.f32 %v3314, %v3340
        %v3343 = vadd.f32 %v3315, %v3341
        %v3346 = vcombine.low %v3342, %v3343
        %v3348 = vsub.f32 %v3039, %v3346
        %v3349 = vand.u32 2147483647, %v3348
        %v3350 = vadd.f32 %v3349, 1e-06
        %v3352 = vlaneseq
        %v3353 = vshrl.u32 %v3352, 7
        %v3354 = vsub.s32 0, %v3353
        %v3355 = vrot.slane %v3350, %v3354
        %v3356 = vlaneseq
        %v3357 = vshrl.u32 %v3356, 7
        %v3358 = vsub.s32 4, %v3357
        %v3359 = vrot.slane %v3350, %v3358
        %v3362 = vrcp.pop %v3355
        %v3363 = vmul.f32 %v3342, %v3362
        %v3364 = vrcp.pop %v3359
        %v3365 = vmul.f32 %v3343, %v3364
        %v3368 = vcombine.low %v3363, %v3365
        %v3370 = vunpack.c.l.s4 1966171168
        %v3371 = vunpack.c.0.s8 %v3370
        %v3372 = vlaneseq
        %v3373 = vshrl.u32 %v3372, 7
        %v3374 = vsub.s32 %v3371, %v3373
        %v3375 = vrot.slane %v3368, %v3374
        %v3377 = vunpack.c.l.s4 1966171168
        %v3378 = vunpack.c.0.s8 %v3377
        %v3379 = vlaneseq
        %v3380 = vshrl.u32 %v3379, 7
        %v3381 = vsub.s32 %v3378, %v3380
        %v3382 = vrot.slane %v3375, %v3381
        %v3384 = vlaneseq
        %vm3385 = vcmp.ge.s32.totalorder %v3384, 0
        %vm3386 = vcmp.lt.s32.totalorder %v3384, 256
        %vm3387 = vmand %vm3385, %vm3386
        %3388 = vst.msk [vmem:[%s375] sm:$0x3] %vm3387, %v3382
        %p3389 = scmp.lt.s32.totalorder %s25, 1
        %s3390 = scalar_select %p3389, %s25, 1
        %s3391 = smul.addr %s3390, 2
        %s3392 = smul.addr %s3391, 4
        %s3393 = scalar_lea.vmem %s8, %s3392
        %p3394 = scmp.lt.s32.totalorder %s25, 1
        %s3395 = scalar_select %p3394, %s25, 1
        %s3396 = smul.addr %s3395, 2
        %s3397 = scalar_lea.vmem %s9, %s3396
        // Predicated region
        $region61: #{_lambda_.1} parent=51 // pred_check
          %p3398 = pneg %p216
        $region62: #{_lambda_.1} parent=51 // pred_check_branch
          %3400 = sbr.rel (%p3398) target = $region64
        $region63: #{_lambda_.1} parent=51 // pred_region
          _
        $region64: #{_lambda_.1} parent=51 // pred_fallthru
          _
        // Predicated region
        $region65: #{_lambda_.1} parent=51 // pred_check
          %p3401 = pneg %p242
        $region66: #{_lambda_.1} parent=51 // pred_check_branch
          %3403 = sbr.rel (%p3401) target = $region68
        $region67: #{_lambda_.1} parent=51 // pred_region
          _
        $region68: #{_lambda_.1} parent=51 // pred_fallthru
          _
      $region52: #{_lambda_.1} parent=5 // pred_fallthru
        _
      %p3404 = scmp.le.s32.totalorder 2, %s20
      // Predicated region
      $region69: #{_lambda_.1} parent=5 // pred_check
        %p3405 = pneg %p3404
      $region70: #{_lambda_.1} parent=5 // pred_check_branch
        %3407 = sbr.rel (%p3405) target = $region72
      $region71: #{_lambda_.1} parent=5 // pred_region
        %s3408 = ssub.s32 %s20, 2
        // Predicated region
        $region73: #{_lambda_.1} parent=71 // pred_check
          %p3409 = pneg %p222
        $region74: #{_lambda_.1} parent=71 // pred_check_branch
          %3411 = sbr.rel (%p3409) target = $region76
        $region75: #{_lambda_.1} parent=71 // pred_region
          %p3412 = scmp.lt.s32.totalorder %s26, 1
          %s3413 = scalar_select %p3412, %s26, 1
          %s3414 = smul.addr %s3413, 2
          %s3415 = smul.addr %s3414, 4
          %s3416 = scalar_lea.vmem %s8, %s3415
        $region76: #{_lambda_.1} parent=71 // pred_fallthru
          _
        // Predicated region
        $region77: #{_lambda_.1} parent=71 // pred_check
          %p3417 = pneg %p248
        $region78: #{_lambda_.1} parent=71 // pred_check_branch
          %3419 = sbr.rel (%p3417) target = $region80
        $region79: #{_lambda_.1} parent=71 // pred_region
          %p3420 = scmp.lt.s32.totalorder %s26, 1
          %s3421 = scalar_select %p3420, %s26, 1
          %s3422 = smul.addr %s3421, 2
          %s3423 = scalar_lea.vmem %s9, %s3422
        $region80: #{_lambda_.1} parent=71 // pred_fallthru
          _
      $region72: #{_lambda_.1} parent=5 // pred_fallthru
        _
    $region6: #{_lambda_.1} parent=1 // loop_footer
      %s24 = sadd.s32 1, %s20
    $region7: #{_lambda_.1} parent=1 // loop_footer_branch
      %19 = sbr.rel target = $region3
    $region8: #{_lambda_.1} parent=1 // loop_exit
      _
    %3424 = vsyncpa [#allocation4], 1
    %s3425 = scalar_lea.sflag [#allocation4], 1
    %3426 = vsyncpa %s3425, 1
    %3427 = vsyncpa [#allocation6], 1

</llo_original>
